<compile_context>
chip_gen: v7x
topology: tpu7x:2x2x1
jax: 0.10.0
libtpu: 0.0.40
codegen_flags: <defaults>
</compile_context>

<pallas_src>
import functools
import math

import numpy as np

import jax
import jax.numpy as jnp
from jax.experimental import pallas as pl
from jax.experimental.pallas import tpu as pltpu

NEG_SLOPE = 0.2                    # nn.LeakyReLU(negative_slope=0.2)
BN_EPS = 1e-5
VMEM_LIMIT = 32 * 1024 * 1024      # lifts v5e's 16 MiB scoped default; safe on v6e/v7x
MM_DTYPE = jnp.bfloat16            # MXU-input dtype (accumulation stays f32)


# ----------------------------- Pallas kernel --------------------------------

def _fused_conv_kernel(*refs, kh, pad, h_c, w_c, cin, cout,
                       pro_leaky, has_res_in, epi_leaky,
                       has_pw, pw_leaky, has_res_out,
                       emit_stats, resize_mode, mm_dtype):
    """Per-image fused conv block, lane-dense (H, W*C) layout.

    prologue : x' = in_scale*x + in_shift  (folded BN of the previous layer)
               [-> LeakyReLU] [-> + res_in]
    resize   : optional bilinear resize  Ry @ x' @ (Rx (x) I_C)^T, emitted as output;
               in "pre" mode the conv consumes the resized tensor.
    conv     : H-only zero pad in VMEM; kh banded lane-dense matmuls (+ bias).
               W padding / kw taps are folded into the banded weight matrices.
    epilogue : [LeakyReLU] [-> 1x1 conv as block-diag matmul (+ bias, LeakyReLU)]
               [-> + res_out]
    stats    : optional per-image channel sum / sum-of-squares (next BN's statistics).
    """
    it = iter(refs)
    x_ref = next(it)                                   # (h_in, w_in*cin)
    sc_ref = next(it)                                  # (1, w_in*cin)
    sh_ref = next(it)                                  # (1, w_in*cin)
    res_in_ref = next(it) if has_res_in else None      # (h_in, w_in*cin)
    ry_ref = next(it) if resize_mode else None         # (h_o, h_in)
    rxc_ref = next(it) if resize_mode else None        # (w_in*cin, w_o*cin)
    bw_ref = next(it)                                  # (kh, w_c*cin, w_c*cout)
    bias_ref = next(it)                                # (1, w_c*cout)
    k2_ref = next(it) if has_pw else None              # (w_c*cout, w_c*cfin)
    b2_ref = next(it) if has_pw else None              # (1, w_c*cfin)
    res_out_ref = next(it) if has_res_out else None    # (h_c, w_c*cfin)
    y_ref = next(it)                                   # out (h_c, w_c*cfin)
    st_ref = next(it) if emit_stats else None          # out (2, w_c*cfin)
    rz_ref = next(it) if resize_mode else None         # out (h_o, w_o*cin)
    pad_ref = next(it)                                 # scratch (h_c+2*pad, w_c*cin) f32

    f32 = jnp.float32

    # ---- prologue (f32 elementwise: folded BN affine / activation / skip) ----
    x = x_ref[...].astype(f32)
    x = x * sc_ref[...] + sh_ref[...]
    if pro_leaky:
        x = jnp.where(x >= 0, x, NEG_SLOPE * x)
    if has_res_in:
        x = x + res_in_ref[...].astype(f32)

    # ---- optional fused bilinear resize (lane-dense, MXU) ----
    if resize_mode is not None:
        t = jnp.dot(ry_ref[...], x.astype(mm_dtype), preferred_element_type=f32)
        xr = jnp.dot(t.astype(mm_dtype), rxc_ref[...], preferred_element_type=f32)
        rz_ref[...] = xr.astype(rz_ref.dtype)
        if resize_mode == "pre":
            x = xr                                     # conv consumes the resized tensor

    # ---- conv: H-only zero padding in VMEM (W padding folded into banded weights) ----
    wc_in = w_c * cin
    if pad > 0:                                        # zero ONLY the halo rows, per step
        border = jnp.zeros((pad, wc_in), f32)
        pad_ref[0:pad, :] = border
        pad_ref[pad + h_c:2 * pad + h_c, :] = border
    pad_ref[pad:pad + h_c, :] = x

    acc = jnp.zeros((h_c, w_c * cout), f32)
    for ky in range(kh):                               # kh lane-dense matmuls, K = w_c*cin
        acc = acc + jnp.dot(pad_ref[ky:ky + h_c, :].astype(mm_dtype), bw_ref[ky],
                            preferred_element_type=f32)
    y = acc + bias_ref[...]

    # ---- epilogue ----
    if epi_leaky:
        y = jnp.where(y >= 0, y, NEG_SLOPE * y)
    if has_pw:                                         # 1x1 conv as block-diagonal matmul
        y = jnp.dot(y.astype(mm_dtype), k2_ref[...], preferred_element_type=f32) + b2_ref[...]
        if pw_leaky:
            y = jnp.where(y >= 0, y, NEG_SLOPE * y)
    if has_res_out:
        y = y + res_out_ref[...].astype(f32)

    if emit_stats:                                     # per-image partial BN statistics
        st_ref[0:1, :] = jnp.sum(y, axis=0, keepdims=True)
        st_ref[1:2, :] = jnp.sum(y * y, axis=0, keepdims=True)

    y_ref[...] = y.astype(y_ref.dtype)


# ------------------------------ JAX wrappers ---------------------------------

def _banded_weights(wts, kh, kw, cin, cout, pad, width, dtype):
    """Fold the kw taps and the W zero-padding into kh banded (W*Cin, W*Cout) matrices."""
    D = np.zeros((kw, width, width), np.float32)
    for kx in range(kw):
        for col in range(width):
            src = col + kx - pad
            if 0 <= src < width:
                D[kx, src, col] = 1.0
    wk = wts.reshape(kh, kw, cin, cout)
    B = jnp.einsum('xsw,kxio->ksiwo', jnp.asarray(D), wk)
    return B.reshape(kh, width * cin, width * cout).astype(dtype)


def _blockdiag_1x1(w2, width, dtype):
    """1x1 conv in lane-dense layout: block-diagonal (W*Cin, W*Cout) matrix."""
    K2 = jnp.einsum('wv,io->wivo', jnp.eye(width, dtype=jnp.float32), w2)
    return K2.reshape(width * w2.shape[0], width * w2.shape[1]).astype(dtype)


def fused_conv(x, wts, bias, *, kh, kw, pad, cin, cout,
               in_scale=None, in_shift=None, pro_leaky=False, res_in=None,
               epi_leaky=False, pw_w=None, pw_b=None, pw_leaky=False,
               res_out=None, emit_stats=True, resize_mode=None, ry=None, rx=None):
    """x: (N, h_in, w_in*cin) lane-dense.  Returns (y, stats_or_None, resized_or_None)."""
    N, h_in, wc = x.shape
    w_in = wc // cin
    cfin = pw_w.shape[-1] if pw_w is not None else cout
    f32 = jnp.float32

    if resize_mode is not None:
        h_o, w_o = ry.shape[0], rx.shape[0]
    else:
        h_o = w_o = 0
    h_c, w_c = (h_o, w_o) if resize_mode == "pre" else (h_in, w_in)

    sc_t = (jnp.tile(in_scale.astype(f32), w_in) if in_scale is not None
            else jnp.ones((w_in * cin,), f32)).reshape(1, -1)
    sh_t = (jnp.tile(in_shift.astype(f32), w_in) if in_shift is not None
            else jnp.zeros((w_in * cin,), f32)).reshape(1, -1)

    args = [x, sc_t, sh_t]
    in_specs = [
        pl.BlockSpec((None, h_in, w_in * cin), lambda n: (n, 0, 0)),
        pl.BlockSpec((1, w_in * cin), lambda n: (0, 0)),
        pl.BlockSpec((1, w_in * cin), lambda n: (0, 0)),
    ]
    if res_in is not None:
        args.append(res_in)
        in_specs.append(pl.BlockSpec((None, h_in, w_in * cin), lambda n: (n, 0, 0)))
    if resize_mode is not None:
        ry_m = jnp.asarray(ry, dtype=MM_DTYPE)
        rxc_m = jnp.asarray(np.kron(rx, np.eye(cin, dtype=np.float32)).T, dtype=MM_DTYPE)
        args += [ry_m, rxc_m]
        in_specs += [pl.BlockSpec((h_o, h_in), lambda n: (0, 0)),
                     pl.BlockSpec((w_in * cin, w_o * cin), lambda n: (0, 0))]
    bw = _banded_weights(wts, kh, kw, cin, cout, pad, w_c, MM_DTYPE)
    bias_t = jnp.tile(bias.astype(f32), w_c).reshape(1, -1)
    args += [bw, bias_t]
    in_specs += [pl.BlockSpec((kh, w_c * cin, w_c * cout), lambda n: (0, 0, 0)),
                 pl.BlockSpec((1, w_c * cout), lambda n: (0, 0))]
    if pw_w is not None:
        k2 = _blockdiag_1x1(pw_w, w_c, MM_DTYPE)
        b2_t = jnp.tile(pw_b.astype(f32), w_c).reshape(1, -1)
        args += [k2, b2_t]
        in_specs += [pl.BlockSpec((w_c * cout, w_c * cfin), lambda n: (0, 0)),
                     pl.BlockSpec((1, w_c * cfin), lambda n: (0, 0))]
    if res_out is not None:
        args.append(res_out)
        in_specs.append(pl.BlockSpec((None, h_c, w_c * cfin), lambda n: (n, 0, 0)))

    out_shapes = [jax.ShapeDtypeStruct((N, h_c, w_c * cfin), f32)]
    out_specs = [pl.BlockSpec((None, h_c, w_c * cfin), lambda n: (n, 0, 0))]
    if emit_stats:
        out_shapes.append(jax.ShapeDtypeStruct((N, 2, w_c * cfin), f32))
        out_specs.append(pl.BlockSpec((None, 2, w_c * cfin), lambda n: (n, 0, 0)))
    if resize_mode is not None:
        out_shapes.append(jax.ShapeDtypeStruct((N, h_o, w_o * cin), f32))
        out_specs.append(pl.BlockSpec((None, h_o, w_o * cin), lambda n: (n, 0, 0)))

    # advisory scheduling hint for the XLA glue around the call
    conv_flops = 2 * kh * h_c * (w_c * cin) * (w_c * cout)
    pw_flops = 2 * h_c * (w_c * cout) * (w_c * cfin) if pw_w is not None else 0
    rz_flops = (2 * (h_o * h_in * (w_in * cin) + h_o * (w_in * cin) * (w_o * cin))
                if resize_mode is not None else 0)
    bytes_acc = sum(int(np.prod(a.shape)) * jnp.dtype(a.dtype).itemsize for a in args)
    bytes_acc += sum(int(np.prod(s.shape)) * 4 for s in out_shapes)
    cost = pl.CostEstimate(flops=int(N * (conv_flops + pw_flops + rz_flops)),
                           transcendentals=0, bytes_accessed=int(bytes_acc))

    kern = functools.partial(
        _fused_conv_kernel, kh=kh, pad=pad, h_c=h_c, w_c=w_c, cin=cin, cout=cout,
        pro_leaky=pro_leaky, has_res_in=res_in is not None, epi_leaky=epi_leaky,
        has_pw=pw_w is not None, pw_leaky=pw_leaky, has_res_out=res_out is not None,
        emit_stats=emit_stats, resize_mode=resize_mode, mm_dtype=MM_DTYPE)

    outs = pl.pallas_call(
        kern,
        out_shape=tuple(out_shapes),
        grid=(N,),
        in_specs=in_specs,
        out_specs=tuple(out_specs),
        scratch_shapes=[pltpu.VMEM((h_c + 2 * pad, w_c * cin), f32)],
        compiler_params=pltpu.CompilerParams(
            dimension_semantics=("parallel",),
            vmem_limit_bytes=VMEM_LIMIT),
        cost_estimate=cost,
    )(*args)

    y = outs[0]
    idx = 1
    st = rz = None
    if emit_stats:
        st = outs[idx]; idx += 1
    if resize_mode is not None:
        rz = outs[idx]
    return y, st, rz


def _bn_affine(stats, gamma, beta, count):
    """Exact full-batch train-mode BN affine from per-image (2, W*C) partial sums."""
    c = gamma.shape[0]
    tot = jnp.sum(stats.reshape(stats.shape[0], 2, -1, c), axis=(0, 2))   # (2, c)
    mean = tot[0] / count
    var = jnp.maximum(tot[1] / count - mean * mean, 0.0)   # biased variance, like torch
    scale = gamma * jax.lax.rsqrt(var + BN_EPS)
    shift = beta - mean * scale
    return scale, shift


def _bilinear_matrix(in_size, scale_factor):
    """Row-interp matrix matching F.interpolate(mode='bilinear', align_corners=False)."""
    out_size = int(math.floor(in_size * scale_factor))
    dst = np.arange(out_size, dtype=np.float64)
    src = (dst + 0.5) / scale_factor - 0.5
    src = np.maximum(src, 0.0)
    i0 = np.minimum(np.floor(src).astype(np.int64), in_size - 1)
    i1 = np.minimum(i0 + 1, in_size - 1)
    w1 = src - i0
    w0 = 1.0 - w1
    R = np.zeros((out_size, in_size), dtype=np.float32)
    R[np.arange(out_size), i0] += w0.astype(np.float32)
    R[np.arange(out_size), i1] += w1.astype(np.float32)
    return R


# ------------------------------ Full forward ---------------------------------

def resizing_network_forward(x_nchw, params, scale_factor=0.5):
    N, cin, H, W = x_nchw.shape
    n_ch = params["conv2_w"].shape[-1]
    # entry glue: NCHW -> lane-dense (N, H, W*Cin), once
    x = jnp.transpose(x_nchw, (0, 2, 3, 1)).reshape(N, H, W * cin)

    ry = _bilinear_matrix(H, scale_factor)
    rx = _bilinear_matrix(W, scale_factor)
    Ho, Wo = ry.shape[0], rx.shape[0]

    # 1) conv1(7x7) -> leaky -> conv2(1x1) -> leaky ; also emits residual = resize(x)
    a2, st1, residual = fused_conv(
        x, params["conv1_w"], params["conv1_b"], kh=7, kw=7, pad=3, cin=cin, cout=n_ch,
        epi_leaky=True, pw_w=params["conv2_w"], pw_b=params["conv2_b"], pw_leaky=True,
        emit_stats=True, resize_mode="emit", ry=ry, rx=rx)
    sc1, sh1 = _bn_affine(st1, params["bn1_g"], params["bn1_b"], N * H * W)

    # 2) bn1 affine -> bilinear resize (out_residual emitted) -> ResBlock conv1(3x3)
    z1, st2, out_res = fused_conv(
        a2, params["rb_conv1_w"], params["rb_conv1_b"], kh=3, kw=3, pad=1,
        cin=n_ch, cout=n_ch, in_scale=sc1, in_shift=sh1,
        emit_stats=True, resize_mode="pre", ry=ry, rx=rx)
    s_rb1, h_rb1 = _bn_affine(st2, params["rb_bn1_g"], params["rb_bn1_b"], N * Ho * Wo)

    # 3) ResBlock: bn1 -> leaky -> conv2(3x3)
    z2, st3, _ = fused_conv(
        z1, params["rb_conv2_w"], params["rb_conv2_b"], kh=3, kw=3, pad=1,
        cin=n_ch, cout=n_ch, in_scale=s_rb1, in_shift=h_rb1, pro_leaky=True)
    s_rb2, h_rb2 = _bn_affine(st3, params["rb_bn2_g"], params["rb_bn2_b"], N * Ho * Wo)

    # 4) conv3( rb_bn2(z2) + out_residual )
    z3, st4, _ = fused_conv(
        z2, params["conv3_w"], params["conv3_b"], kh=3, kw=3, pad=1,
        cin=n_ch, cout=n_ch, in_scale=s_rb2, in_shift=h_rb2, res_in=out_res)
    s_bn2, h_bn2 = _bn_affine(st4, params["bn2_g"], params["bn2_b"], N * Ho * Wo)

    # 5) conv4( bn2(z3) + out_residual ) + residual   (no stats needed)
    y, _, _ = fused_conv(
        z3, params["conv4_w"], params["conv4_b"], kh=7, kw=7, pad=3,
        cin=n_ch, cout=cin, in_scale=s_bn2, in_shift=h_bn2,
        res_in=out_res, res_out=residual, emit_stats=False)

    # exit glue: lane-dense -> NCHW
    return jnp.transpose(y.reshape(N, Ho, Wo, cin), (0, 3, 1, 2))


# ------------------------------ Parameters -----------------------------------

def init_params(key, in_channels=3, n=16):
    ks = jax.random.split(key, 12)

    def w(k, kh, kw, cin, cout):
        # stored as (kh*kw, cin, cout): per-tap matrices, folded into banded operators
        return jax.random.normal(k, (kh * kw, cin, cout), jnp.float32) * 0.05

    def b(k, cout):
        return jax.random.normal(k, (cout,), jnp.float32) * 0.05

    ones = lambda c: jnp.ones((c,), jnp.float32)
    zeros = lambda c: jnp.zeros((c,), jnp.float32)

    return {
        "conv1_w": w(ks[0], 7, 7, in_channels, n), "conv1_b": b(ks[1], n),
        "conv2_w": jax.random.normal(ks[2], (n, n), jnp.float32) * 0.05,  # 1x1 conv
        "conv2_b": b(ks[3], n),
        "bn1_g": ones(n), "bn1_b": zeros(n),
        "rb_conv1_w": w(ks[4], 3, 3, n, n), "rb_conv1_b": b(ks[5], n),
        "rb_bn1_g": ones(n), "rb_bn1_b": zeros(n),
        "rb_conv2_w": w(ks[6], 3, 3, n, n), "rb_conv2_b": b(ks[7], n),
        "rb_bn2_g": ones(n), "rb_bn2_b": zeros(n),
        "conv3_w": w(ks[8], 3, 3, n, n), "conv3_b": b(ks[9], n),
        "bn2_g": ones(n), "bn2_b": zeros(n),
        "conv4_w": w(ks[10], 7, 7, n, in_channels), "conv4_b": b(ks[11], in_channels),
    }


# --------------------------------- Main ---------------------------------------

if __name__ == "__main__":
    key = jax.random.PRNGKey(0)
    k_x, k_p = jax.random.split(key)

    N, Cin, H, W = 2, 3, 16, 16
    params = init_params(k_p, in_channels=Cin, n=16)
    x = jax.random.normal(k_x, (N, Cin, H, W), jnp.float32)

    fwd = jax.jit(lambda xx: resizing_network_forward(xx, params))
    out = fwd(x)
    jax.block_until_ready(out)

    assert out.shape == (N, Cin, H // 2, W // 2), out.shape
    assert bool(jnp.all(jnp.isfinite(out)))
    print("KERNEL_OK")
</pallas_src>

<mosaic_0001>
module attributes {stable_mosaic.version = 11 : i64} {
  func.func @_fused_conv_kernel(%arg0: i32, %arg1: memref<1x16x48xf32, #tpu.memory_space<vmem>>, %arg2: memref<1x48xf32, #tpu.memory_space<vmem>>, %arg3: memref<1x48xf32, #tpu.memory_space<vmem>>, %arg4: memref<8x16xbf16, #tpu.memory_space<vmem>>, %arg5: memref<48x24xbf16, #tpu.memory_space<vmem>>, %arg6: memref<7x48x256xbf16, #tpu.memory_space<vmem>>, %arg7: memref<1x256xf32, #tpu.memory_space<vmem>>, %arg8: memref<256x256xbf16, #tpu.memory_space<vmem>>, %arg9: memref<1x256xf32, #tpu.memory_space<vmem>>, %arg10: memref<1x16x256xf32, #tpu.memory_space<vmem>>, %arg11: memref<1x2x256xf32, #tpu.memory_space<vmem>>, %arg12: memref<1x8x24xf32, #tpu.memory_space<vmem>>, %arg13: memref<22x48xf32, #tpu.memory_space<vmem>>) attributes {dimension_semantics = [#tpu.dimension_semantics<parallel>], iteration_bounds = array<i64: 2>, scalar_prefetch = 0 : i64, scratch_operands = 1 : i64, tpu.core_type = #tpu.core_type<tc>, window_params = [{transform_indices = @transform_0, window_bounds = array<i64: 1, 16, 48>}, {pipeline_mode = #tpu.pipeline_mode<synchronous>, transform_indices = @transform_1, window_bounds = array<i64: 1, 48>}, {pipeline_mode = #tpu.pipeline_mode<synchronous>, transform_indices = @transform_2, window_bounds = array<i64: 1, 48>}, {pipeline_mode = #tpu.pipeline_mode<synchronous>, transform_indices = @transform_3, window_bounds = array<i64: 8, 16>}, {pipeline_mode = #tpu.pipeline_mode<synchronous>, transform_indices = @transform_4, window_bounds = array<i64: 48, 24>}, {pipeline_mode = #tpu.pipeline_mode<synchronous>, transform_indices = @transform_5, window_bounds = array<i64: 7, 48, 256>}, {pipeline_mode = #tpu.pipeline_mode<synchronous>, transform_indices = @transform_6, window_bounds = array<i64: 1, 256>}, {pipeline_mode = #tpu.pipeline_mode<synchronous>, transform_indices = @transform_7, window_bounds = array<i64: 256, 256>}, {pipeline_mode = #tpu.pipeline_mode<synchronous>, transform_indices = @transform_8, window_bounds = array<i64: 1, 256>}, {transform_indices = @transform_9, window_bounds = array<i64: 1, 16, 256>}, {transform_indices = @transform_10, window_bounds = array<i64: 1, 2, 256>}, {transform_indices = @transform_11, window_bounds = array<i64: 1, 8, 24>}]} {
    %c0 = arith.constant 0 : index
    %c0_0 = arith.constant 0 : index
    %c0_1 = arith.constant 0 : index
    %0 = vector.load %arg1[%c0, %c0_0, %c0_1] : memref<1x16x48xf32, #tpu.memory_space<vmem>>, vector<1x16x48xf32>
    %1 = vector.shape_cast %0 : vector<1x16x48xf32> to vector<16x48xf32>
    %c0_2 = arith.constant 0 : index
    %c0_3 = arith.constant 0 : index
    %2 = vector.load %arg2[%c0_2, %c0_3] : memref<1x48xf32, #tpu.memory_space<vmem>>, vector<1x48xf32>
    %3 = vector.broadcast %2 : vector<1x48xf32> to vector<16x48xf32>
    %4 = arith.mulf %1, %3 : vector<16x48xf32>
    %c0_4 = arith.constant 0 : index
    %c0_5 = arith.constant 0 : index
    %5 = vector.load %arg3[%c0_4, %c0_5] : memref<1x48xf32, #tpu.memory_space<vmem>>, vector<1x48xf32>
    %6 = vector.broadcast %5 : vector<1x48xf32> to vector<16x48xf32>
    %7 = arith.addf %4, %6 : vector<16x48xf32>
    %c0_6 = arith.constant 0 : index
    %c0_7 = arith.constant 0 : index
    %8 = vector.load %arg4[%c0_6, %c0_7] : memref<8x16xbf16, #tpu.memory_space<vmem>>, vector<8x16xbf16>
    %9 = arith.truncf %7 : vector<16x48xf32> to vector<16x48xbf16>
    %cst = arith.constant dense<0.000000e+00> : vector<8x48xf32>
    %10 = tpu.matmul %8, %9, %cst {dimension_numbers = #tpu.dot_dimension_numbers<[1], [0], [0], [1], [0, 0, 1, 1], [], []>} : vector<8x16xbf16>, vector<16x48xbf16>, vector<8x48xf32> -> vector<8x48xf32>
    %11 = arith.truncf %10 : vector<8x48xf32> to vector<8x48xbf16>
    %c0_8 = arith.constant 0 : index
    %c0_9 = arith.constant 0 : index
    %12 = vector.load %arg5[%c0_8, %c0_9] : memref<48x24xbf16, #tpu.memory_space<vmem>>, vector<48x24xbf16>
    %cst_10 = arith.constant dense<0.000000e+00> : vector<8x24xf32>
    %13 = tpu.matmul %11, %12, %cst_10 {dimension_numbers = #tpu.dot_dimension_numbers<[1], [0], [0], [1], [0, 0, 1, 1], [], []>} : vector<8x48xbf16>, vector<48x24xbf16>, vector<8x24xf32> -> vector<8x24xf32>
    %c0_11 = arith.constant 0 : index
    %c0_12 = arith.constant 0 : index
    %c0_13 = arith.constant 0 : index
    %14 = vector.load %arg12[%c0_11, %c0_12, %c0_13] : memref<1x8x24xf32, #tpu.memory_space<vmem>>, vector<1x8x24xf32>
    %15 = vector.shape_cast %14 : vector<1x8x24xf32> to vector<8x24xf32>
    %16 = vector.shape_cast %13 : vector<8x24xf32> to vector<1x8x24xf32>
    tpu.vector_store %arg12[%c0_11, %c0_12, %c0_13], %16 {strides = array<i32>} : memref<1x8x24xf32, #tpu.memory_space<vmem>>, vector<1x8x24xf32>,
    %cst_14 = arith.constant 0.000000e+00 : f32
    %17 = vector.broadcast %cst_14 : f32 to vector<3x48xf32>
    %c0_15 = arith.constant 0 : index
    %c0_16 = arith.constant 0 : index
    %18 = vector.load %arg13[%c0_15, %c0_16] : memref<22x48xf32, #tpu.memory_space<vmem>>, vector<3x48xf32>
    tpu.vector_store %arg13[%c0_15, %c0_16], %17 {strides = array<i32>} : memref<22x48xf32, #tpu.memory_space<vmem>>, vector<3x48xf32>,
    %c19 = arith.constant 19 : index
    %c0_17 = arith.constant 0 : index
    %19 = vector.load %arg13[%c19, %c0_17] : memref<22x48xf32, #tpu.memory_space<vmem>>, vector<3x48xf32>
    tpu.vector_store %arg13[%c19, %c0_17], %17 {strides = array<i32>} : memref<22x48xf32, #tpu.memory_space<vmem>>, vector<3x48xf32>,
    %c3 = arith.constant 3 : index
    %c0_18 = arith.constant 0 : index
    %20 = vector.load %arg13[%c3, %c0_18] : memref<22x48xf32, #tpu.memory_space<vmem>>, vector<16x48xf32>
    tpu.vector_store %arg13[%c3, %c0_18], %7 {strides = array<i32>} : memref<22x48xf32, #tpu.memory_space<vmem>>, vector<16x48xf32>,
    %cst_19 = arith.constant 0.000000e+00 : f32
    %21 = vector.broadcast %cst_19 : f32 to vector<16x256xf32>
    %c0_20 = arith.constant 0 : index
    %c0_21 = arith.constant 0 : index
    %22 = vector.load %arg13[%c0_20, %c0_21] : memref<22x48xf32, #tpu.memory_space<vmem>>, vector<16x48xf32>
    %23 = arith.truncf %22 : vector<16x48xf32> to vector<16x48xbf16>
    %c0_22 = arith.constant 0 : index
    %c0_23 = arith.constant 0 : index
    %c0_24 = arith.constant 0 : index
    %24 = vector.load %arg6[%c0_22, %c0_23, %c0_24] : memref<7x48x256xbf16, #tpu.memory_space<vmem>>, vector<1x48x256xbf16>
    %25 = vector.shape_cast %24 : vector<1x48x256xbf16> to vector<48x256xbf16>
    %cst_25 = arith.constant dense<0.000000e+00> : vector<16x256xf32>
    %26 = tpu.matmul %23, %25, %cst_25 {dimension_numbers = #tpu.dot_dimension_numbers<[1], [0], [0], [1], [0, 0, 1, 1], [], []>} : vector<16x48xbf16>, vector<48x256xbf16>, vector<16x256xf32> -> vector<16x256xf32>
    %27 = arith.addf %21, %26 : vector<16x256xf32>
    %c1 = arith.constant 1 : index
    %c0_26 = arith.constant 0 : index
    %28 = vector.load %arg13[%c1, %c0_26] : memref<22x48xf32, #tpu.memory_space<vmem>>, vector<16x48xf32>
    %29 = arith.truncf %28 : vector<16x48xf32> to vector<16x48xbf16>
    %c1_27 = arith.constant 1 : index
    %c0_28 = arith.constant 0 : index
    %c0_29 = arith.constant 0 : index
    %30 = vector.load %arg6[%c1_27, %c0_28, %c0_29] : memref<7x48x256xbf16, #tpu.memory_space<vmem>>, vector<1x48x256xbf16>
    %31 = vector.shape_cast %30 : vector<1x48x256xbf16> to vector<48x256xbf16>
    %cst_30 = arith.constant dense<0.000000e+00> : vector<16x256xf32>
    %32 = tpu.matmul %29, %31, %cst_30 {dimension_numbers = #tpu.dot_dimension_numbers<[1], [0], [0], [1], [0, 0, 1, 1], [], []>} : vector<16x48xbf16>, vector<48x256xbf16>, vector<16x256xf32> -> vector<16x256xf32>
    %33 = arith.addf %27, %32 : vector<16x256xf32>
    %c2 = arith.constant 2 : index
    %c0_31 = arith.constant 0 : index
    %34 = vector.load %arg13[%c2, %c0_31] : memref<22x48xf32, #tpu.memory_space<vmem>>, vector<16x48xf32>
    %35 = arith.truncf %34 : vector<16x48xf32> to vector<16x48xbf16>
    %c2_32 = arith.constant 2 : index
    %c0_33 = arith.constant 0 : index
    %c0_34 = arith.constant 0 : index
    %36 = vector.load %arg6[%c2_32, %c0_33, %c0_34] : memref<7x48x256xbf16, #tpu.memory_space<vmem>>, vector<1x48x256xbf16>
    %37 = vector.shape_cast %36 : vector<1x48x256xbf16> to vector<48x256xbf16>
    %cst_35 = arith.constant dense<0.000000e+00> : vector<16x256xf32>
    %38 = tpu.matmul %35, %37, %cst_35 {dimension_numbers = #tpu.dot_dimension_numbers<[1], [0], [0], [1], [0, 0, 1, 1], [], []>} : vector<16x48xbf16>, vector<48x256xbf16>, vector<16x256xf32> -> vector<16x256xf32>
    %39 = arith.addf %33, %38 : vector<16x256xf32>
    %c3_36 = arith.constant 3 : index
    %c0_37 = arith.constant 0 : index
    %40 = vector.load %arg13[%c3_36, %c0_37] : memref<22x48xf32, #tpu.memory_space<vmem>>, vector<16x48xf32>
    %41 = arith.truncf %40 : vector<16x48xf32> to vector<16x48xbf16>
    %c3_38 = arith.constant 3 : index
    %c0_39 = arith.constant 0 : index
    %c0_40 = arith.constant 0 : index
    %42 = vector.load %arg6[%c3_38, %c0_39, %c0_40] : memref<7x48x256xbf16, #tpu.memory_space<vmem>>, vector<1x48x256xbf16>
    %43 = vector.shape_cast %42 : vector<1x48x256xbf16> to vector<48x256xbf16>
    %cst_41 = arith.constant dense<0.000000e+00> : vector<16x256xf32>
    %44 = tpu.matmul %41, %43, %cst_41 {dimension_numbers = #tpu.dot_dimension_numbers<[1], [0], [0], [1], [0, 0, 1, 1], [], []>} : vector<16x48xbf16>, vector<48x256xbf16>, vector<16x256xf32> -> vector<16x256xf32>
    %45 = arith.addf %39, %44 : vector<16x256xf32>
    %c4 = arith.constant 4 : index
    %c0_42 = arith.constant 0 : index
    %46 = vector.load %arg13[%c4, %c0_42] : memref<22x48xf32, #tpu.memory_space<vmem>>, vector<16x48xf32>
    %47 = arith.truncf %46 : vector<16x48xf32> to vector<16x48xbf16>
    %c4_43 = arith.constant 4 : index
    %c0_44 = arith.constant 0 : index
    %c0_45 = arith.constant 0 : index
    %48 = vector.load %arg6[%c4_43, %c0_44, %c0_45] : memref<7x48x256xbf16, #tpu.memory_space<vmem>>, vector<1x48x256xbf16>
    %49 = vector.shape_cast %48 : vector<1x48x256xbf16> to vector<48x256xbf16>
    %cst_46 = arith.constant dense<0.000000e+00> : vector<16x256xf32>
    %50 = tpu.matmul %47, %49, %cst_46 {dimension_numbers = #tpu.dot_dimension_numbers<[1], [0], [0], [1], [0, 0, 1, 1], [], []>} : vector<16x48xbf16>, vector<48x256xbf16>, vector<16x256xf32> -> vector<16x256xf32>
    %51 = arith.addf %45, %50 : vector<16x256xf32>
    %c5 = arith.constant 5 : index
    %c0_47 = arith.constant 0 : index
    %52 = vector.load %arg13[%c5, %c0_47] : memref<22x48xf32, #tpu.memory_space<vmem>>, vector<16x48xf32>
    %53 = arith.truncf %52 : vector<16x48xf32> to vector<16x48xbf16>
    %c5_48 = arith.constant 5 : index
    %c0_49 = arith.constant 0 : index
    %c0_50 = arith.constant 0 : index
    %54 = vector.load %arg6[%c5_48, %c0_49, %c0_50] : memref<7x48x256xbf16, #tpu.memory_space<vmem>>, vector<1x48x256xbf16>
    %55 = vector.shape_cast %54 : vector<1x48x256xbf16> to vector<48x256xbf16>
    %cst_51 = arith.constant dense<0.000000e+00> : vector<16x256xf32>
    %56 = tpu.matmul %53, %55, %cst_51 {dimension_numbers = #tpu.dot_dimension_numbers<[1], [0], [0], [1], [0, 0, 1, 1], [], []>} : vector<16x48xbf16>, vector<48x256xbf16>, vector<16x256xf32> -> vector<16x256xf32>
    %57 = arith.addf %51, %56 : vector<16x256xf32>
    %c6 = arith.constant 6 : index
    %c0_52 = arith.constant 0 : index
    %58 = vector.load %arg13[%c6, %c0_52] : memref<22x48xf32, #tpu.memory_space<vmem>>, vector<16x48xf32>
    %59 = arith.truncf %58 : vector<16x48xf32> to vector<16x48xbf16>
    %c6_53 = arith.constant 6 : index
    %c0_54 = arith.constant 0 : index
    %c0_55 = arith.constant 0 : index
    %60 = vector.load %arg6[%c6_53, %c0_54, %c0_55] : memref<7x48x256xbf16, #tpu.memory_space<vmem>>, vector<1x48x256xbf16>
    %61 = vector.shape_cast %60 : vector<1x48x256xbf16> to vector<48x256xbf16>
    %cst_56 = arith.constant dense<0.000000e+00> : vector<16x256xf32>
    %62 = tpu.matmul %59, %61, %cst_56 {dimension_numbers = #tpu.dot_dimension_numbers<[1], [0], [0], [1], [0, 0, 1, 1], [], []>} : vector<16x48xbf16>, vector<48x256xbf16>, vector<16x256xf32> -> vector<16x256xf32>
    %63 = arith.addf %57, %62 : vector<16x256xf32>
    %c0_57 = arith.constant 0 : index
    %c0_58 = arith.constant 0 : index
    %64 = vector.load %arg7[%c0_57, %c0_58] : memref<1x256xf32, #tpu.memory_space<vmem>>, vector<1x256xf32>
    %65 = vector.broadcast %64 : vector<1x256xf32> to vector<16x256xf32>
    %66 = arith.addf %63, %65 : vector<16x256xf32>
    %cst_59 = arith.constant 0.000000e+00 : f32
    %67 = vector.broadcast %cst_59 : f32 to vector<16x256xf32>
    %68 = arith.cmpf oge, %66, %67 : vector<16x256xf32>
    %cst_60 = arith.constant 2.000000e-01 : f32
    %69 = vector.broadcast %cst_60 : f32 to vector<16x256xf32>
    %70 = arith.mulf %69, %66 : vector<16x256xf32>
    %71 = arith.select %68, %66, %70 : vector<16x256xi1>, vector<16x256xf32>
    %72 = arith.truncf %71 : vector<16x256xf32> to vector<16x256xbf16>
    %c0_61 = arith.constant 0 : index
    %c0_62 = arith.constant 0 : index
    %73 = vector.load %arg8[%c0_61, %c0_62] : memref<256x256xbf16, #tpu.memory_space<vmem>>, vector<256x256xbf16>
    %cst_63 = arith.constant dense<0.000000e+00> : vector<16x256xf32>
    %74 = tpu.matmul %72, %73, %cst_63 {dimension_numbers = #tpu.dot_dimension_numbers<[1], [0], [0], [1], [0, 0, 1, 1], [], []>} : vector<16x256xbf16>, vector<256x256xbf16>, vector<16x256xf32> -> vector<16x256xf32>
    %c0_64 = arith.constant 0 : index
    %c0_65 = arith.constant 0 : index
    %75 = vector.load %arg9[%c0_64, %c0_65] : memref<1x256xf32, #tpu.memory_space<vmem>>, vector<1x256xf32>
    %76 = vector.broadcast %75 : vector<1x256xf32> to vector<16x256xf32>
    %77 = arith.addf %74, %76 : vector<16x256xf32>
    %cst_66 = arith.constant 0.000000e+00 : f32
    %78 = vector.broadcast %cst_66 : f32 to vector<16x256xf32>
    %79 = arith.cmpf oge, %77, %78 : vector<16x256xf32>
    %cst_67 = arith.constant 2.000000e-01 : f32
    %80 = vector.broadcast %cst_67 : f32 to vector<16x256xf32>
    %81 = arith.mulf %80, %77 : vector<16x256xf32>
    %82 = arith.select %79, %77, %81 : vector<16x256xi1>, vector<16x256xf32>
    %cst_68 = arith.constant dense<0.000000e+00> : vector<256xf32>
    %83 = vector.multi_reduction <add>, %82, %cst_68 [0] : vector<16x256xf32> to vector<256xf32>
    %84 = vector.shape_cast %83 : vector<256xf32> to vector<1x256xf32>
    %c0_69 = arith.constant 0 : index
    %c0_70 = arith.constant 0 : index
    %c0_71 = arith.constant 0 : index
    %85 = vector.load %arg11[%c0_69, %c0_70, %c0_71] : memref<1x2x256xf32, #tpu.memory_space<vmem>>, vector<1x1x256xf32>
    %86 = vector.shape_cast %85 : vector<1x1x256xf32> to vector<1x256xf32>
    %87 = vector.shape_cast %84 : vector<1x256xf32> to vector<1x1x256xf32>
    tpu.vector_store %arg11[%c0_69, %c0_70, %c0_71], %87 {strides = array<i32>} : memref<1x2x256xf32, #tpu.memory_space<vmem>>, vector<1x1x256xf32>,
    %88 = arith.mulf %82, %82 : vector<16x256xf32>
    %cst_72 = arith.constant dense<0.000000e+00> : vector<256xf32>
    %89 = vector.multi_reduction <add>, %88, %cst_72 [0] : vector<16x256xf32> to vector<256xf32>
    %90 = vector.shape_cast %89 : vector<256xf32> to vector<1x256xf32>
    %c0_73 = arith.constant 0 : index
    %c1_74 = arith.constant 1 : index
    %c0_75 = arith.constant 0 : index
    %91 = vector.load %arg11[%c0_73, %c1_74, %c0_75] : memref<1x2x256xf32, #tpu.memory_space<vmem>>, vector<1x1x256xf32>
    %92 = vector.shape_cast %91 : vector<1x1x256xf32> to vector<1x256xf32>
    %93 = vector.shape_cast %90 : vector<1x256xf32> to vector<1x1x256xf32>
    tpu.vector_store %arg11[%c0_73, %c1_74, %c0_75], %93 {strides = array<i32>} : memref<1x2x256xf32, #tpu.memory_space<vmem>>, vector<1x1x256xf32>,
    %c0_76 = arith.constant 0 : index
    %c0_77 = arith.constant 0 : index
    %c0_78 = arith.constant 0 : index
    %94 = vector.load %arg10[%c0_76, %c0_77, %c0_78] : memref<1x16x256xf32, #tpu.memory_space<vmem>>, vector<1x16x256xf32>
    %95 = vector.shape_cast %94 : vector<1x16x256xf32> to vector<16x256xf32>
    %96 = vector.shape_cast %82 : vector<16x256xf32> to vector<1x16x256xf32>
    tpu.vector_store %arg10[%c0_76, %c0_77, %c0_78], %96 {strides = array<i32>} : memref<1x16x256xf32, #tpu.memory_space<vmem>>, vector<1x16x256xf32>,
    return
  }
  func.func @transform_0(%arg0: i32) -> (i32, i32, i32) {
    %c0_i32 = arith.constant 0 : i32
    %c0_i32_0 = arith.constant 0 : i32
    %c0_i32_1 = arith.constant 0 : i32
    return %arg0, %c0_i32, %c0_i32_0 : i32, i32, i32
  }
  func.func @transform_1(%arg0: i32) -> (i32, i32) {
    %c0_i32 = arith.constant 0 : i32
    %c0_i32_0 = arith.constant 0 : i32
    %c0_i32_1 = arith.constant 0 : i32
    return %c0_i32, %c0_i32_0 : i32, i32
  }
  func.func @transform_2(%arg0: i32) -> (i32, i32) {
    %c0_i32 = arith.constant 0 : i32
    %c0_i32_0 = arith.constant 0 : i32
    %c0_i32_1 = arith.constant 0 : i32
    return %c0_i32, %c0_i32_0 : i32, i32
  }
  func.func @transform_3(%arg0: i32) -> (i32, i32) {
    %c0_i32 = arith.constant 0 : i32
    %c0_i32_0 = arith.constant 0 : i32
    %c0_i32_1 = arith.constant 0 : i32
    return %c0_i32, %c0_i32_0 : i32, i32
  }
  func.func @transform_4(%arg0: i32) -> (i32, i32) {
    %c0_i32 = arith.constant 0 : i32
    %c0_i32_0 = arith.constant 0 : i32
    %c0_i32_1 = arith.constant 0 : i32
    return %c0_i32, %c0_i32_0 : i32, i32
  }
  func.func @transform_5(%arg0: i32) -> (i32, i32, i32) {
    %c0_i32 = arith.constant 0 : i32
    %c0_i32_0 = arith.constant 0 : i32
    %c0_i32_1 = arith.constant 0 : i32
    %c0_i32_2 = arith.constant 0 : i32
    return %c0_i32, %c0_i32_0, %c0_i32_1 : i32, i32, i32
  }
  func.func @transform_6(%arg0: i32) -> (i32, i32) {
    %c0_i32 = arith.constant 0 : i32
    %c0_i32_0 = arith.constant 0 : i32
    %c0_i32_1 = arith.constant 0 : i32
    return %c0_i32, %c0_i32_0 : i32, i32
  }
  func.func @transform_7(%arg0: i32) -> (i32, i32) {
    %c0_i32 = arith.constant 0 : i32
    %c0_i32_0 = arith.constant 0 : i32
    %c0_i32_1 = arith.constant 0 : i32
    return %c0_i32, %c0_i32_0 : i32, i32
  }
  func.func @transform_8(%arg0: i32) -> (i32, i32) {
    %c0_i32 = arith.constant 0 : i32
    %c0_i32_0 = arith.constant 0 : i32
    %c0_i32_1 = arith.constant 0 : i32
    return %c0_i32, %c0_i32_0 : i32, i32
  }
  func.func @transform_9(%arg0: i32) -> (i32, i32, i32) {
    %c0_i32 = arith.constant 0 : i32
    %c0_i32_0 = arith.constant 0 : i32
    %c0_i32_1 = arith.constant 0 : i32
    return %arg0, %c0_i32, %c0_i32_0 : i32, i32, i32
  }
  func.func @transform_10(%arg0: i32) -> (i32, i32, i32) {
    %c0_i32 = arith.constant 0 : i32
    %c0_i32_0 = arith.constant 0 : i32
    %c0_i32_1 = arith.constant 0 : i32
    return %arg0, %c0_i32, %c0_i32_0 : i32, i32, i32
  }
  func.func @transform_11(%arg0: i32) -> (i32, i32, i32) {
    %c0_i32 = arith.constant 0 : i32
    %c0_i32_0 = arith.constant 0 : i32
    %c0_i32_1 = arith.constant 0 : i32
    return %arg0, %c0_i32, %c0_i32_0 : i32, i32, i32
  }
}

module attributes {stable_mosaic.version = 11 : i64} {
  func.func @_fused_conv_kernel(%arg0: i32, %arg1: memref<1x16x256xf32, #tpu.memory_space<vmem>>, %arg2: memref<1x256xf32, #tpu.memory_space<vmem>>, %arg3: memref<1x256xf32, #tpu.memory_space<vmem>>, %arg4: memref<8x16xbf16, #tpu.memory_space<vmem>>, %arg5: memref<256x128xbf16, #tpu.memory_space<vmem>>, %arg6: memref<3x128x128xbf16, #tpu.memory_space<vmem>>, %arg7: memref<1x128xf32, #tpu.memory_space<vmem>>, %arg8: memref<1x8x128xf32, #tpu.memory_space<vmem>>, %arg9: memref<1x2x128xf32, #tpu.memory_space<vmem>>, %arg10: memref<1x8x128xf32, #tpu.memory_space<vmem>>, %arg11: memref<10x128xf32, #tpu.memory_space<vmem>>) attributes {dimension_semantics = [#tpu.dimension_semantics<parallel>], iteration_bounds = array<i64: 2>, scalar_prefetch = 0 : i64, scratch_operands = 1 : i64, tpu.core_type = #tpu.core_type<tc>, window_params = [{transform_indices = @transform_0, window_bounds = array<i64: 1, 16, 256>}, {pipeline_mode = #tpu.pipeline_mode<synchronous>, transform_indices = @transform_1, window_bounds = array<i64: 1, 256>}, {pipeline_mode = #tpu.pipeline_mode<synchronous>, transform_indices = @transform_2, window_bounds = array<i64: 1, 256>}, {pipeline_mode = #tpu.pipeline_mode<synchronous>, transform_indices = @transform_3, window_bounds = array<i64: 8, 16>}, {pipeline_mode = #tpu.pipeline_mode<synchronous>, transform_indices = @transform_4, window_bounds = array<i64: 256, 128>}, {pipeline_mode = #tpu.pipeline_mode<synchronous>, transform_indices = @transform_5, window_bounds = array<i64: 3, 128, 128>}, {pipeline_mode = #tpu.pipeline_mode<synchronous>, transform_indices = @transform_6, window_bounds = array<i64: 1, 128>}, {transform_indices = @transform_7, window_bounds = array<i64: 1, 8, 128>}, {transform_indices = @transform_8, window_bounds = array<i64: 1, 2, 128>}, {transform_indices = @transform_9, window_bounds = array<i64: 1, 8, 128>}]} {
    %c0 = arith.constant 0 : index
    %c0_0 = arith.constant 0 : index
    %c0_1 = arith.constant 0 : index
    %0 = vector.load %arg1[%c0, %c0_0, %c0_1] : memref<1x16x256xf32, #tpu.memory_space<vmem>>, vector<1x16x256xf32>
    %1 = vector.shape_cast %0 : vector<1x16x256xf32> to vector<16x256xf32>
    %c0_2 = arith.constant 0 : index
    %c0_3 = arith.constant 0 : index
    %2 = vector.load %arg2[%c0_2, %c0_3] : memref<1x256xf32, #tpu.memory_space<vmem>>, vector<1x256xf32>
    %3 = vector.broadcast %2 : vector<1x256xf32> to vector<16x256xf32>
    %4 = arith.mulf %1, %3 : vector<16x256xf32>
    %c0_4 = arith.constant 0 : index
    %c0_5 = arith.constant 0 : index
    %5 = vector.load %arg3[%c0_4, %c0_5] : memref<1x256xf32, #tpu.memory_space<vmem>>, vector<1x256xf32>
    %6 = vector.broadcast %5 : vector<1x256xf32> to vector<16x256xf32>
    %7 = arith.addf %4, %6 : vector<16x256xf32>
    %c0_6 = arith.constant 0 : index
    %c0_7 = arith.constant 0 : index
    %8 = vector.load %arg4[%c0_6, %c0_7] : memref<8x16xbf16, #tpu.memory_space<vmem>>, vector<8x16xbf16>
    %9 = arith.truncf %7 : vector<16x256xf32> to vector<16x256xbf16>
    %cst = arith.constant dense<0.000000e+00> : vector<8x256xf32>
    %10 = tpu.matmul %8, %9, %cst {dimension_numbers = #tpu.dot_dimension_numbers<[1], [0], [0], [1], [0, 0, 1, 1], [], []>} : vector<8x16xbf16>, vector<16x256xbf16>, vector<8x256xf32> -> vector<8x256xf32>
    %11 = arith.truncf %10 : vector<8x256xf32> to vector<8x256xbf16>
    %c0_8 = arith.constant 0 : index
    %c0_9 = arith.constant 0 : index
    %12 = vector.load %arg5[%c0_8, %c0_9] : memref<256x128xbf16, #tpu.memory_space<vmem>>, vector<256x128xbf16>
    %cst_10 = arith.constant dense<0.000000e+00> : vector<8x128xf32>
    %13 = tpu.matmul %11, %12, %cst_10 {dimension_numbers = #tpu.dot_dimension_numbers<[1], [0], [0], [1], [0, 0, 1, 1], [], []>} : vector<8x256xbf16>, vector<256x128xbf16>, vector<8x128xf32> -> vector<8x128xf32>
    %c0_11 = arith.constant 0 : index
    %c0_12 = arith.constant 0 : index
    %c0_13 = arith.constant 0 : index
    %14 = vector.load %arg10[%c0_11, %c0_12, %c0_13] : memref<1x8x128xf32, #tpu.memory_space<vmem>>, vector<1x8x128xf32>
    %15 = vector.shape_cast %14 : vector<1x8x128xf32> to vector<8x128xf32>
    %16 = vector.shape_cast %13 : vector<8x128xf32> to vector<1x8x128xf32>
    tpu.vector_store %arg10[%c0_11, %c0_12, %c0_13], %16 {strides = array<i32>} : memref<1x8x128xf32, #tpu.memory_space<vmem>>, vector<1x8x128xf32>,
    %cst_14 = arith.constant 0.000000e+00 : f32
    %17 = vector.broadcast %cst_14 : f32 to vector<1x128xf32>
    %c0_15 = arith.constant 0 : index
    %c0_16 = arith.constant 0 : index
    %18 = vector.load %arg11[%c0_15, %c0_16] : memref<10x128xf32, #tpu.memory_space<vmem>>, vector<1x128xf32>
    tpu.vector_store %arg11[%c0_15, %c0_16], %17 {strides = array<i32>} : memref<10x128xf32, #tpu.memory_space<vmem>>, vector<1x128xf32>,
    %c9 = arith.constant 9 : index
    %c0_17 = arith.constant 0 : index
    %19 = vector.load %arg11[%c9, %c0_17] : memref<10x128xf32, #tpu.memory_space<vmem>>, vector<1x128xf32>
    tpu.vector_store %arg11[%c9, %c0_17], %17 {strides = array<i32>} : memref<10x128xf32, #tpu.memory_space<vmem>>, vector<1x128xf32>,
    %c1 = arith.constant 1 : index
    %c0_18 = arith.constant 0 : index
    %20 = vector.load %arg11[%c1, %c0_18] : memref<10x128xf32, #tpu.memory_space<vmem>>, vector<8x128xf32>
    tpu.vector_store %arg11[%c1, %c0_18], %13 {strides = array<i32>} : memref<10x128xf32, #tpu.memory_space<vmem>>, vector<8x128xf32>,
    %cst_19 = arith.constant 0.000000e+00 : f32
    %21 = vector.broadcast %cst_19 : f32 to vector<8x128xf32>
    %c0_20 = arith.constant 0 : index
    %c0_21 = arith.constant 0 : index
    %22 = vector.load %arg11[%c0_20, %c0_21] : memref<10x128xf32, #tpu.memory_space<vmem>>, vector<8x128xf32>
    %23 = arith.truncf %22 : vector<8x128xf32> to vector<8x128xbf16>
    %c0_22 = arith.constant 0 : index
    %c0_23 = arith.constant 0 : index
    %c0_24 = arith.constant 0 : index
    %24 = vector.load %arg6[%c0_22, %c0_23, %c0_24] : memref<3x128x128xbf16, #tpu.memory_space<vmem>>, vector<1x128x128xbf16>
    %25 = vector.shape_cast %24 : vector<1x128x128xbf16> to vector<128x128xbf16>
    %cst_25 = arith.constant dense<0.000000e+00> : vector<8x128xf32>
    %26 = tpu.matmul %23, %25, %cst_25 {dimension_numbers = #tpu.dot_dimension_numbers<[1], [0], [0], [1], [0, 0, 1, 1], [], []>} : vector<8x128xbf16>, vector<128x128xbf16>, vector<8x128xf32> -> vector<8x128xf32>
    %27 = arith.addf %21, %26 : vector<8x128xf32>
    %c1_26 = arith.constant 1 : index
    %c0_27 = arith.constant 0 : index
    %28 = vector.load %arg11[%c1_26, %c0_27] : memref<10x128xf32, #tpu.memory_space<vmem>>, vector<8x128xf32>
    %29 = arith.truncf %28 : vector<8x128xf32> to vector<8x128xbf16>
    %c1_28 = arith.constant 1 : index
    %c0_29 = arith.constant 0 : index
    %c0_30 = arith.constant 0 : index
    %30 = vector.load %arg6[%c1_28, %c0_29, %c0_30] : memref<3x128x128xbf16, #tpu.memory_space<vmem>>, vector<1x128x128xbf16>
    %31 = vector.shape_cast %30 : vector<1x128x128xbf16> to vector<128x128xbf16>
    %cst_31 = arith.constant dense<0.000000e+00> : vector<8x128xf32>
    %32 = tpu.matmul %29, %31, %cst_31 {dimension_numbers = #tpu.dot_dimension_numbers<[1], [0], [0], [1], [0, 0, 1, 1], [], []>} : vector<8x128xbf16>, vector<128x128xbf16>, vector<8x128xf32> -> vector<8x128xf32>
    %33 = arith.addf %27, %32 : vector<8x128xf32>
    %c2 = arith.constant 2 : index
    %c0_32 = arith.constant 0 : index
    %34 = vector.load %arg11[%c2, %c0_32] : memref<10x128xf32, #tpu.memory_space<vmem>>, vector<8x128xf32>
    %35 = arith.truncf %34 : vector<8x128xf32> to vector<8x128xbf16>
    %c2_33 = arith.constant 2 : index
    %c0_34 = arith.constant 0 : index
    %c0_35 = arith.constant 0 : index
    %36 = vector.load %arg6[%c2_33, %c0_34, %c0_35] : memref<3x128x128xbf16, #tpu.memory_space<vmem>>, vector<1x128x128xbf16>
    %37 = vector.shape_cast %36 : vector<1x128x128xbf16> to vector<128x128xbf16>
    %cst_36 = arith.constant dense<0.000000e+00> : vector<8x128xf32>
    %38 = tpu.matmul %35, %37, %cst_36 {dimension_numbers = #tpu.dot_dimension_numbers<[1], [0], [0], [1], [0, 0, 1, 1], [], []>} : vector<8x128xbf16>, vector<128x128xbf16>, vector<8x128xf32> -> vector<8x128xf32>
    %39 = arith.addf %33, %38 : vector<8x128xf32>
    %c0_37 = arith.constant 0 : index
    %c0_38 = arith.constant 0 : index
    %40 = vector.load %arg7[%c0_37, %c0_38] : memref<1x128xf32, #tpu.memory_space<vmem>>, vector<1x128xf32>
    %41 = vector.broadcast %40 : vector<1x128xf32> to vector<8x128xf32>
    %42 = arith.addf %39, %41 : vector<8x128xf32>
    %cst_39 = arith.constant dense<0.000000e+00> : vector<128xf32>
    %43 = vector.multi_reduction <add>, %42, %cst_39 [0] : vector<8x128xf32> to vector<128xf32>
    %44 = vector.shape_cast %43 : vector<128xf32> to vector<1x128xf32>
    %c0_40 = arith.constant 0 : index
    %c0_41 = arith.constant 0 : index
    %c0_42 = arith.constant 0 : index
    %45 = vector.load %arg9[%c0_40, %c0_41, %c0_42] : memref<1x2x128xf32, #tpu.memory_space<vmem>>, vector<1x1x128xf32>
    %46 = vector.shape_cast %45 : vector<1x1x128xf32> to vector<1x128xf32>
    %47 = vector.shape_cast %44 : vector<1x128xf32> to vector<1x1x128xf32>
    tpu.vector_store %arg9[%c0_40, %c0_41, %c0_42], %47 {strides = array<i32>} : memref<1x2x128xf32, #tpu.memory_space<vmem>>, vector<1x1x128xf32>,
    %48 = arith.mulf %42, %42 : vector<8x128xf32>
    %cst_43 = arith.constant dense<0.000000e+00> : vector<128xf32>
    %49 = vector.multi_reduction <add>, %48, %cst_43 [0] : vector<8x128xf32> to vector<128xf32>
    %50 = vector.shape_cast %49 : vector<128xf32> to vector<1x128xf32>
    %c0_44 = arith.constant 0 : index
    %c1_45 = arith.constant 1 : index
    %c0_46 = arith.constant 0 : index
    %51 = vector.load %arg9[%c0_44, %c1_45, %c0_46] : memref<1x2x128xf32, #tpu.memory_space<vmem>>, vector<1x1x128xf32>
    %52 = vector.shape_cast %51 : vector<1x1x128xf32> to vector<1x128xf32>
    %53 = vector.shape_cast %50 : vector<1x128xf32> to vector<1x1x128xf32>
    tpu.vector_store %arg9[%c0_44, %c1_45, %c0_46], %53 {strides = array<i32>} : memref<1x2x128xf32, #tpu.memory_space<vmem>>, vector<1x1x128xf32>,
    %c0_47 = arith.constant 0 : index
    %c0_48 = arith.constant 0 : index
    %c0_49 = arith.constant 0 : index
    %54 = vector.load %arg8[%c0_47, %c0_48, %c0_49] : memref<1x8x128xf32, #tpu.memory_space<vmem>>, vector<1x8x128xf32>
    %55 = vector.shape_cast %54 : vector<1x8x128xf32> to vector<8x128xf32>
    %56 = vector.shape_cast %42 : vector<8x128xf32> to vector<1x8x128xf32>
    tpu.vector_store %arg8[%c0_47, %c0_48, %c0_49], %56 {strides = array<i32>} : memref<1x8x128xf32, #tpu.memory_space<vmem>>, vector<1x8x128xf32>,
    return
  }
  func.func @transform_0(%arg0: i32) -> (i32, i32, i32) {
    %c0_i32 = arith.constant 0 : i32
    %c0_i32_0 = arith.constant 0 : i32
    %c0_i32_1 = arith.constant 0 : i32
    return %arg0, %c0_i32, %c0_i32_0 : i32, i32, i32
  }
  func.func @transform_1(%arg0: i32) -> (i32, i32) {
    %c0_i32 = arith.constant 0 : i32
    %c0_i32_0 = arith.constant 0 : i32
    %c0_i32_1 = arith.constant 0 : i32
    return %c0_i32, %c0_i32_0 : i32, i32
  }
  func.func @transform_2(%arg0: i32) -> (i32, i32) {
    %c0_i32 = arith.constant 0 : i32
    %c0_i32_0 = arith.constant 0 : i32
    %c0_i32_1 = arith.constant 0 : i32
    return %c0_i32, %c0_i32_0 : i32, i32
  }
  func.func @transform_3(%arg0: i32) -> (i32, i32) {
    %c0_i32 = arith.constant 0 : i32
    %c0_i32_0 = arith.constant 0 : i32
    %c0_i32_1 = arith.constant 0 : i32
    return %c0_i32, %c0_i32_0 : i32, i32
  }
  func.func @transform_4(%arg0: i32) -> (i32, i32) {
    %c0_i32 = arith.constant 0 : i32
    %c0_i32_0 = arith.constant 0 : i32
    %c0_i32_1 = arith.constant 0 : i32
    return %c0_i32, %c0_i32_0 : i32, i32
  }
  func.func @transform_5(%arg0: i32) -> (i32, i32, i32) {
    %c0_i32 = arith.constant 0 : i32
    %c0_i32_0 = arith.constant 0 : i32
    %c0_i32_1 = arith.constant 0 : i32
    %c0_i32_2 = arith.constant 0 : i32
    return %c0_i32, %c0_i32_0, %c0_i32_1 : i32, i32, i32
  }
  func.func @transform_6(%arg0: i32) -> (i32, i32) {
    %c0_i32 = arith.constant 0 : i32
    %c0_i32_0 = arith.constant 0 : i32
    %c0_i32_1 = arith.constant 0 : i32
    return %c0_i32, %c0_i32_0 : i32, i32
  }
  func.func @transform_7(%arg0: i32) -> (i32, i32, i32) {
    %c0_i32 = arith.constant 0 : i32
    %c0_i32_0 = arith.constant 0 : i32
    %c0_i32_1 = arith.constant 0 : i32
    return %arg0, %c0_i32, %c0_i32_0 : i32, i32, i32
  }
  func.func @transform_8(%arg0: i32) -> (i32, i32, i32) {
    %c0_i32 = arith.constant 0 : i32
    %c0_i32_0 = arith.constant 0 : i32
    %c0_i32_1 = arith.constant 0 : i32
    return %arg0, %c0_i32, %c0_i32_0 : i32, i32, i32
  }
  func.func @transform_9(%arg0: i32) -> (i32, i32, i32) {
    %c0_i32 = arith.constant 0 : i32
    %c0_i32_0 = arith.constant 0 : i32
    %c0_i32_1 = arith.constant 0 : i32
    return %arg0, %c0_i32, %c0_i32_0 : i32, i32, i32
  }
}

module attributes {stable_mosaic.version = 11 : i64} {
  func.func @_fused_conv_kernel(%arg0: i32, %arg1: memref<1x8x128xf32, #tpu.memory_space<vmem>>, %arg2: memref<1x128xf32, #tpu.memory_space<vmem>>, %arg3: memref<1x128xf32, #tpu.memory_space<vmem>>, %arg4: memref<3x128x128xbf16, #tpu.memory_space<vmem>>, %arg5: memref<1x128xf32, #tpu.memory_space<vmem>>, %arg6: memref<1x8x128xf32, #tpu.memory_space<vmem>>, %arg7: memref<1x2x128xf32, #tpu.memory_space<vmem>>, %arg8: memref<10x128xf32, #tpu.memory_space<vmem>>) attributes {dimension_semantics = [#tpu.dimension_semantics<parallel>], iteration_bounds = array<i64: 2>, scalar_prefetch = 0 : i64, scratch_operands = 1 : i64, tpu.core_type = #tpu.core_type<tc>, window_params = [{transform_indices = @transform_0, window_bounds = array<i64: 1, 8, 128>}, {pipeline_mode = #tpu.pipeline_mode<synchronous>, transform_indices = @transform_1, window_bounds = array<i64: 1, 128>}, {pipeline_mode = #tpu.pipeline_mode<synchronous>, transform_indices = @transform_2, window_bounds = array<i64: 1, 128>}, {pipeline_mode = #tpu.pipeline_mode<synchronous>, transform_indices = @transform_3, window_bounds = array<i64: 3, 128, 128>}, {pipeline_mode = #tpu.pipeline_mode<synchronous>, transform_indices = @transform_4, window_bounds = array<i64: 1, 128>}, {transform_indices = @transform_5, window_bounds = array<i64: 1, 8, 128>}, {transform_indices = @transform_6, window_bounds = array<i64: 1, 2, 128>}]} {
    %c0 = arith.constant 0 : index
    %c0_0 = arith.constant 0 : index
    %c0_1 = arith.constant 0 : index
    %0 = vector.load %arg1[%c0, %c0_0, %c0_1] : memref<1x8x128xf32, #tpu.memory_space<vmem>>, vector<1x8x128xf32>
    %1 = vector.shape_cast %0 : vector<1x8x128xf32> to vector<8x128xf32>
    %c0_2 = arith.constant 0 : index
    %c0_3 = arith.constant 0 : index
    %2 = vector.load %arg2[%c0_2, %c0_3] : memref<1x128xf32, #tpu.memory_space<vmem>>, vector<1x128xf32>
    %3 = vector.broadcast %2 : vector<1x128xf32> to vector<8x128xf32>
    %4 = arith.mulf %1, %3 : vector<8x128xf32>
    %c0_4 = arith.constant 0 : index
    %c0_5 = arith.constant 0 : index
    %5 = vector.load %arg3[%c0_4, %c0_5] : memref<1x128xf32, #tpu.memory_space<vmem>>, vector<1x128xf32>
    %6 = vector.broadcast %5 : vector<1x128xf32> to vector<8x128xf32>
    %7 = arith.addf %4, %6 : vector<8x128xf32>
    %cst = arith.constant 0.000000e+00 : f32
    %8 = vector.broadcast %cst : f32 to vector<8x128xf32>
    %9 = arith.cmpf oge, %7, %8 : vector<8x128xf32>
    %cst_6 = arith.constant 2.000000e-01 : f32
    %10 = vector.broadcast %cst_6 : f32 to vector<8x128xf32>
    %11 = arith.mulf %10, %7 : vector<8x128xf32>
    %12 = arith.select %9, %7, %11 : vector<8x128xi1>, vector<8x128xf32>
    %cst_7 = arith.constant 0.000000e+00 : f32
    %13 = vector.broadcast %cst_7 : f32 to vector<1x128xf32>
    %c0_8 = arith.constant 0 : index
    %c0_9 = arith.constant 0 : index
    %14 = vector.load %arg8[%c0_8, %c0_9] : memref<10x128xf32, #tpu.memory_space<vmem>>, vector<1x128xf32>
    tpu.vector_store %arg8[%c0_8, %c0_9], %13 {strides = array<i32>} : memref<10x128xf32, #tpu.memory_space<vmem>>, vector<1x128xf32>,
    %c9 = arith.constant 9 : index
    %c0_10 = arith.constant 0 : index
    %15 = vector.load %arg8[%c9, %c0_10] : memref<10x128xf32, #tpu.memory_space<vmem>>, vector<1x128xf32>
    tpu.vector_store %arg8[%c9, %c0_10], %13 {strides = array<i32>} : memref<10x128xf32, #tpu.memory_space<vmem>>, vector<1x128xf32>,
    %c1 = arith.constant 1 : index
    %c0_11 = arith.constant 0 : index
    %16 = vector.load %arg8[%c1, %c0_11] : memref<10x128xf32, #tpu.memory_space<vmem>>, vector<8x128xf32>
    tpu.vector_store %arg8[%c1, %c0_11], %12 {strides = array<i32>} : memref<10x128xf32, #tpu.memory_space<vmem>>, vector<8x128xf32>,
    %cst_12 = arith.constant 0.000000e+00 : f32
    %17 = vector.broadcast %cst_12 : f32 to vector<8x128xf32>
    %c0_13 = arith.constant 0 : index
    %c0_14 = arith.constant 0 : index
    %18 = vector.load %arg8[%c0_13, %c0_14] : memref<10x128xf32, #tpu.memory_space<vmem>>, vector<8x128xf32>
    %19 = arith.truncf %18 : vector<8x128xf32> to vector<8x128xbf16>
    %c0_15 = arith.constant 0 : index
    %c0_16 = arith.constant 0 : index
    %c0_17 = arith.constant 0 : index
    %20 = vector.load %arg4[%c0_15, %c0_16, %c0_17] : memref<3x128x128xbf16, #tpu.memory_space<vmem>>, vector<1x128x128xbf16>
    %21 = vector.shape_cast %20 : vector<1x128x128xbf16> to vector<128x128xbf16>
    %cst_18 = arith.constant dense<0.000000e+00> : vector<8x128xf32>
    %22 = tpu.matmul %19, %21, %cst_18 {dimension_numbers = #tpu.dot_dimension_numbers<[1], [0], [0], [1], [0, 0, 1, 1], [], []>} : vector<8x128xbf16>, vector<128x128xbf16>, vector<8x128xf32> -> vector<8x128xf32>
    %23 = arith.addf %17, %22 : vector<8x128xf32>
    %c1_19 = arith.constant 1 : index
    %c0_20 = arith.constant 0 : index
    %24 = vector.load %arg8[%c1_19, %c0_20] : memref<10x128xf32, #tpu.memory_space<vmem>>, vector<8x128xf32>
    %25 = arith.truncf %24 : vector<8x128xf32> to vector<8x128xbf16>
    %c1_21 = arith.constant 1 : index
    %c0_22 = arith.constant 0 : index
    %c0_23 = arith.constant 0 : index
    %26 = vector.load %arg4[%c1_21, %c0_22, %c0_23] : memref<3x128x128xbf16, #tpu.memory_space<vmem>>, vector<1x128x128xbf16>
    %27 = vector.shape_cast %26 : vector<1x128x128xbf16> to vector<128x128xbf16>
    %cst_24 = arith.constant dense<0.000000e+00> : vector<8x128xf32>
    %28 = tpu.matmul %25, %27, %cst_24 {dimension_numbers = #tpu.dot_dimension_numbers<[1], [0], [0], [1], [0, 0, 1, 1], [], []>} : vector<8x128xbf16>, vector<128x128xbf16>, vector<8x128xf32> -> vector<8x128xf32>
    %29 = arith.addf %23, %28 : vector<8x128xf32>
    %c2 = arith.constant 2 : index
    %c0_25 = arith.constant 0 : index
    %30 = vector.load %arg8[%c2, %c0_25] : memref<10x128xf32, #tpu.memory_space<vmem>>, vector<8x128xf32>
    %31 = arith.truncf %30 : vector<8x128xf32> to vector<8x128xbf16>
    %c2_26 = arith.constant 2 : index
    %c0_27 = arith.constant 0 : index
    %c0_28 = arith.constant 0 : index
    %32 = vector.load %arg4[%c2_26, %c0_27, %c0_28] : memref<3x128x128xbf16, #tpu.memory_space<vmem>>, vector<1x128x128xbf16>
    %33 = vector.shape_cast %32 : vector<1x128x128xbf16> to vector<128x128xbf16>
    %cst_29 = arith.constant dense<0.000000e+00> : vector<8x128xf32>
    %34 = tpu.matmul %31, %33, %cst_29 {dimension_numbers = #tpu.dot_dimension_numbers<[1], [0], [0], [1], [0, 0, 1, 1], [], []>} : vector<8x128xbf16>, vector<128x128xbf16>, vector<8x128xf32> -> vector<8x128xf32>
    %35 = arith.addf %29, %34 : vector<8x128xf32>
    %c0_30 = arith.constant 0 : index
    %c0_31 = arith.constant 0 : index
    %36 = vector.load %arg5[%c0_30, %c0_31] : memref<1x128xf32, #tpu.memory_space<vmem>>, vector<1x128xf32>
    %37 = vector.broadcast %36 : vector<1x128xf32> to vector<8x128xf32>
    %38 = arith.addf %35, %37 : vector<8x128xf32>
    %cst_32 = arith.constant dense<0.000000e+00> : vector<128xf32>
    %39 = vector.multi_reduction <add>, %38, %cst_32 [0] : vector<8x128xf32> to vector<128xf32>
    %40 = vector.shape_cast %39 : vector<128xf32> to vector<1x128xf32>
    %c0_33 = arith.constant 0 : index
    %c0_34 = arith.constant 0 : index
    %c0_35 = arith.constant 0 : index
    %41 = vector.load %arg7[%c0_33, %c0_34, %c0_35] : memref<1x2x128xf32, #tpu.memory_space<vmem>>, vector<1x1x128xf32>
    %42 = vector.shape_cast %41 : vector<1x1x128xf32> to vector<1x128xf32>
    %43 = vector.shape_cast %40 : vector<1x128xf32> to vector<1x1x128xf32>
    tpu.vector_store %arg7[%c0_33, %c0_34, %c0_35], %43 {strides = array<i32>} : memref<1x2x128xf32, #tpu.memory_space<vmem>>, vector<1x1x128xf32>,
    %44 = arith.mulf %38, %38 : vector<8x128xf32>
    %cst_36 = arith.constant dense<0.000000e+00> : vector<128xf32>
    %45 = vector.multi_reduction <add>, %44, %cst_36 [0] : vector<8x128xf32> to vector<128xf32>
    %46 = vector.shape_cast %45 : vector<128xf32> to vector<1x128xf32>
    %c0_37 = arith.constant 0 : index
    %c1_38 = arith.constant 1 : index
    %c0_39 = arith.constant 0 : index
    %47 = vector.load %arg7[%c0_37, %c1_38, %c0_39] : memref<1x2x128xf32, #tpu.memory_space<vmem>>, vector<1x1x128xf32>
    %48 = vector.shape_cast %47 : vector<1x1x128xf32> to vector<1x128xf32>
    %49 = vector.shape_cast %46 : vector<1x128xf32> to vector<1x1x128xf32>
    tpu.vector_store %arg7[%c0_37, %c1_38, %c0_39], %49 {strides = array<i32>} : memref<1x2x128xf32, #tpu.memory_space<vmem>>, vector<1x1x128xf32>,
    %c0_40 = arith.constant 0 : index
    %c0_41 = arith.constant 0 : index
    %c0_42 = arith.constant 0 : index
    %50 = vector.load %arg6[%c0_40, %c0_41, %c0_42] : memref<1x8x128xf32, #tpu.memory_space<vmem>>, vector<1x8x128xf32>
    %51 = vector.shape_cast %50 : vector<1x8x128xf32> to vector<8x128xf32>
    %52 = vector.shape_cast %38 : vector<8x128xf32> to vector<1x8x128xf32>
    tpu.vector_store %arg6[%c0_40, %c0_41, %c0_42], %52 {strides = array<i32>} : memref<1x8x128xf32, #tpu.memory_space<vmem>>, vector<1x8x128xf32>,
    return
  }
  func.func @transform_0(%arg0: i32) -> (i32, i32, i32) {
    %c0_i32 = arith.constant 0 : i32
    %c0_i32_0 = arith.constant 0 : i32
    %c0_i32_1 = arith.constant 0 : i32
    return %arg0, %c0_i32, %c0_i32_0 : i32, i32, i32
  }
  func.func @transform_1(%arg0: i32) -> (i32, i32) {
    %c0_i32 = arith.constant 0 : i32
    %c0_i32_0 = arith.constant 0 : i32
    %c0_i32_1 = arith.constant 0 : i32
    return %c0_i32, %c0_i32_0 : i32, i32
  }
  func.func @transform_2(%arg0: i32) -> (i32, i32) {
    %c0_i32 = arith.constant 0 : i32
    %c0_i32_0 = arith.constant 0 : i32
    %c0_i32_1 = arith.constant 0 : i32
    return %c0_i32, %c0_i32_0 : i32, i32
  }
  func.func @transform_3(%arg0: i32) -> (i32, i32, i32) {
    %c0_i32 = arith.constant 0 : i32
    %c0_i32_0 = arith.constant 0 : i32
    %c0_i32_1 = arith.constant 0 : i32
    %c0_i32_2 = arith.constant 0 : i32
    return %c0_i32, %c0_i32_0, %c0_i32_1 : i32, i32, i32
  }
  func.func @transform_4(%arg0: i32) -> (i32, i32) {
    %c0_i32 = arith.constant 0 : i32
    %c0_i32_0 = arith.constant 0 : i32
    %c0_i32_1 = arith.constant 0 : i32
    return %c0_i32, %c0_i32_0 : i32, i32
  }
  func.func @transform_5(%arg0: i32) -> (i32, i32, i32) {
    %c0_i32 = arith.constant 0 : i32
    %c0_i32_0 = arith.constant 0 : i32
    %c0_i32_1 = arith.constant 0 : i32
    return %arg0, %c0_i32, %c0_i32_0 : i32, i32, i32
  }
  func.func @transform_6(%arg0: i32) -> (i32, i32, i32) {
    %c0_i32 = arith.constant 0 : i32
    %c0_i32_0 = arith.constant 0 : i32
    %c0_i32_1 = arith.constant 0 : i32
    return %arg0, %c0_i32, %c0_i32_0 : i32, i32, i32
  }
}

module attributes {stable_mosaic.version = 11 : i64} {
  func.func @_fused_conv_kernel(%arg0: i32, %arg1: memref<1x8x128xf32, #tpu.memory_space<vmem>>, %arg2: memref<1x128xf32, #tpu.memory_space<vmem>>, %arg3: memref<1x128xf32, #tpu.memory_space<vmem>>, %arg4: memref<1x8x128xf32, #tpu.memory_space<vmem>>, %arg5: memref<3x128x128xbf16, #tpu.memory_space<vmem>>, %arg6: memref<1x128xf32, #tpu.memory_space<vmem>>, %arg7: memref<1x8x128xf32, #tpu.memory_space<vmem>>, %arg8: memref<1x2x128xf32, #tpu.memory_space<vmem>>, %arg9: memref<10x128xf32, #tpu.memory_space<vmem>>) attributes {dimension_semantics = [#tpu.dimension_semantics<parallel>], iteration_bounds = array<i64: 2>, scalar_prefetch = 0 : i64, scratch_operands = 1 : i64, tpu.core_type = #tpu.core_type<tc>, window_params = [{transform_indices = @transform_0, window_bounds = array<i64: 1, 8, 128>}, {pipeline_mode = #tpu.pipeline_mode<synchronous>, transform_indices = @transform_1, window_bounds = array<i64: 1, 128>}, {pipeline_mode = #tpu.pipeline_mode<synchronous>, transform_indices = @transform_2, window_bounds = array<i64: 1, 128>}, {transform_indices = @transform_3, window_bounds = array<i64: 1, 8, 128>}, {pipeline_mode = #tpu.pipeline_mode<synchronous>, transform_indices = @transform_4, window_bounds = array<i64: 3, 128, 128>}, {pipeline_mode = #tpu.pipeline_mode<synchronous>, transform_indices = @transform_5, window_bounds = array<i64: 1, 128>}, {transform_indices = @transform_6, window_bounds = array<i64: 1, 8, 128>}, {transform_indices = @transform_7, window_bounds = array<i64: 1, 2, 128>}]} {
    %c0 = arith.constant 0 : index
    %c0_0 = arith.constant 0 : index
    %c0_1 = arith.constant 0 : index
    %0 = vector.load %arg1[%c0, %c0_0, %c0_1] : memref<1x8x128xf32, #tpu.memory_space<vmem>>, vector<1x8x128xf32>
    %1 = vector.shape_cast %0 : vector<1x8x128xf32> to vector<8x128xf32>
    %c0_2 = arith.constant 0 : index
    %c0_3 = arith.constant 0 : index
    %2 = vector.load %arg2[%c0_2, %c0_3] : memref<1x128xf32, #tpu.memory_space<vmem>>, vector<1x128xf32>
    %3 = vector.broadcast %2 : vector<1x128xf32> to vector<8x128xf32>
    %4 = arith.mulf %1, %3 : vector<8x128xf32>
    %c0_4 = arith.constant 0 : index
    %c0_5 = arith.constant 0 : index
    %5 = vector.load %arg3[%c0_4, %c0_5] : memref<1x128xf32, #tpu.memory_space<vmem>>, vector<1x128xf32>
    %6 = vector.broadcast %5 : vector<1x128xf32> to vector<8x128xf32>
    %7 = arith.addf %4, %6 : vector<8x128xf32>
    %c0_6 = arith.constant 0 : index
    %c0_7 = arith.constant 0 : index
    %c0_8 = arith.constant 0 : index
    %8 = vector.load %arg4[%c0_6, %c0_7, %c0_8] : memref<1x8x128xf32, #tpu.memory_space<vmem>>, vector<1x8x128xf32>
    %9 = vector.shape_cast %8 : vector<1x8x128xf32> to vector<8x128xf32>
    %10 = arith.addf %7, %9 : vector<8x128xf32>
    %cst = arith.constant 0.000000e+00 : f32
    %11 = vector.broadcast %cst : f32 to vector<1x128xf32>
    %c0_9 = arith.constant 0 : index
    %c0_10 = arith.constant 0 : index
    %12 = vector.load %arg9[%c0_9, %c0_10] : memref<10x128xf32, #tpu.memory_space<vmem>>, vector<1x128xf32>
    tpu.vector_store %arg9[%c0_9, %c0_10], %11 {strides = array<i32>} : memref<10x128xf32, #tpu.memory_space<vmem>>, vector<1x128xf32>,
    %c9 = arith.constant 9 : index
    %c0_11 = arith.constant 0 : index
    %13 = vector.load %arg9[%c9, %c0_11] : memref<10x128xf32, #tpu.memory_space<vmem>>, vector<1x128xf32>
    tpu.vector_store %arg9[%c9, %c0_11], %11 {strides = array<i32>} : memref<10x128xf32, #tpu.memory_space<vmem>>, vector<1x128xf32>,
    %c1 = arith.constant 1 : index
    %c0_12 = arith.constant 0 : index
    %14 = vector.load %arg9[%c1, %c0_12] : memref<10x128xf32, #tpu.memory_space<vmem>>, vector<8x128xf32>
    tpu.vector_store %arg9[%c1, %c0_12], %10 {strides = array<i32>} : memref<10x128xf32, #tpu.memory_space<vmem>>, vector<8x128xf32>,
    %cst_13 = arith.constant 0.000000e+00 : f32
    %15 = vector.broadcast %cst_13 : f32 to vector<8x128xf32>
    %c0_14 = arith.constant 0 : index
    %c0_15 = arith.constant 0 : index
    %16 = vector.load %arg9[%c0_14, %c0_15] : memref<10x128xf32, #tpu.memory_space<vmem>>, vector<8x128xf32>
    %17 = arith.truncf %16 : vector<8x128xf32> to vector<8x128xbf16>
    %c0_16 = arith.constant 0 : index
    %c0_17 = arith.constant 0 : index
    %c0_18 = arith.constant 0 : index
    %18 = vector.load %arg5[%c0_16, %c0_17, %c0_18] : memref<3x128x128xbf16, #tpu.memory_space<vmem>>, vector<1x128x128xbf16>
    %19 = vector.shape_cast %18 : vector<1x128x128xbf16> to vector<128x128xbf16>
    %cst_19 = arith.constant dense<0.000000e+00> : vector<8x128xf32>
    %20 = tpu.matmul %17, %19, %cst_19 {dimension_numbers = #tpu.dot_dimension_numbers<[1], [0], [0], [1], [0, 0, 1, 1], [], []>} : vector<8x128xbf16>, vector<128x128xbf16>, vector<8x128xf32> -> vector<8x128xf32>
    %21 = arith.addf %15, %20 : vector<8x128xf32>
    %c1_20 = arith.constant 1 : index
    %c0_21 = arith.constant 0 : index
    %22 = vector.load %arg9[%c1_20, %c0_21] : memref<10x128xf32, #tpu.memory_space<vmem>>, vector<8x128xf32>
    %23 = arith.truncf %22 : vector<8x128xf32> to vector<8x128xbf16>
    %c1_22 = arith.constant 1 : index
    %c0_23 = arith.constant 0 : index
    %c0_24 = arith.constant 0 : index
    %24 = vector.load %arg5[%c1_22, %c0_23, %c0_24] : memref<3x128x128xbf16, #tpu.memory_space<vmem>>, vector<1x128x128xbf16>
    %25 = vector.shape_cast %24 : vector<1x128x128xbf16> to vector<128x128xbf16>
    %cst_25 = arith.constant dense<0.000000e+00> : vector<8x128xf32>
    %26 = tpu.matmul %23, %25, %cst_25 {dimension_numbers = #tpu.dot_dimension_numbers<[1], [0], [0], [1], [0, 0, 1, 1], [], []>} : vector<8x128xbf16>, vector<128x128xbf16>, vector<8x128xf32> -> vector<8x128xf32>
    %27 = arith.addf %21, %26 : vector<8x128xf32>
    %c2 = arith.constant 2 : index
    %c0_26 = arith.constant 0 : index
    %28 = vector.load %arg9[%c2, %c0_26] : memref<10x128xf32, #tpu.memory_space<vmem>>, vector<8x128xf32>
    %29 = arith.truncf %28 : vector<8x128xf32> to vector<8x128xbf16>
    %c2_27 = arith.constant 2 : index
    %c0_28 = arith.constant 0 : index
    %c0_29 = arith.constant 0 : index
    %30 = vector.load %arg5[%c2_27, %c0_28, %c0_29] : memref<3x128x128xbf16, #tpu.memory_space<vmem>>, vector<1x128x128xbf16>
    %31 = vector.shape_cast %30 : vector<1x128x128xbf16> to vector<128x128xbf16>
    %cst_30 = arith.constant dense<0.000000e+00> : vector<8x128xf32>
    %32 = tpu.matmul %29, %31, %cst_30 {dimension_numbers = #tpu.dot_dimension_numbers<[1], [0], [0], [1], [0, 0, 1, 1], [], []>} : vector<8x128xbf16>, vector<128x128xbf16>, vector<8x128xf32> -> vector<8x128xf32>
    %33 = arith.addf %27, %32 : vector<8x128xf32>
    %c0_31 = arith.constant 0 : index
    %c0_32 = arith.constant 0 : index
    %34 = vector.load %arg6[%c0_31, %c0_32] : memref<1x128xf32, #tpu.memory_space<vmem>>, vector<1x128xf32>
    %35 = vector.broadcast %34 : vector<1x128xf32> to vector<8x128xf32>
    %36 = arith.addf %33, %35 : vector<8x128xf32>
    %cst_33 = arith.constant dense<0.000000e+00> : vector<128xf32>
    %37 = vector.multi_reduction <add>, %36, %cst_33 [0] : vector<8x128xf32> to vector<128xf32>
    %38 = vector.shape_cast %37 : vector<128xf32> to vector<1x128xf32>
    %c0_34 = arith.constant 0 : index
    %c0_35 = arith.constant 0 : index
    %c0_36 = arith.constant 0 : index
    %39 = vector.load %arg8[%c0_34, %c0_35, %c0_36] : memref<1x2x128xf32, #tpu.memory_space<vmem>>, vector<1x1x128xf32>
    %40 = vector.shape_cast %39 : vector<1x1x128xf32> to vector<1x128xf32>
    %41 = vector.shape_cast %38 : vector<1x128xf32> to vector<1x1x128xf32>
    tpu.vector_store %arg8[%c0_34, %c0_35, %c0_36], %41 {strides = array<i32>} : memref<1x2x128xf32, #tpu.memory_space<vmem>>, vector<1x1x128xf32>,
    %42 = arith.mulf %36, %36 : vector<8x128xf32>
    %cst_37 = arith.constant dense<0.000000e+00> : vector<128xf32>
    %43 = vector.multi_reduction <add>, %42, %cst_37 [0] : vector<8x128xf32> to vector<128xf32>
    %44 = vector.shape_cast %43 : vector<128xf32> to vector<1x128xf32>
    %c0_38 = arith.constant 0 : index
    %c1_39 = arith.constant 1 : index
    %c0_40 = arith.constant 0 : index
    %45 = vector.load %arg8[%c0_38, %c1_39, %c0_40] : memref<1x2x128xf32, #tpu.memory_space<vmem>>, vector<1x1x128xf32>
    %46 = vector.shape_cast %45 : vector<1x1x128xf32> to vector<1x128xf32>
    %47 = vector.shape_cast %44 : vector<1x128xf32> to vector<1x1x128xf32>
    tpu.vector_store %arg8[%c0_38, %c1_39, %c0_40], %47 {strides = array<i32>} : memref<1x2x128xf32, #tpu.memory_space<vmem>>, vector<1x1x128xf32>,
    %c0_41 = arith.constant 0 : index
    %c0_42 = arith.constant 0 : index
    %c0_43 = arith.constant 0 : index
    %48 = vector.load %arg7[%c0_41, %c0_42, %c0_43] : memref<1x8x128xf32, #tpu.memory_space<vmem>>, vector<1x8x128xf32>
    %49 = vector.shape_cast %48 : vector<1x8x128xf32> to vector<8x128xf32>
    %50 = vector.shape_cast %36 : vector<8x128xf32> to vector<1x8x128xf32>
    tpu.vector_store %arg7[%c0_41, %c0_42, %c0_43], %50 {strides = array<i32>} : memref<1x8x128xf32, #tpu.memory_space<vmem>>, vector<1x8x128xf32>,
    return
  }
  func.func @transform_0(%arg0: i32) -> (i32, i32, i32) {
    %c0_i32 = arith.constant 0 : i32
    %c0_i32_0 = arith.constant 0 : i32
    %c0_i32_1 = arith.constant 0 : i32
    return %arg0, %c0_i32, %c0_i32_0 : i32, i32, i32
  }
  func.func @transform_1(%arg0: i32) -> (i32, i32) {
    %c0_i32 = arith.constant 0 : i32
    %c0_i32_0 = arith.constant 0 : i32
    %c0_i32_1 = arith.constant 0 : i32
    return %c0_i32, %c0_i32_0 : i32, i32
  }
  func.func @transform_2(%arg0: i32) -> (i32, i32) {
    %c0_i32 = arith.constant 0 : i32
    %c0_i32_0 = arith.constant 0 : i32
    %c0_i32_1 = arith.constant 0 : i32
    return %c0_i32, %c0_i32_0 : i32, i32
  }
  func.func @transform_3(%arg0: i32) -> (i32, i32, i32) {
    %c0_i32 = arith.constant 0 : i32
    %c0_i32_0 = arith.constant 0 : i32
    %c0_i32_1 = arith.constant 0 : i32
    return %arg0, %c0_i32, %c0_i32_0 : i32, i32, i32
  }
  func.func @transform_4(%arg0: i32) -> (i32, i32, i32) {
    %c0_i32 = arith.constant 0 : i32
    %c0_i32_0 = arith.constant 0 : i32
    %c0_i32_1 = arith.constant 0 : i32
    %c0_i32_2 = arith.constant 0 : i32
    return %c0_i32, %c0_i32_0, %c0_i32_1 : i32, i32, i32
  }
  func.func @transform_5(%arg0: i32) -> (i32, i32) {
    %c0_i32 = arith.constant 0 : i32
    %c0_i32_0 = arith.constant 0 : i32
    %c0_i32_1 = arith.constant 0 : i32
    return %c0_i32, %c0_i32_0 : i32, i32
  }
  func.func @transform_6(%arg0: i32) -> (i32, i32, i32) {
    %c0_i32 = arith.constant 0 : i32
    %c0_i32_0 = arith.constant 0 : i32
    %c0_i32_1 = arith.constant 0 : i32
    return %arg0, %c0_i32, %c0_i32_0 : i32, i32, i32
  }
  func.func @transform_7(%arg0: i32) -> (i32, i32, i32) {
    %c0_i32 = arith.constant 0 : i32
    %c0_i32_0 = arith.constant 0 : i32
    %c0_i32_1 = arith.constant 0 : i32
    return %arg0, %c0_i32, %c0_i32_0 : i32, i32, i32
  }
}

module attributes {stable_mosaic.version = 11 : i64} {
  func.func @_fused_conv_kernel(%arg0: i32, %arg1: memref<1x8x128xf32, #tpu.memory_space<vmem>>, %arg2: memref<1x128xf32, #tpu.memory_space<vmem>>, %arg3: memref<1x128xf32, #tpu.memory_space<vmem>>, %arg4: memref<1x8x128xf32, #tpu.memory_space<vmem>>, %arg5: memref<7x128x24xbf16, #tpu.memory_space<vmem>>, %arg6: memref<1x24xf32, #tpu.memory_space<vmem>>, %arg7: memref<1x8x24xf32, #tpu.memory_space<vmem>>, %arg8: memref<1x8x24xf32, #tpu.memory_space<vmem>>, %arg9: memref<14x128xf32, #tpu.memory_space<vmem>>) attributes {dimension_semantics = [#tpu.dimension_semantics<parallel>], iteration_bounds = array<i64: 2>, scalar_prefetch = 0 : i64, scratch_operands = 1 : i64, tpu.core_type = #tpu.core_type<tc>, window_params = [{transform_indices = @transform_0, window_bounds = array<i64: 1, 8, 128>}, {pipeline_mode = #tpu.pipeline_mode<synchronous>, transform_indices = @transform_1, window_bounds = array<i64: 1, 128>}, {pipeline_mode = #tpu.pipeline_mode<synchronous>, transform_indices = @transform_2, window_bounds = array<i64: 1, 128>}, {transform_indices = @transform_3, window_bounds = array<i64: 1, 8, 128>}, {pipeline_mode = #tpu.pipeline_mode<synchronous>, transform_indices = @transform_4, window_bounds = array<i64: 7, 128, 24>}, {pipeline_mode = #tpu.pipeline_mode<synchronous>, transform_indices = @transform_5, window_bounds = array<i64: 1, 24>}, {transform_indices = @transform_6, window_bounds = array<i64: 1, 8, 24>}, {transform_indices = @transform_7, window_bounds = array<i64: 1, 8, 24>}]} {
    %c0 = arith.constant 0 : index
    %c0_0 = arith.constant 0 : index
    %c0_1 = arith.constant 0 : index
    %0 = vector.load %arg1[%c0, %c0_0, %c0_1] : memref<1x8x128xf32, #tpu.memory_space<vmem>>, vector<1x8x128xf32>
    %1 = vector.shape_cast %0 : vector<1x8x128xf32> to vector<8x128xf32>
    %c0_2 = arith.constant 0 : index
    %c0_3 = arith.constant 0 : index
    %2 = vector.load %arg2[%c0_2, %c0_3] : memref<1x128xf32, #tpu.memory_space<vmem>>, vector<1x128xf32>
    %3 = vector.broadcast %2 : vector<1x128xf32> to vector<8x128xf32>
    %4 = arith.mulf %1, %3 : vector<8x128xf32>
    %c0_4 = arith.constant 0 : index
    %c0_5 = arith.constant 0 : index
    %5 = vector.load %arg3[%c0_4, %c0_5] : memref<1x128xf32, #tpu.memory_space<vmem>>, vector<1x128xf32>
    %6 = vector.broadcast %5 : vector<1x128xf32> to vector<8x128xf32>
    %7 = arith.addf %4, %6 : vector<8x128xf32>
    %c0_6 = arith.constant 0 : index
    %c0_7 = arith.constant 0 : index
    %c0_8 = arith.constant 0 : index
    %8 = vector.load %arg4[%c0_6, %c0_7, %c0_8] : memref<1x8x128xf32, #tpu.memory_space<vmem>>, vector<1x8x128xf32>
    %9 = vector.shape_cast %8 : vector<1x8x128xf32> to vector<8x128xf32>
    %10 = arith.addf %7, %9 : vector<8x128xf32>
    %cst = arith.constant 0.000000e+00 : f32
    %11 = vector.broadcast %cst : f32 to vector<3x128xf32>
    %c0_9 = arith.constant 0 : index
    %c0_10 = arith.constant 0 : index
    %12 = vector.load %arg9[%c0_9, %c0_10] : memref<14x128xf32, #tpu.memory_space<vmem>>, vector<3x128xf32>
    tpu.vector_store %arg9[%c0_9, %c0_10], %11 {strides = array<i32>} : memref<14x128xf32, #tpu.memory_space<vmem>>, vector<3x128xf32>,
    %c11 = arith.constant 11 : index
    %c0_11 = arith.constant 0 : index
    %13 = vector.load %arg9[%c11, %c0_11] : memref<14x128xf32, #tpu.memory_space<vmem>>, vector<3x128xf32>
    tpu.vector_store %arg9[%c11, %c0_11], %11 {strides = array<i32>} : memref<14x128xf32, #tpu.memory_space<vmem>>, vector<3x128xf32>,
    %c3 = arith.constant 3 : index
    %c0_12 = arith.constant 0 : index
    %14 = vector.load %arg9[%c3, %c0_12] : memref<14x128xf32, #tpu.memory_space<vmem>>, vector<8x128xf32>
    tpu.vector_store %arg9[%c3, %c0_12], %10 {strides = array<i32>} : memref<14x128xf32, #tpu.memory_space<vmem>>, vector<8x128xf32>,
    %cst_13 = arith.constant 0.000000e+00 : f32
    %15 = vector.broadcast %cst_13 : f32 to vector<8x24xf32>
    %c0_14 = arith.constant 0 : index
    %c0_15 = arith.constant 0 : index
    %16 = vector.load %arg9[%c0_14, %c0_15] : memref<14x128xf32, #tpu.memory_space<vmem>>, vector<8x128xf32>
    %17 = arith.truncf %16 : vector<8x128xf32> to vector<8x128xbf16>
    %c0_16 = arith.constant 0 : index
    %c0_17 = arith.constant 0 : index
    %c0_18 = arith.constant 0 : index
    %18 = vector.load %arg5[%c0_16, %c0_17, %c0_18] : memref<7x128x24xbf16, #tpu.memory_space<vmem>>, vector<1x128x24xbf16>
    %19 = vector.shape_cast %18 : vector<1x128x24xbf16> to vector<128x24xbf16>
    %cst_19 = arith.constant dense<0.000000e+00> : vector<8x24xf32>
    %20 = tpu.matmul %17, %19, %cst_19 {dimension_numbers = #tpu.dot_dimension_numbers<[1], [0], [0], [1], [0, 0, 1, 1], [], []>} : vector<8x128xbf16>, vector<128x24xbf16>, vector<8x24xf32> -> vector<8x24xf32>
    %21 = arith.addf %15, %20 : vector<8x24xf32>
    %c1 = arith.constant 1 : index
    %c0_20 = arith.constant 0 : index
    %22 = vector.load %arg9[%c1, %c0_20] : memref<14x128xf32, #tpu.memory_space<vmem>>, vector<8x128xf32>
    %23 = arith.truncf %22 : vector<8x128xf32> to vector<8x128xbf16>
    %c1_21 = arith.constant 1 : index
    %c0_22 = arith.constant 0 : index
    %c0_23 = arith.constant 0 : index
    %24 = vector.load %arg5[%c1_21, %c0_22, %c0_23] : memref<7x128x24xbf16, #tpu.memory_space<vmem>>, vector<1x128x24xbf16>
    %25 = vector.shape_cast %24 : vector<1x128x24xbf16> to vector<128x24xbf16>
    %cst_24 = arith.constant dense<0.000000e+00> : vector<8x24xf32>
    %26 = tpu.matmul %23, %25, %cst_24 {dimension_numbers = #tpu.dot_dimension_numbers<[1], [0], [0], [1], [0, 0, 1, 1], [], []>} : vector<8x128xbf16>, vector<128x24xbf16>, vector<8x24xf32> -> vector<8x24xf32>
    %27 = arith.addf %21, %26 : vector<8x24xf32>
    %c2 = arith.constant 2 : index
    %c0_25 = arith.constant 0 : index
    %28 = vector.load %arg9[%c2, %c0_25] : memref<14x128xf32, #tpu.memory_space<vmem>>, vector<8x128xf32>
    %29 = arith.truncf %28 : vector<8x128xf32> to vector<8x128xbf16>
    %c2_26 = arith.constant 2 : index
    %c0_27 = arith.constant 0 : index
    %c0_28 = arith.constant 0 : index
    %30 = vector.load %arg5[%c2_26, %c0_27, %c0_28] : memref<7x128x24xbf16, #tpu.memory_space<vmem>>, vector<1x128x24xbf16>
    %31 = vector.shape_cast %30 : vector<1x128x24xbf16> to vector<128x24xbf16>
    %cst_29 = arith.constant dense<0.000000e+00> : vector<8x24xf32>
    %32 = tpu.matmul %29, %31, %cst_29 {dimension_numbers = #tpu.dot_dimension_numbers<[1], [0], [0], [1], [0, 0, 1, 1], [], []>} : vector<8x128xbf16>, vector<128x24xbf16>, vector<8x24xf32> -> vector<8x24xf32>
    %33 = arith.addf %27, %32 : vector<8x24xf32>
    %c3_30 = arith.constant 3 : index
    %c0_31 = arith.constant 0 : index
    %34 = vector.load %arg9[%c3_30, %c0_31] : memref<14x128xf32, #tpu.memory_space<vmem>>, vector<8x128xf32>
    %35 = arith.truncf %34 : vector<8x128xf32> to vector<8x128xbf16>
    %c3_32 = arith.constant 3 : index
    %c0_33 = arith.constant 0 : index
    %c0_34 = arith.constant 0 : index
    %36 = vector.load %arg5[%c3_32, %c0_33, %c0_34] : memref<7x128x24xbf16, #tpu.memory_space<vmem>>, vector<1x128x24xbf16>
    %37 = vector.shape_cast %36 : vector<1x128x24xbf16> to vector<128x24xbf16>
    %cst_35 = arith.constant dense<0.000000e+00> : vector<8x24xf32>
    %38 = tpu.matmul %35, %37, %cst_35 {dimension_numbers = #tpu.dot_dimension_numbers<[1], [0], [0], [1], [0, 0, 1, 1], [], []>} : vector<8x128xbf16>, vector<128x24xbf16>, vector<8x24xf32> -> vector<8x24xf32>
    %39 = arith.addf %33, %38 : vector<8x24xf32>
    %c4 = arith.constant 4 : index
    %c0_36 = arith.constant 0 : index
    %40 = vector.load %arg9[%c4, %c0_36] : memref<14x128xf32, #tpu.memory_space<vmem>>, vector<8x128xf32>
    %41 = arith.truncf %40 : vector<8x128xf32> to vector<8x128xbf16>
    %c4_37 = arith.constant 4 : index
    %c0_38 = arith.constant 0 : index
    %c0_39 = arith.constant 0 : index
    %42 = vector.load %arg5[%c4_37, %c0_38, %c0_39] : memref<7x128x24xbf16, #tpu.memory_space<vmem>>, vector<1x128x24xbf16>
    %43 = vector.shape_cast %42 : vector<1x128x24xbf16> to vector<128x24xbf16>
    %cst_40 = arith.constant dense<0.000000e+00> : vector<8x24xf32>
    %44 = tpu.matmul %41, %43, %cst_40 {dimension_numbers = #tpu.dot_dimension_numbers<[1], [0], [0], [1], [0, 0, 1, 1], [], []>} : vector<8x128xbf16>, vector<128x24xbf16>, vector<8x24xf32> -> vector<8x24xf32>
    %45 = arith.addf %39, %44 : vector<8x24xf32>
    %c5 = arith.constant 5 : index
    %c0_41 = arith.constant 0 : index
    %46 = vector.load %arg9[%c5, %c0_41] : memref<14x128xf32, #tpu.memory_space<vmem>>, vector<8x128xf32>
    %47 = arith.truncf %46 : vector<8x128xf32> to vector<8x128xbf16>
    %c5_42 = arith.constant 5 : index
    %c0_43 = arith.constant 0 : index
    %c0_44 = arith.constant 0 : index
    %48 = vector.load %arg5[%c5_42, %c0_43, %c0_44] : memref<7x128x24xbf16, #tpu.memory_space<vmem>>, vector<1x128x24xbf16>
    %49 = vector.shape_cast %48 : vector<1x128x24xbf16> to vector<128x24xbf16>
    %cst_45 = arith.constant dense<0.000000e+00> : vector<8x24xf32>
    %50 = tpu.matmul %47, %49, %cst_45 {dimension_numbers = #tpu.dot_dimension_numbers<[1], [0], [0], [1], [0, 0, 1, 1], [], []>} : vector<8x128xbf16>, vector<128x24xbf16>, vector<8x24xf32> -> vector<8x24xf32>
    %51 = arith.addf %45, %50 : vector<8x24xf32>
    %c6 = arith.constant 6 : index
    %c0_46 = arith.constant 0 : index
    %52 = vector.load %arg9[%c6, %c0_46] : memref<14x128xf32, #tpu.memory_space<vmem>>, vector<8x128xf32>
    %53 = arith.truncf %52 : vector<8x128xf32> to vector<8x128xbf16>
    %c6_47 = arith.constant 6 : index
    %c0_48 = arith.constant 0 : index
    %c0_49 = arith.constant 0 : index
    %54 = vector.load %arg5[%c6_47, %c0_48, %c0_49] : memref<7x128x24xbf16, #tpu.memory_space<vmem>>, vector<1x128x24xbf16>
    %55 = vector.shape_cast %54 : vector<1x128x24xbf16> to vector<128x24xbf16>
    %cst_50 = arith.constant dense<0.000000e+00> : vector<8x24xf32>
    %56 = tpu.matmul %53, %55, %cst_50 {dimension_numbers = #tpu.dot_dimension_numbers<[1], [0], [0], [1], [0, 0, 1, 1], [], []>} : vector<8x128xbf16>, vector<128x24xbf16>, vector<8x24xf32> -> vector<8x24xf32>
    %57 = arith.addf %51, %56 : vector<8x24xf32>
    %c0_51 = arith.constant 0 : index
    %c0_52 = arith.constant 0 : index
    %58 = vector.load %arg6[%c0_51, %c0_52] : memref<1x24xf32, #tpu.memory_space<vmem>>, vector<1x24xf32>
    %59 = vector.broadcast %58 : vector<1x24xf32> to vector<8x24xf32>
    %60 = arith.addf %57, %59 : vector<8x24xf32>
    %c0_53 = arith.constant 0 : index
    %c0_54 = arith.constant 0 : index
    %c0_55 = arith.constant 0 : index
    %61 = vector.load %arg7[%c0_53, %c0_54, %c0_55] : memref<1x8x24xf32, #tpu.memory_space<vmem>>, vector<1x8x24xf32>
    %62 = vector.shape_cast %61 : vector<1x8x24xf32> to vector<8x24xf32>
    %63 = arith.addf %60, %62 : vector<8x24xf32>
    %c0_56 = arith.constant 0 : index
    %c0_57 = arith.constant 0 : index
    %c0_58 = arith.constant 0 : index
    %64 = vector.load %arg8[%c0_56, %c0_57, %c0_58] : memref<1x8x24xf32, #tpu.memory_space<vmem>>, vector<1x8x24xf32>
    %65 = vector.shape_cast %64 : vector<1x8x24xf32> to vector<8x24xf32>
    %66 = vector.shape_cast %63 : vector<8x24xf32> to vector<1x8x24xf32>
    tpu.vector_store %arg8[%c0_56, %c0_57, %c0_58], %66 {strides = array<i32>} : memref<1x8x24xf32, #tpu.memory_space<vmem>>, vector<1x8x24xf32>,
    return
  }
  func.func @transform_0(%arg0: i32) -> (i32, i32, i32) {
    %c0_i32 = arith.constant 0 : i32
    %c0_i32_0 = arith.constant 0 : i32
    %c0_i32_1 = arith.constant 0 : i32
    return %arg0, %c0_i32, %c0_i32_0 : i32, i32, i32
  }
  func.func @transform_1(%arg0: i32) -> (i32, i32) {
    %c0_i32 = arith.constant 0 : i32
    %c0_i32_0 = arith.constant 0 : i32
    %c0_i32_1 = arith.constant 0 : i32
    return %c0_i32, %c0_i32_0 : i32, i32
  }
  func.func @transform_2(%arg0: i32) -> (i32, i32) {
    %c0_i32 = arith.constant 0 : i32
    %c0_i32_0 = arith.constant 0 : i32
    %c0_i32_1 = arith.constant 0 : i32
    return %c0_i32, %c0_i32_0 : i32, i32
  }
  func.func @transform_3(%arg0: i32) -> (i32, i32, i32) {
    %c0_i32 = arith.constant 0 : i32
    %c0_i32_0 = arith.constant 0 : i32
    %c0_i32_1 = arith.constant 0 : i32
    return %arg0, %c0_i32, %c0_i32_0 : i32, i32, i32
  }
  func.func @transform_4(%arg0: i32) -> (i32, i32, i32) {
    %c0_i32 = arith.constant 0 : i32
    %c0_i32_0 = arith.constant 0 : i32
    %c0_i32_1 = arith.constant 0 : i32
    %c0_i32_2 = arith.constant 0 : i32
    return %c0_i32, %c0_i32_0, %c0_i32_1 : i32, i32, i32
  }
  func.func @transform_5(%arg0: i32) -> (i32, i32) {
    %c0_i32 = arith.constant 0 : i32
    %c0_i32_0 = arith.constant 0 : i32
    %c0_i32_1 = arith.constant 0 : i32
    return %c0_i32, %c0_i32_0 : i32, i32
  }
  func.func @transform_6(%arg0: i32) -> (i32, i32, i32) {
    %c0_i32 = arith.constant 0 : i32
    %c0_i32_0 = arith.constant 0 : i32
    %c0_i32_1 = arith.constant 0 : i32
    return %arg0, %c0_i32, %c0_i32_0 : i32, i32, i32
  }
  func.func @transform_7(%arg0: i32) -> (i32, i32, i32) {
    %c0_i32 = arith.constant 0 : i32
    %c0_i32_0 = arith.constant 0 : i32
    %c0_i32_1 = arith.constant 0 : i32
    return %arg0, %c0_i32, %c0_i32_0 : i32, i32, i32
  }
}

</mosaic_0001>

<llo_original>
// kernel: tile.66
$region0: #{tile.66}
  #allocation0 [shape = 's32[1]{0}', space=sflag, size = 0x4, scoped, tag = 'scoped memory for tile.66']
  %s0 = inlined_call_operand.vmem [shape: f32[16], index: 0, kind: input, shape index: {}]
  %s1 = inlined_call_operand.vmem [shape: f32[16,16], index: 1, kind: output, shape index: {}]
  // Predicated region
  $region2: #{tile.66} parent=0 // pred_check
    _
  $region3: #{tile.66} parent=0 // pred_check_branch
    %3 = sbr.rel (0) target = $region5
  $region4: #{tile.66} parent=0 // pred_region
    _
  $region5: #{tile.66} parent=0 // pred_fallthru
    _
  %v4 = vld [vmem:[%s0] ss:$0 sm:$0xff]
  %5 = vst [vmem:[%s1] sm:$0xff] %v4
  %s6 = scalar_lea.vmem %s1, 8
  %7 = vst [vmem:[%s6] sm:$0xff] %v4

// kernel: tile.67
$region0: #{tile.67}
  %s0 = inlined_call_operand.vmem [shape: f32[16,16], index: 0, kind: input, shape index: {}]
  %s1 = inlined_call_operand.vmem [shape: f32[1,256], index: 1, kind: output, shape index: {}]
  $region1: #{tile.67} parent=0
    #allocation0 [shape = 'u8[8192]{0}', space=vmem, size = 0x2000, scoped, tag = 'scoped mem for output reshape']
    %s2 = smov 3
    %v3 = vld [vmem:[%s0] ss:$8 sm:%s2]
    %vm4 = vcmask 130048
    %5 = vst.msk [vmem:[#allocation0] ss:$8 sm:$0x3] %vm4, %v3
    %s6 = scalar_lea.vmem %s0, 7
    %s7 = smov 3
    %v8 = vld [vmem:[%s6] ss:$8 sm:%s7]
    %9 = vrot.lane.b32.xlu0 %v8, 112
    %v10 = vpop.permute.xlu0 %9
    %vm11 = vcmask 1048448
    %12 = vst.msk [vmem:[#allocation0] ss:$8 sm:$0x3] %vm11, %v10
    %s13 = scalar_lea.vmem %s0, 6
    %s14 = smov 3
    %v15 = vld [vmem:[%s13] ss:$8 sm:%s14]
    %16 = vrot.lane.b32.xlu0 %v15, 96
    %v17 = vpop.permute.xlu0 %16
    %vm18 = vcmask 917248
    %19 = vst.msk [vmem:[#allocation0] ss:$8 sm:$0x3] %vm18, %v17
    %s20 = scalar_lea.vmem %s0, 5
    %s21 = smov 3
    %v22 = vld [vmem:[%s20] ss:$8 sm:%s21]
    %23 = vrot.lane.b32.xlu0 %v22, 80
    %v24 = vpop.permute.xlu0 %23
    %vm25 = vcmask 786048
    %26 = vst.msk [vmem:[#allocation0] ss:$8 sm:$0x3] %vm25, %v24
    %s27 = scalar_lea.vmem %s0, 4
    %s28 = smov 3
    %v29 = vld [vmem:[%s27] ss:$8 sm:%s28]
    %30 = vrot.lane.b32.xlu0 %v29, 64
    %v31 = vpop.permute.xlu0 %30
    %vm32 = vcmask 654848
    %33 = vst.msk [vmem:[#allocation0] ss:$8 sm:$0x3] %vm32, %v31
    %s34 = scalar_lea.vmem %s0, 3
    %s35 = smov 3
    %v36 = vld [vmem:[%s34] ss:$8 sm:%s35]
    %37 = vrot.lane.b32.xlu0 %v36, 48
    %v38 = vpop.permute.xlu0 %37
    %vm39 = vcmask 523648
    %40 = vst.msk [vmem:[#allocation0] ss:$8 sm:$0x3] %vm39, %v38
    %s41 = scalar_lea.vmem %s0, 2
    %s42 = smov 3
    %v43 = vld [vmem:[%s41] ss:$8 sm:%s42]
    %44 = vrot.lane.b32.xlu0 %v43, 32
    %v45 = vpop.permute.xlu0 %44
    %vm46 = vcmask 392448
    %47 = vst.msk [vmem:[#allocation0] ss:$8 sm:$0x3] %vm46, %v45
    %s48 = scalar_lea.vmem %s0, 1
    %s49 = smov 3
    %v50 = vld [vmem:[%s48] ss:$8 sm:%s49]
    %51 = vrot.lane.b32.xlu0 %v50, 16
    %v52 = vpop.permute.xlu0 %51
    %vm53 = vcmask 261248
    %54 = vst.msk [vmem:[#allocation0] ss:$8 sm:$0x3] %vm53, %v52
    %s56 = sshllo.u32 0, 1
    %v58 = vld [vmem:[#allocation0] sm:%s56]
    %s59 = sshllo.u32 0, 1
    %60 = vst [vmem:[%s1] sm:%s59] %v58
    %s61 = scalar_lea.vmem [#allocation0], 8
    %v62 = vld [vmem:[%s61] sm:%s56]
    %s63 = sshllo.u32 0, 1
    %s64 = scalar_lea.vmem %s1, 1
    %65 = vst [vmem:[%s64] sm:%s63] %v62

// kernel: tile.84
$region0: #{tile.84}
  #allocation0 [shape = 's32[1]{0}', space=sflag, size = 0x4, scoped, tag = 'scoped memory for tile.84']
  %s0 = inlined_call_operand.vmem [shape: f32[16], index: 0, kind: input, shape index: {}]
  %s1 = inlined_call_operand.vmem [shape: f32[8,16], index: 1, kind: output, shape index: {}]
  // Predicated region
  $region2: #{tile.84} parent=0 // pred_check
    _
  $region3: #{tile.84} parent=0 // pred_check_branch
    %3 = sbr.rel (0) target = $region5
  $region4: #{tile.84} parent=0 // pred_region
    _
  $region5: #{tile.84} parent=0 // pred_fallthru
    _
  %v4 = vld [vmem:[%s0] ss:$0 sm:$0xff]
  %5 = vst [vmem:[%s1] sm:$0xff] %v4

// kernel: tile.85
$region0: #{tile.85}
  %s0 = inlined_call_operand.vmem [shape: f32[8,16], index: 0, kind: input, shape index: {}]
  %s1 = inlined_call_operand.vmem [shape: f32[1,128], index: 1, kind: output, shape index: {}]
  $region1: #{tile.85} parent=0
    #allocation0 [shape = 'u8[4096]{0}', space=vmem, size = 0x1000, scoped, tag = 'scoped mem for output reshape']
    %v2 = vld [vmem:[%s0] sm:$0x1]
    %vm3 = vcmask 130048
    %4 = vst.msk [vmem:[#allocation0] sm:$0x1] %vm3, %v2
    %s5 = scalar_lea.vmem %s0, 7
    %v6 = vld [vmem:[%s5] sm:$0x1]
    %7 = vrot.lane.b32.xlu0 %v6, 112
    %v8 = vpop.permute.xlu0 %7
    %vm9 = vcmask 1048448
    %10 = vst.msk [vmem:[#allocation0] sm:$0x1] %vm9, %v8
    %s11 = scalar_lea.vmem %s0, 6
    %v12 = vld [vmem:[%s11] sm:$0x1]
    %13 = vrot.lane.b32.xlu0 %v12, 96
    %v14 = vpop.permute.xlu0 %13
    %vm15 = vcmask 917248
    %16 = vst.msk [vmem:[#allocation0] sm:$0x1] %vm15, %v14
    %s17 = scalar_lea.vmem %s0, 5
    %v18 = vld [vmem:[%s17] sm:$0x1]
    %19 = vrot.lane.b32.xlu0 %v18, 80
    %v20 = vpop.permute.xlu0 %19
    %vm21 = vcmask 786048
    %22 = vst.msk [vmem:[#allocation0] sm:$0x1] %vm21, %v20
    %s23 = scalar_lea.vmem %s0, 4
    %v24 = vld [vmem:[%s23] sm:$0x1]
    %25 = vrot.lane.b32.xlu0 %v24, 64
    %v26 = vpop.permute.xlu0 %25
    %vm27 = vcmask 654848
    %28 = vst.msk [vmem:[#allocation0] sm:$0x1] %vm27, %v26
    %s29 = scalar_lea.vmem %s0, 3
    %v30 = vld [vmem:[%s29] sm:$0x1]
    %31 = vrot.lane.b32.xlu0 %v30, 48
    %v32 = vpop.permute.xlu0 %31
    %vm33 = vcmask 523648
    %34 = vst.msk [vmem:[#allocation0] sm:$0x1] %vm33, %v32
    %s35 = scalar_lea.vmem %s0, 2
    %v36 = vld [vmem:[%s35] sm:$0x1]
    %37 = vrot.lane.b32.xlu0 %v36, 32
    %v38 = vpop.permute.xlu0 %37
    %vm39 = vcmask 392448
    %40 = vst.msk [vmem:[#allocation0] sm:$0x1] %vm39, %v38
    %s41 = scalar_lea.vmem %s0, 1
    %v42 = vld [vmem:[%s41] sm:$0x1]
    %43 = vrot.lane.b32.xlu0 %v42, 16
    %v44 = vpop.permute.xlu0 %43
    %vm45 = vcmask 261248
    %46 = vst.msk [vmem:[#allocation0] sm:$0x1] %vm45, %v44
    %s48 = sshllo.u32 0, 1
    %v50 = vld [vmem:[#allocation0] sm:%s48]
    %s51 = sshllo.u32 0, 1
    %52 = vst [vmem:[%s1] sm:%s51] %v50

// kernel: _lambda_.6
$region0: #{_lambda_.6}
  #allocation0 [shape = 'u32[]', space=smem, size = 0x4, offset = 0x4, fixed_abs, tag = 'smem constant byte address 0x4 - core index']
  #allocation1 [shape = 'u32[144,128]{1,0:T(1,128)}', space=vmem, size = 0x12000, scoped, tag = 'internal scratch']
  #allocation2 [shape = 'f32[10,128]{1,0:T(8,128)}', space=vmem, size = 0x2000, scoped, tag = 'scratch operand']
  %s0 = inlined_call_operand.vmem [shape: f32[2,16,256], index: 0, kind: input, shape index: {}]
  %s1 = inlined_call_operand.vmem [shape: f32[1,256], index: 1, kind: input, shape index: {}]
  %s2 = inlined_call_operand.vmem [shape: f32[1,256], index: 2, kind: input, shape index: {}]
  %s3 = inlined_call_operand.vmem [shape: bf16[8,16], index: 3, kind: input, shape index: {}]
  %s4 = inlined_call_operand.vmem [shape: bf16[256,128], index: 4, kind: input, shape index: {}]
  %s5 = inlined_call_operand.vmem [shape: bf16[3,128,128], index: 5, kind: input, shape index: {}]
  %s6 = inlined_call_operand.vmem [shape: f32[1,128], index: 6, kind: input, shape index: {}]
  %s7 = inlined_call_operand.vmem [shape: f32[2,8,128], index: 7, kind: output, shape index: {0}]
  %s8 = inlined_call_operand.vmem [shape: f32[2,2,128], index: 8, kind: output, shape index: {1}]
  %s9 = inlined_call_operand.vmem [shape: f32[2,8,128], index: 9, kind: output, shape index: {2}]
  %10 = xla_tuple %s7, %s8, %s9
  %s11 = sld [smem:[#allocation0]]
  $region77: #{_lambda_.6} parent=0
    _
  %s13 = ssub.s32 1, %s11
  %s14 = scalar_select 0, %s13, %s11
  loop: start=0, step=1, limit=4
  $region2: #{_lambda_.6} parent=0 // loop_pre_header
    _
  $region3: #{_lambda_.6} parent=0 // loop_header
    %s16 = sphi 0, %s20
    %p17 = scmp.ge.s32.totalorder %s16, 4
    %s26 = sphi 0, %s28
    %s29 = sphi 0, %s26
    %s30 = sphi 0, %s29
    %s46 = sphi 0, %s30
    %s50 = sphi 0, %s50
    %s52 = sphi 0, %s50
    %s53 = sphi 0, %s52
    %s67 = sphi 0, %s53
    %s71 = sphi 0, %s71
    %s73 = sphi 0, %s71
    %s74 = sphi 0, %s73
    %s88 = sphi 0, %s74
    %s92 = sphi 0, %s92
    %s94 = sphi 0, %s92
    %s95 = sphi 0, %s94
    %s109 = sphi 0, %s95
    %s113 = sphi 0, %s113
    %s115 = sphi 0, %s113
    %s116 = sphi 0, %s115
    %s130 = sphi 0, %s116
    %s134 = sphi 0, %s134
    %s136 = sphi 0, %s134
    %s137 = sphi 0, %s136
    %s151 = sphi 0, %s137
    %s155 = sphi 0, %s155
    %s157 = sphi 0, %s155
    %s158 = sphi 0, %s157
    %s172 = sphi 0, %s158
    %s178 = sphi 0, %s180
    %s181 = sphi 0, %s178
    %s182 = sphi 0, %s181
    %s198 = sphi 0, %s182
    %s204 = sphi 0, %s206
    %s207 = sphi 0, %s204
    %s208 = sphi 0, %s207
    %s224 = sphi 0, %s208
    %s230 = sphi 0, %s232
    %s233 = sphi 0, %s230
    %s234 = sphi 0, %s233
    %s250 = sphi 0, %s234
  $region4: #{_lambda_.6} parent=0 // loop_header_branch
    %19 = sbr.rel (%p17) target = $region8
  $region5: #{_lambda_.6} parent=0 // loop_body
    %s21 = ssub.s32 %s16, 1
    %s22 = ssub.s32 %s16, 2
    %s23 = sadd.s32 %s16, 1
    %s24 = ssub.s32 %s16, %s23
    %p25 = scmp.eq.s32.totalorder %s24, 0
    %s27 = sadd.s32 %s26, 1
    %s28 = scalar_select %p25, %s26, %s27
    %p31 = pneg %p25
    %p32 = scmp.eq.s32.totalorder %s16, 1
    %p33 = por %p31, %p32
    %p34 = scmp.ne.s32.totalorder %s26, %s29
    %p35 = scmp.eq.s32.totalorder %s16, 0
    %p36 = por %p34, %p35
    %p37 = scmp.ne.s32.totalorder %s26, %s29
    %p38 = scmp.eq.s32.totalorder %s21, 1
    %p39 = por %p37, %p38
    %p40 = scmp.ne.s32.totalorder %s29, %s30
    %p41 = scmp.eq.s32.totalorder %s21, 0
    %p42 = por %p40, %p41
    %p43 = scmp.ne.s32.totalorder %s29, %s30
    %p44 = scmp.eq.s32.totalorder %s22, 1
    %p45 = por %p43, %p44
    %p47 = scmp.ne.s32.totalorder %s30, %s46
    %p48 = scmp.eq.s32.totalorder %s22, 0
    %p49 = por %p47, %p48
    %s51 = sadd.s32 %s50, 1
    %p54 = scmp.eq.s32.totalorder %s16, 1
    %p55 = scmp.ne.s32.totalorder %s50, %s52
    %p56 = scmp.eq.s32.totalorder %s16, 0
    %p57 = por %p55, %p56
    %p58 = scmp.ne.s32.totalorder %s50, %s52
    %p59 = scmp.eq.s32.totalorder %s21, 1
    %p60 = por %p58, %p59
    %p61 = scmp.ne.s32.totalorder %s52, %s53
    %p62 = scmp.eq.s32.totalorder %s21, 0
    %p63 = por %p61, %p62
    %p64 = scmp.ne.s32.totalorder %s52, %s53
    %p65 = scmp.eq.s32.totalorder %s22, 1
    %p66 = por %p64, %p65
    %p68 = scmp.ne.s32.totalorder %s53, %s67
    %p69 = scmp.eq.s32.totalorder %s22, 0
    %p70 = por %p68, %p69
    %s72 = sadd.s32 %s71, 1
    %p75 = scmp.eq.s32.totalorder %s16, 1
    %p76 = scmp.ne.s32.totalorder %s71, %s73
    %p77 = scmp.eq.s32.totalorder %s16, 0
    %p78 = por %p76, %p77
    %p79 = scmp.ne.s32.totalorder %s71, %s73
    %p80 = scmp.eq.s32.totalorder %s21, 1
    %p81 = por %p79, %p80
    %p82 = scmp.ne.s32.totalorder %s73, %s74
    %p83 = scmp.eq.s32.totalorder %s21, 0
    %p84 = por %p82, %p83
    %p85 = scmp.ne.s32.totalorder %s73, %s74
    %p86 = scmp.eq.s32.totalorder %s22, 1
    %p87 = por %p85, %p86
    %p89 = scmp.ne.s32.totalorder %s74, %s88
    %p90 = scmp.eq.s32.totalorder %s22, 0
    %p91 = por %p89, %p90
    %s93 = sadd.s32 %s92, 1
    %p96 = scmp.eq.s32.totalorder %s16, 1
    %p97 = scmp.ne.s32.totalorder %s92, %s94
    %p98 = scmp.eq.s32.totalorder %s16, 0
    %p99 = por %p97, %p98
    %p100 = scmp.ne.s32.totalorder %s92, %s94
    %p101 = scmp.eq.s32.totalorder %s21, 1
    %p102 = por %p100, %p101
    %p103 = scmp.ne.s32.totalorder %s94, %s95
    %p104 = scmp.eq.s32.totalorder %s21, 0
    %p105 = por %p103, %p104
    %p106 = scmp.ne.s32.totalorder %s94, %s95
    %p107 = scmp.eq.s32.totalorder %s22, 1
    %p108 = por %p106, %p107
    %p110 = scmp.ne.s32.totalorder %s95, %s109
    %p111 = scmp.eq.s32.totalorder %s22, 0
    %p112 = por %p110, %p111
    %s114 = sadd.s32 %s113, 1
    %p117 = scmp.eq.s32.totalorder %s16, 1
    %p118 = scmp.ne.s32.totalorder %s113, %s115
    %p119 = scmp.eq.s32.totalorder %s16, 0
    %p120 = por %p118, %p119
    %p121 = scmp.ne.s32.totalorder %s113, %s115
    %p122 = scmp.eq.s32.totalorder %s21, 1
    %p123 = por %p121, %p122
    %p124 = scmp.ne.s32.totalorder %s115, %s116
    %p125 = scmp.eq.s32.totalorder %s21, 0
    %p126 = por %p124, %p125
    %p127 = scmp.ne.s32.totalorder %s115, %s116
    %p128 = scmp.eq.s32.totalorder %s22, 1
    %p129 = por %p127, %p128
    %p131 = scmp.ne.s32.totalorder %s116, %s130
    %p132 = scmp.eq.s32.totalorder %s22, 0
    %p133 = por %p131, %p132
    %s135 = sadd.s32 %s134, 1
    %p138 = scmp.eq.s32.totalorder %s16, 1
    %p139 = scmp.ne.s32.totalorder %s134, %s136
    %p140 = scmp.eq.s32.totalorder %s16, 0
    %p141 = por %p139, %p140
    %p142 = scmp.ne.s32.totalorder %s134, %s136
    %p143 = scmp.eq.s32.totalorder %s21, 1
    %p144 = por %p142, %p143
    %p145 = scmp.ne.s32.totalorder %s136, %s137
    %p146 = scmp.eq.s32.totalorder %s21, 0
    %p147 = por %p145, %p146
    %p148 = scmp.ne.s32.totalorder %s136, %s137
    %p149 = scmp.eq.s32.totalorder %s22, 1
    %p150 = por %p148, %p149
    %p152 = scmp.ne.s32.totalorder %s137, %s151
    %p153 = scmp.eq.s32.totalorder %s22, 0
    %p154 = por %p152, %p153
    %s156 = sadd.s32 %s155, 1
    %p159 = scmp.eq.s32.totalorder %s16, 1
    %p160 = scmp.ne.s32.totalorder %s155, %s157
    %p161 = scmp.eq.s32.totalorder %s16, 0
    %p162 = por %p160, %p161
    %p163 = scmp.ne.s32.totalorder %s155, %s157
    %p164 = scmp.eq.s32.totalorder %s21, 1
    %p165 = por %p163, %p164
    %p166 = scmp.ne.s32.totalorder %s157, %s158
    %p167 = scmp.eq.s32.totalorder %s21, 0
    %p168 = por %p166, %p167
    %p169 = scmp.ne.s32.totalorder %s157, %s158
    %p170 = scmp.eq.s32.totalorder %s22, 1
    %p171 = por %p169, %p170
    %p173 = scmp.ne.s32.totalorder %s158, %s172
    %p174 = scmp.eq.s32.totalorder %s22, 0
    %p175 = por %p173, %p174
    %s176 = ssub.s32 %s16, %s23
    %p177 = scmp.eq.s32.totalorder %s176, 0
    %s179 = sadd.s32 %s178, 1
    %s180 = scalar_select %p177, %s178, %s179
    %p183 = pneg %p177
    %p184 = scmp.eq.s32.totalorder %s16, 1
    %p185 = por %p183, %p184
    %p186 = scmp.ne.s32.totalorder %s178, %s181
    %p187 = scmp.eq.s32.totalorder %s16, 0
    %p188 = por %p186, %p187
    %p189 = scmp.ne.s32.totalorder %s178, %s181
    %p190 = scmp.eq.s32.totalorder %s21, 1
    %p191 = por %p189, %p190
    %p192 = scmp.ne.s32.totalorder %s181, %s182
    %p193 = scmp.eq.s32.totalorder %s21, 0
    %p194 = por %p192, %p193
    %p195 = scmp.ne.s32.totalorder %s181, %s182
    %p196 = scmp.eq.s32.totalorder %s22, 1
    %p197 = por %p195, %p196
    %p199 = scmp.ne.s32.totalorder %s182, %s198
    %p200 = scmp.eq.s32.totalorder %s22, 0
    %p201 = por %p199, %p200
    %s202 = ssub.s32 %s16, %s23
    %p203 = scmp.eq.s32.totalorder %s202, 0
    %s205 = sadd.s32 %s204, 1
    %s206 = scalar_select %p203, %s204, %s205
    %p209 = pneg %p203
    %p210 = scmp.eq.s32.totalorder %s16, 1
    %p211 = por %p209, %p210
    %p212 = scmp.ne.s32.totalorder %s204, %s207
    %p213 = scmp.eq.s32.totalorder %s16, 0
    %p214 = por %p212, %p213
    %p215 = scmp.ne.s32.totalorder %s204, %s207
    %p216 = scmp.eq.s32.totalorder %s21, 1
    %p217 = por %p215, %p216
    %p218 = scmp.ne.s32.totalorder %s207, %s208
    %p219 = scmp.eq.s32.totalorder %s21, 0
    %p220 = por %p218, %p219
    %p221 = scmp.ne.s32.totalorder %s207, %s208
    %p222 = scmp.eq.s32.totalorder %s22, 1
    %p223 = por %p221, %p222
    %p225 = scmp.ne.s32.totalorder %s208, %s224
    %p226 = scmp.eq.s32.totalorder %s22, 0
    %p227 = por %p225, %p226
    %s228 = ssub.s32 %s16, %s23
    %p229 = scmp.eq.s32.totalorder %s228, 0
    %s231 = sadd.s32 %s230, 1
    %s232 = scalar_select %p229, %s230, %s231
    %p235 = pneg %p229
    %p236 = scmp.eq.s32.totalorder %s16, 1
    %p237 = por %p235, %p236
    %p238 = scmp.ne.s32.totalorder %s230, %s233
    %p239 = scmp.eq.s32.totalorder %s16, 0
    %p240 = por %p238, %p239
    %p241 = scmp.ne.s32.totalorder %s230, %s233
    %p242 = scmp.eq.s32.totalorder %s21, 1
    %p243 = por %p241, %p242
    %p244 = scmp.ne.s32.totalorder %s233, %s234
    %p245 = scmp.eq.s32.totalorder %s21, 0
    %p246 = por %p244, %p245
    %p247 = scmp.ne.s32.totalorder %s233, %s234
    %p248 = scmp.eq.s32.totalorder %s22, 1
    %p249 = por %p247, %p248
    %p251 = scmp.ne.s32.totalorder %s234, %s250
    %p252 = scmp.eq.s32.totalorder %s22, 0
    %p253 = por %p251, %p252
    %p254 = scmp.le.s32.totalorder 1, %s16
    %p255 = scmp.lt.s32.totalorder %s16, 3
    %p256 = pnand %p254, %p255
    %p257 = pneg %p256
    // Predicated region
    $region9: #{_lambda_.6} parent=5 // pred_check
      _
    $region10: #{_lambda_.6} parent=5 // pred_check_branch
      %259 = sbr.rel (%p256) target = $region12
    $region11: #{_lambda_.6} parent=5 // pred_region
      %s260 = ssub.s32 %s16, 1
      // Predicated region
      $region13: #{_lambda_.6} parent=11 // pred_check
        %p261 = pneg %p63
      $region14: #{_lambda_.6} parent=11 // pred_check_branch
        %263 = sbr.rel (%p261) target = $region16
      $region15: #{_lambda_.6} parent=11 // pred_region
        _
      $region16: #{_lambda_.6} parent=11 // pred_fallthru
        _
      // Predicated region
      $region17: #{_lambda_.6} parent=11 // pred_check
        %p264 = pneg %p84
      $region18: #{_lambda_.6} parent=11 // pred_check_branch
        %266 = sbr.rel (%p264) target = $region20
      $region19: #{_lambda_.6} parent=11 // pred_region
        _
      $region20: #{_lambda_.6} parent=11 // pred_fallthru
        _
      // Predicated region
      $region21: #{_lambda_.6} parent=11 // pred_check
        %p267 = pneg %p105
      $region22: #{_lambda_.6} parent=11 // pred_check_branch
        %269 = sbr.rel (%p267) target = $region24
      $region23: #{_lambda_.6} parent=11 // pred_region
        _
      $region24: #{_lambda_.6} parent=11 // pred_fallthru
        _
      // Predicated region
      $region25: #{_lambda_.6} parent=11 // pred_check
        %p270 = pneg %p126
      $region26: #{_lambda_.6} parent=11 // pred_check_branch
        %272 = sbr.rel (%p270) target = $region28
      $region27: #{_lambda_.6} parent=11 // pred_region
        _
      $region28: #{_lambda_.6} parent=11 // pred_fallthru
        _
      // Predicated region
      $region29: #{_lambda_.6} parent=11 // pred_check
        %p273 = pneg %p147
      $region30: #{_lambda_.6} parent=11 // pred_check_branch
        %275 = sbr.rel (%p273) target = $region32
      $region31: #{_lambda_.6} parent=11 // pred_region
        _
      $region32: #{_lambda_.6} parent=11 // pred_fallthru
        _
      // Predicated region
      $region33: #{_lambda_.6} parent=11 // pred_check
        %p276 = pneg %p168
      $region34: #{_lambda_.6} parent=11 // pred_check_branch
        %278 = sbr.rel (%p276) target = $region36
      $region35: #{_lambda_.6} parent=11 // pred_region
        _
      $region36: #{_lambda_.6} parent=11 // pred_fallthru
        _
    $region12: #{_lambda_.6} parent=5 // pred_fallthru
      _
    %p279 = scmp.lt.s32.totalorder %s16, 2
    // Predicated region
    $region37: #{_lambda_.6} parent=5 // pred_check
      %p280 = pneg %p279
    $region38: #{_lambda_.6} parent=5 // pred_check_branch
      %282 = sbr.rel (%p280) target = $region40
    $region39: #{_lambda_.6} parent=5 // pred_region
      // Predicated region
      $region41: #{_lambda_.6} parent=39 // pred_check
        %p283 = pneg %p36
      $region42: #{_lambda_.6} parent=39 // pred_check_branch
        %285 = sbr.rel (%p283) target = $region44
      $region43: #{_lambda_.6} parent=39 // pred_region
        %p286 = scmp.lt.s32.totalorder %s16, 1
        %s287 = scalar_select %p286, %s16, 1
        %s288 = smul.addr %s287, 4
        %s289 = smul.addr %s288, 8
        %s290 = scalar_lea.vmem %s0, %s289
      $region44: #{_lambda_.6} parent=39 // pred_fallthru
        _
    $region40: #{_lambda_.6} parent=5 // pred_fallthru
      _
    %p291 = scmp.le.s32.totalorder 1, %s16
    %p292 = scmp.lt.s32.totalorder %s16, 3
    %p293 = pnand %p291, %p292
    %p294 = pneg %p293
    // Predicated region
    $region45: #{_lambda_.6} parent=5 // pred_check
      _
    $region46: #{_lambda_.6} parent=5 // pred_check_branch
      %296 = sbr.rel (%p293) target = $region48
    $region47: #{_lambda_.6} parent=5 // pred_region
      %s297 = ssub.s32 %s16, 1
      %p298 = scmp.lt.s32.totalorder %s21, 1
      %s299 = scalar_select %p298, %s21, 1
      %s300 = smul.addr %s299, 4
      %s301 = smul.addr %s300, 8
      %s302 = scalar_lea.vmem %s0, %s301
      %p303 = pneg %p42
      %p304 = pneg %p39
      %p305 = pneg %p63
      %p306 = pneg %p60
      %p307 = pneg %p84
      %p308 = pneg %p81
      %p309 = pneg %p105
      %p310 = pneg %p102
      %p311 = pneg %p126
      %p312 = pneg %p123
      %p313 = pneg %p147
      %p314 = pneg %p144
      %p315 = pneg %p168
      %p316 = pneg %p165
      %p317 = pneg %p194
      %p318 = pneg %p191
      %p319 = scmp.lt.s32.totalorder %s21, 1
      %s320 = scalar_select %p319, %s21, 1
      %s321 = smul.addr %s320, 8
      %s322 = scalar_lea.vmem %s7, %s321
      %p323 = pneg %p220
      %p324 = pneg %p217
      %p325 = scmp.lt.s32.totalorder %s21, 1
      %s326 = scalar_select %p325, %s21, 1
      %s327 = smul.addr %s326, 2
      %s328 = scalar_lea.vmem %s8, %s327
      %p329 = pneg %p246
      %p330 = pneg %p243
      %p331 = scmp.lt.s32.totalorder %s21, 1
      %s332 = scalar_select %p331, %s21, 1
      %s333 = smul.addr %s332, 8
      %s334 = scalar_lea.vmem %s9, %s333
      %p335 = scmp.lt.s32.totalorder %s21, 1
      %s336 = scalar_select %p335, %s21, 1
      %s337 = smul.addr %s336, 4
      %s338 = smul.addr %s337, 8
      %s339 = scalar_lea.vmem %s0, %s338
      %p340 = scmp.lt.s32.totalorder %s21, 1
      %s341 = scalar_select %p340, %s21, 1
      %s342 = smul.addr %s341, 8
      %s343 = scalar_lea.vmem %s7, %s342
      %p344 = scmp.lt.s32.totalorder %s21, 1
      %s345 = scalar_select %p344, %s21, 1
      %s346 = smul.addr %s345, 2
      %s347 = scalar_lea.vmem %s8, %s346
      %p348 = scmp.lt.s32.totalorder %s21, 1
      %s349 = scalar_select %p348, %s21, 1
      %s350 = smul.addr %s349, 8
      %s351 = scalar_lea.vmem %s9, %s350
      %v353 = vld [vmem:[%s339] sm:$0xff]
      %v354 = vld [vmem:[%s339 + $0x8] sm:$0xff]
      %v355 = vld [vmem:[%s339 + $0x10] sm:$0xff]
      %v356 = vld [vmem:[%s339 + $0x18] sm:$0xff]
      %v357 = vld [vmem:[%s1] sm:$0x3]
      %v359 = vlaneseq
      %v360 = vshrl.u32 %v359, 7
      %v361 = vsub.s32 0, %v360
      %v362 = vrot.slane %v357, %v361
      %v363 = vlaneseq
      %v364 = vshrl.u32 %v363, 7
      %v365 = vsub.s32 1, %v364
      %v366 = vrot.slane %v357, %v365
      %v369 = vmul.f32 %v353, %v362
      %v370 = vmul.f32 %v354, %v366
      %v371 = vmul.f32 %v355, %v362
      %v372 = vmul.f32 %v356, %v366
      %v373 = vld [vmem:[%s2] sm:$0x3]
      %v375 = vlaneseq
      %v376 = vshrl.u32 %v375, 7
      %v377 = vsub.s32 0, %v376
      %v378 = vrot.slane %v373, %v377
      %v379 = vlaneseq
      %v380 = vshrl.u32 %v379, 7
      %v381 = vsub.s32 1, %v380
      %v382 = vrot.slane %v373, %v381
      %v385 = vadd.f32 %v369, %v378
      %v386 = vadd.f32 %v370, %v382
      %v387 = vadd.f32 %v371, %v378
      %v388 = vadd.f32 %v372, %v382
      %v389 = vld [vmem:[%s3] sm:$0xf]
      %v390 = vpack.c.bf16 %v387, %v385
      %v391 = vpack.c.bf16 %v388, %v386
      %vm392 = vcmask 130048
      %v394 = vsel %vm392, %v389, 0
      %396 = vmatprep.subr.bf16.mxu0 %v391
      %397 = vmatpush1.bf16.msra.mxu0 %v390
      %398 = vmatprep.subr.bf16.mxu0 0
      %399 = vmatpush1.bf16.msra.mxu0 0
      %400 = vmatprep.subr.bf16.mxu0 0
      %401 = vmatpush1.bf16.msra.mxu0 0
      %402 = vmatprep.subr.bf16.mxu0 0
      %403 = vmatpush1.bf16.msra.mxu0 0
      %404 = vmatprep.subr.bf16.mxu0 0
      %405 = vmatpush1.bf16.msra.mxu0 0
      %406 = vmatprep.subr.bf16.mxu0 0
      %407 = vmatpush1.bf16.msra.mxu0 0
      %408 = vmatprep.subr.bf16.mxu0 0
      %409 = vmatpush1.bf16.msra.mxu0 0
      %410 = vmatprep.subr.bf16.mxu0 0
      %411 = vmatpush1.bf16.msra.mxu0 0
      %412 = vmatprep.subr.bf16.mxu0 0
      %413 = vmatpush1.bf16.msra.mxu0 0
      %414 = vmatprep.subr.bf16.mxu0 0
      %415 = vmatpush1.bf16.msra.mxu0 0
      %416 = vmatprep.subr.bf16.mxu0 0
      %417 = vmatpush1.bf16.msra.mxu0 0
      %418 = vmatprep.subr.bf16.mxu0 0
      %419 = vmatpush1.bf16.msra.mxu0 0
      %420 = vmatprep.subr.bf16.mxu0 0
      %421 = vmatpush1.bf16.msra.mxu0 0
      %422 = vmatprep.subr.bf16.mxu0 0
      %423 = vmatpush1.bf16.msra.mxu0 0
      %424 = vmatprep.subr.bf16.mxu0 0
      %425 = vmatpush1.bf16.msra.mxu0 0
      %426 = vmatprep.subr.bf16.mxu0 0
      %427 = vmatpush1.bf16.msra.mxu0 0
      %428 = vmatprep.mubr.bf16.mxu0 0
      %429 = vmatmul.mubr.bf16.gmra.mrb[0].mxu0 %v394
      %v430 = vpop.f32.mrb[0].mxu0
      %v431 = vadd.f32 0.0, %v430
      %v432 = vpop.f32.mrb[0].mxu0
      %v433 = vadd.f32 0.0, %v432
      %v434 = vpop.f32.mrb[0].mxu0
      %v435 = vpop.f32.mrb[0].mxu0
      %436 = vdwg.mxu0
      %v437 = vpack.c.bf16 %v431, %v431
      %v438 = vpack.c.bf16 %v433, %v433
      %v439 = vld [vmem:[%s4] sm:$0xf]
      %v440 = vld [vmem:[%s4 + $0x4] sm:$0xf]
      %v441 = vld [vmem:[%s4 + $0x8] sm:$0xf]
      %v442 = vld [vmem:[%s4 + $0xc] sm:$0xf]
      %v443 = vld [vmem:[%s4 + $0x10] sm:$0xf]
      %v444 = vld [vmem:[%s4 + $0x14] sm:$0xf]
      %v445 = vld [vmem:[%s4 + $0x18] sm:$0xf]
      %v446 = vld [vmem:[%s4 + $0x1c] sm:$0xf]
      %v447 = vld [vmem:[%s4 + $0x20] sm:$0xf]
      %v448 = vld [vmem:[%s4 + $0x24] sm:$0xf]
      %v449 = vld [vmem:[%s4 + $0x28] sm:$0xf]
      %v450 = vld [vmem:[%s4 + $0x2c] sm:$0xf]
      %v451 = vld [vmem:[%s4 + $0x30] sm:$0xf]
      %v452 = vld [vmem:[%s4 + $0x34] sm:$0xf]
      %v453 = vld [vmem:[%s4 + $0x38] sm:$0xf]
      %v454 = vld [vmem:[%s4 + $0x3c] sm:$0xf]
      %v455 = vld [vmem:[%s4 + $0x40] sm:$0xf]
      %v456 = vld [vmem:[%s4 + $0x44] sm:$0xf]
      %v457 = vld [vmem:[%s4 + $0x48] sm:$0xf]
      %v458 = vld [vmem:[%s4 + $0x4c] sm:$0xf]
      %v459 = vld [vmem:[%s4 + $0x50] sm:$0xf]
      %v460 = vld [vmem:[%s4 + $0x54] sm:$0xf]
      %v461 = vld [vmem:[%s4 + $0x58] sm:$0xf]
      %v462 = vld [vmem:[%s4 + $0x5c] sm:$0xf]
      %v463 = vld [vmem:[%s4 + $0x60] sm:$0xf]
      %v464 = vld [vmem:[%s4 + $0x64] sm:$0xf]
      %v465 = vld [vmem:[%s4 + $0x68] sm:$0xf]
      %v466 = vld [vmem:[%s4 + $0x6c] sm:$0xf]
      %v467 = vld [vmem:[%s4 + $0x70] sm:$0xf]
      %v468 = vld [vmem:[%s4 + $0x74] sm:$0xf]
      %v469 = vld [vmem:[%s4 + $0x78] sm:$0xf]
      %v470 = vld [vmem:[%s4 + $0x7c] sm:$0xf]
      %v503 = vunpack.c.l.b16 %v439
      %v504 = vunpack.c.l.b16 %v440
      %v505 = vunpack.c.l.b16 %v441
      %v506 = vunpack.c.l.b16 %v442
      %v507 = vunpack.c.l.b16 %v443
      %v508 = vunpack.c.l.b16 %v444
      %v509 = vunpack.c.l.b16 %v445
      %v510 = vunpack.c.l.b16 %v446
      %v511 = vunpack.c.l.b16 %v447
      %v512 = vunpack.c.l.b16 %v448
      %v513 = vunpack.c.l.b16 %v449
      %v514 = vunpack.c.l.b16 %v450
      %v515 = vunpack.c.l.b16 %v451
      %v516 = vunpack.c.l.b16 %v452
      %v517 = vunpack.c.l.b16 %v453
      %v518 = vunpack.c.l.b16 %v454
      %v519 = vunpack.c.l.b16 %v455
      %v520 = vunpack.c.l.b16 %v456
      %v521 = vunpack.c.l.b16 %v457
      %v522 = vunpack.c.l.b16 %v458
      %v523 = vunpack.c.l.b16 %v459
      %v524 = vunpack.c.l.b16 %v460
      %v525 = vunpack.c.l.b16 %v461
      %v526 = vunpack.c.l.b16 %v462
      %v527 = vunpack.c.l.b16 %v463
      %v528 = vunpack.c.l.b16 %v464
      %v529 = vunpack.c.l.b16 %v465
      %v530 = vunpack.c.l.b16 %v466
      %v531 = vunpack.c.l.b16 %v467
      %v532 = vunpack.c.l.b16 %v468
      %v533 = vunpack.c.l.b16 %v469
      %v534 = vunpack.c.l.b16 %v470
      %v535 = vpack.c.b16 %v504, %v503
      %v536 = vpack.c.b16 %v506, %v505
      %v537 = vpack.c.b16 %v508, %v507
      %v538 = vpack.c.b16 %v510, %v509
      %v539 = vpack.c.b16 %v512, %v511
      %v540 = vpack.c.b16 %v514, %v513
      %v541 = vpack.c.b16 %v516, %v515
      %v542 = vpack.c.b16 %v518, %v517
      %v543 = vpack.c.b16 %v520, %v519
      %v544 = vpack.c.b16 %v522, %v521
      %v545 = vpack.c.b16 %v524, %v523
      %v546 = vpack.c.b16 %v526, %v525
      %v547 = vpack.c.b16 %v528, %v527
      %v548 = vpack.c.b16 %v530, %v529
      %v549 = vpack.c.b16 %v532, %v531
      %v550 = vpack.c.b16 %v534, %v533
      %567 = vmatprep.subr.bf16.mxu0 0
      %568 = vmatpush1.bf16.msra.mxu0 %v535
      %569 = vmatprep.subr.bf16.mxu0 0
      %570 = vmatpush1.bf16.msra.mxu0 %v536
      %571 = vmatprep.subr.bf16.mxu0 0
      %572 = vmatpush1.bf16.msra.mxu0 %v537
      %573 = vmatprep.subr.bf16.mxu0 0
      %574 = vmatpush1.bf16.msra.mxu0 %v538
      %575 = vmatprep.subr.bf16.mxu0 0
      %576 = vmatpush1.bf16.msra.mxu0 %v539
      %577 = vmatprep.subr.bf16.mxu0 0
      %578 = vmatpush1.bf16.msra.mxu0 %v540
      %579 = vmatprep.subr.bf16.mxu0 0
      %580 = vmatpush1.bf16.msra.mxu0 %v541
      %581 = vmatprep.subr.bf16.mxu0 0
      %582 = vmatpush1.bf16.msra.mxu0 %v542
      %583 = vmatprep.subr.bf16.mxu0 0
      %584 = vmatpush1.bf16.msra.mxu0 %v543
      %585 = vmatprep.subr.bf16.mxu0 0
      %586 = vmatpush1.bf16.msra.mxu0 %v544
      %587 = vmatprep.subr.bf16.mxu0 0
      %588 = vmatpush1.bf16.msra.mxu0 %v545
      %589 = vmatprep.subr.bf16.mxu0 0
      %590 = vmatpush1.bf16.msra.mxu0 %v546
      %591 = vmatprep.subr.bf16.mxu0 0
      %592 = vmatpush1.bf16.msra.mxu0 %v547
      %593 = vmatprep.subr.bf16.mxu0 0
      %594 = vmatpush1.bf16.msra.mxu0 %v548
      %595 = vmatprep.subr.bf16.mxu0 0
      %596 = vmatpush1.bf16.msra.mxu0 %v549
      %597 = vmatprep.subr.bf16.mxu0 0
      %598 = vmatpush1.bf16.msra.mxu0 %v550
      %599 = vmatprep.mubr.bf16.mxu0 %v438
      %600 = vmatmul.mubr.bf16.gmra.mrb[0].mxu0 %v437
      %v601 = vpop.f32.mrb[0].mxu0
      %v602 = vadd.f32 0.0, %v601
      %v603 = vpop.f32.mrb[0].mxu0
      %v604 = vpop.f32.mrb[0].mxu0
      %v605 = vpop.f32.mrb[0].mxu0
      %606 = vdwg.mxu0
      %607 = vst [vmem:[%s351] sm:$0xff] %v602
      %608 = vst [vmem:[#allocation2] sm:$0x1] 0.0
      %609 = vst [vmem:[#allocation2 + $0x9] sm:$0x1] 0.0
      %610 = vst [vmem:[#allocation2 + $0x1] sm:$0xff] %v602
      %v611 = vld [vmem:[#allocation2] sm:$0xff]
      %v612 = vpack.c.bf16 %v611, %v611
      %v613 = vld [vmem:[%s5] sm:$0xf]
      %v614 = vld [vmem:[%s5 + $0x4] sm:$0xf]
      %v615 = vld [vmem:[%s5 + $0x8] sm:$0xf]
      %v616 = vld [vmem:[%s5 + $0xc] sm:$0xf]
      %v617 = vld [vmem:[%s5 + $0x10] sm:$0xf]
      %v618 = vld [vmem:[%s5 + $0x14] sm:$0xf]
      %v619 = vld [vmem:[%s5 + $0x18] sm:$0xf]
      %v620 = vld [vmem:[%s5 + $0x1c] sm:$0xf]
      %v621 = vld [vmem:[%s5 + $0x20] sm:$0xf]
      %v622 = vld [vmem:[%s5 + $0x24] sm:$0xf]
      %v623 = vld [vmem:[%s5 + $0x28] sm:$0xf]
      %v624 = vld [vmem:[%s5 + $0x2c] sm:$0xf]
      %v625 = vld [vmem:[%s5 + $0x30] sm:$0xf]
      %v626 = vld [vmem:[%s5 + $0x34] sm:$0xf]
      %v627 = vld [vmem:[%s5 + $0x38] sm:$0xf]
      %v628 = vld [vmem:[%s5 + $0x3c] sm:$0xf]
      %v629 = vld [vmem:[#allocation2 + $0x1] sm:$0xff]
      %v630 = vpack.c.bf16 %v629, %v629
      %s631 = scalar_lea.vmem %s5, 64
      %v632 = vld [vmem:[%s631] sm:$0xf]
      %v633 = vld [vmem:[%s631 + $0x4] sm:$0xf]
      %v634 = vld [vmem:[%s631 + $0x8] sm:$0xf]
      %v635 = vld [vmem:[%s631 + $0xc] sm:$0xf]
      %v636 = vld [vmem:[%s631 + $0x10] sm:$0xf]
      %v637 = vld [vmem:[%s631 + $0x14] sm:$0xf]
      %v638 = vld [vmem:[%s631 + $0x18] sm:$0xf]
      %v639 = vld [vmem:[%s631 + $0x1c] sm:$0xf]
      %v640 = vld [vmem:[%s631 + $0x20] sm:$0xf]
      %v641 = vld [vmem:[%s631 + $0x24] sm:$0xf]
      %v642 = vld [vmem:[%s631 + $0x28] sm:$0xf]
      %v643 = vld [vmem:[%s631 + $0x2c] sm:$0xf]
      %v644 = vld [vmem:[%s631 + $0x30] sm:$0xf]
      %v645 = vld [vmem:[%s631 + $0x34] sm:$0xf]
      %v646 = vld [vmem:[%s631 + $0x38] sm:$0xf]
      %v647 = vld [vmem:[%s631 + $0x3c] sm:$0xf]
      %v664 = vunpack.c.l.b16 %v632
      %v665 = vunpack.c.l.b16 %v633
      %v666 = vunpack.c.l.b16 %v634
      %v667 = vunpack.c.l.b16 %v635
      %v668 = vunpack.c.l.b16 %v636
      %v669 = vunpack.c.l.b16 %v637
      %v670 = vunpack.c.l.b16 %v638
      %v671 = vunpack.c.l.b16 %v639
      %v672 = vunpack.c.l.b16 %v640
      %v673 = vunpack.c.l.b16 %v641
      %v674 = vunpack.c.l.b16 %v642
      %v675 = vunpack.c.l.b16 %v643
      %v676 = vunpack.c.l.b16 %v644
      %v677 = vunpack.c.l.b16 %v645
      %v678 = vunpack.c.l.b16 %v646
      %v679 = vunpack.c.l.b16 %v647
      %v680 = vpack.c.b16 %v665, %v664
      %v681 = vpack.c.b16 %v667, %v666
      %v682 = vpack.c.b16 %v669, %v668
      %v683 = vpack.c.b16 %v671, %v670
      %v684 = vpack.c.b16 %v673, %v672
      %v685 = vpack.c.b16 %v675, %v674
      %v686 = vpack.c.b16 %v677, %v676
      %v687 = vpack.c.b16 %v679, %v678
      %696 = vmatprep.subr.bf16.mxu0 0
      %697 = vmatpush1.bf16.msra.mxu0 %v680
      %698 = vmatprep.subr.bf16.mxu0 0
      %699 = vmatpush1.bf16.msra.mxu0 %v681
      %700 = vmatprep.subr.bf16.mxu0 0
      %701 = vmatpush1.bf16.msra.mxu0 %v682
      %702 = vmatprep.subr.bf16.mxu0 0
      %703 = vmatpush1.bf16.msra.mxu0 %v683
      %704 = vmatprep.subr.bf16.mxu0 0
      %705 = vmatpush1.bf16.msra.mxu0 %v684
      %706 = vmatprep.subr.bf16.mxu0 0
      %707 = vmatpush1.bf16.msra.mxu0 %v685
      %708 = vmatprep.subr.bf16.mxu0 0
      %709 = vmatpush1.bf16.msra.mxu0 %v686
      %710 = vmatprep.subr.bf16.mxu0 0
      %711 = vmatpush1.bf16.msra.mxu0 %v687
      %712 = vmatprep.subr.bf16.mxu0 0
      %713 = vmatpush1.bf16.msra.mxu0 0
      %714 = vmatprep.subr.bf16.mxu0 0
      %715 = vmatpush1.bf16.msra.mxu0 0
      %716 = vmatprep.subr.bf16.mxu0 0
      %717 = vmatpush1.bf16.msra.mxu0 0
      %718 = vmatprep.subr.bf16.mxu0 0
      %719 = vmatpush1.bf16.msra.mxu0 0
      %720 = vmatprep.subr.bf16.mxu0 0
      %721 = vmatpush1.bf16.msra.mxu0 0
      %722 = vmatprep.subr.bf16.mxu0 0
      %723 = vmatpush1.bf16.msra.mxu0 0
      %724 = vmatprep.subr.bf16.mxu0 0
      %725 = vmatpush1.bf16.msra.mxu0 0
      %726 = vmatprep.subr.bf16.mxu0 0
      %727 = vmatpush1.bf16.msra.mxu0 0
      %728 = vmatprep.mubr.bf16.mxu0 0
      %729 = vmatmul.mubr.bf16.gmra.mrb[0].mxu0 %v630
      %v730 = vpop.f32.mrb[0].mxu0
      %v731 = vadd.f32 0.0, %v730
      %v732 = vpop.f32.mrb[0].mxu0
      %v733 = vpop.f32.mrb[0].mxu0
      %v734 = vpop.f32.mrb[0].mxu0
      %735 = vdwg.mxu0
      %v752 = vunpack.c.l.b16 %v613
      %v753 = vunpack.c.l.b16 %v614
      %v754 = vunpack.c.l.b16 %v615
      %v755 = vunpack.c.l.b16 %v616
      %v756 = vunpack.c.l.b16 %v617
      %v757 = vunpack.c.l.b16 %v618
      %v758 = vunpack.c.l.b16 %v619
      %v759 = vunpack.c.l.b16 %v620
      %v760 = vunpack.c.l.b16 %v621
      %v761 = vunpack.c.l.b16 %v622
      %v762 = vunpack.c.l.b16 %v623
      %v763 = vunpack.c.l.b16 %v624
      %v764 = vunpack.c.l.b16 %v625
      %v765 = vunpack.c.l.b16 %v626
      %v766 = vunpack.c.l.b16 %v627
      %v767 = vunpack.c.l.b16 %v628
      %v768 = vpack.c.b16 %v753, %v752
      %v769 = vpack.c.b16 %v755, %v754
      %v770 = vpack.c.b16 %v757, %v756
      %v771 = vpack.c.b16 %v759, %v758
      %v772 = vpack.c.b16 %v761, %v760
      %v773 = vpack.c.b16 %v763, %v762
      %v774 = vpack.c.b16 %v765, %v764
      %v775 = vpack.c.b16 %v767, %v766
      %784 = vmatprep.subr.bf16.mxu0 0
      %785 = vmatpush1.bf16.msra.mxu0 %v768
      %786 = vmatprep.subr.bf16.mxu0 0
      %787 = vmatpush1.bf16.msra.mxu0 %v769
      %788 = vmatprep.subr.bf16.mxu0 0
      %789 = vmatpush1.bf16.msra.mxu0 %v770
      %790 = vmatprep.subr.bf16.mxu0 0
      %791 = vmatpush1.bf16.msra.mxu0 %v771
      %792 = vmatprep.subr.bf16.mxu0 0
      %793 = vmatpush1.bf16.msra.mxu0 %v772
      %794 = vmatprep.subr.bf16.mxu0 0
      %795 = vmatpush1.bf16.msra.mxu0 %v773
      %796 = vmatprep.subr.bf16.mxu0 0
      %797 = vmatpush1.bf16.msra.mxu0 %v774
      %798 = vmatprep.subr.bf16.mxu0 0
      %799 = vmatpush1.bf16.msra.mxu0 %v775
      %800 = vmatprep.subr.bf16.mxu0 0
      %801 = vmatpush1.bf16.msra.mxu0 0
      %802 = vmatprep.subr.bf16.mxu0 0
      %803 = vmatpush1.bf16.msra.mxu0 0
      %804 = vmatprep.subr.bf16.mxu0 0
      %805 = vmatpush1.bf16.msra.mxu0 0
      %806 = vmatprep.subr.bf16.mxu0 0
      %807 = vmatpush1.bf16.msra.mxu0 0
      %808 = vmatprep.subr.bf16.mxu0 0
      %809 = vmatpush1.bf16.msra.mxu0 0
      %810 = vmatprep.subr.bf16.mxu0 0
      %811 = vmatpush1.bf16.msra.mxu0 0
      %812 = vmatprep.subr.bf16.mxu0 0
      %813 = vmatpush1.bf16.msra.mxu0 0
      %814 = vmatprep.subr.bf16.mxu0 0
      %815 = vmatpush1.bf16.msra.mxu0 0
      %816 = vmatprep.mubr.bf16.mxu0 0
      %817 = vmatmul.mubr.bf16.gmra.mrb[0].mxu0 %v612
      %v818 = vpop.f32.mrb[0].mxu0
      %v819 = vadd.f32 %v731, %v818
      %v820 = vpop.f32.mrb[0].mxu0
      %v821 = vpop.f32.mrb[0].mxu0
      %v822 = vpop.f32.mrb[0].mxu0
      %823 = vdwg.mxu0
      %v824 = vld [vmem:[#allocation2 + $0x2] sm:$0xff]
      %v825 = vpack.c.bf16 %v824, %v824
      %s826 = scalar_lea.vmem %s5, 128
      %v827 = vld [vmem:[%s826] sm:$0xf]
      %v828 = vld [vmem:[%s826 + $0x4] sm:$0xf]
      %v829 = vld [vmem:[%s826 + $0x8] sm:$0xf]
      %v830 = vld [vmem:[%s826 + $0xc] sm:$0xf]
      %v831 = vld [vmem:[%s826 + $0x10] sm:$0xf]
      %v832 = vld [vmem:[%s826 + $0x14] sm:$0xf]
      %v833 = vld [vmem:[%s826 + $0x18] sm:$0xf]
      %v834 = vld [vmem:[%s826 + $0x1c] sm:$0xf]
      %v835 = vld [vmem:[%s826 + $0x20] sm:$0xf]
      %v836 = vld [vmem:[%s826 + $0x24] sm:$0xf]
      %v837 = vld [vmem:[%s826 + $0x28] sm:$0xf]
      %v838 = vld [vmem:[%s826 + $0x2c] sm:$0xf]
      %v839 = vld [vmem:[%s826 + $0x30] sm:$0xf]
      %v840 = vld [vmem:[%s826 + $0x34] sm:$0xf]
      %v841 = vld [vmem:[%s826 + $0x38] sm:$0xf]
      %v842 = vld [vmem:[%s826 + $0x3c] sm:$0xf]
      %v859 = vunpack.c.l.b16 %v827
      %v860 = vunpack.c.l.b16 %v828
      %v861 = vunpack.c.l.b16 %v829
      %v862 = vunpack.c.l.b16 %v830
      %v863 = vunpack.c.l.b16 %v831
      %v864 = vunpack.c.l.b16 %v832
      %v865 = vunpack.c.l.b16 %v833
      %v866 = vunpack.c.l.b16 %v834
      %v867 = vunpack.c.l.b16 %v835
      %v868 = vunpack.c.l.b16 %v836
      %v869 = vunpack.c.l.b16 %v837
      %v870 = vunpack.c.l.b16 %v838
      %v871 = vunpack.c.l.b16 %v839
      %v872 = vunpack.c.l.b16 %v840
      %v873 = vunpack.c.l.b16 %v841
      %v874 = vunpack.c.l.b16 %v842
      %v875 = vpack.c.b16 %v860, %v859
      %v876 = vpack.c.b16 %v862, %v861
      %v877 = vpack.c.b16 %v864, %v863
      %v878 = vpack.c.b16 %v866, %v865
      %v879 = vpack.c.b16 %v868, %v867
      %v880 = vpack.c.b16 %v870, %v869
      %v881 = vpack.c.b16 %v872, %v871
      %v882 = vpack.c.b16 %v874, %v873
      %891 = vmatprep.subr.bf16.mxu0 0
      %892 = vmatpush1.bf16.msra.mxu0 %v875
      %893 = vmatprep.subr.bf16.mxu0 0
      %894 = vmatpush1.bf16.msra.mxu0 %v876
      %895 = vmatprep.subr.bf16.mxu0 0
      %896 = vmatpush1.bf16.msra.mxu0 %v877
      %897 = vmatprep.subr.bf16.mxu0 0
      %898 = vmatpush1.bf16.msra.mxu0 %v878
      %899 = vmatprep.subr.bf16.mxu0 0
      %900 = vmatpush1.bf16.msra.mxu0 %v879
      %901 = vmatprep.subr.bf16.mxu0 0
      %902 = vmatpush1.bf16.msra.mxu0 %v880
      %903 = vmatprep.subr.bf16.mxu0 0
      %904 = vmatpush1.bf16.msra.mxu0 %v881
      %905 = vmatprep.subr.bf16.mxu0 0
      %906 = vmatpush1.bf16.msra.mxu0 %v882
      %907 = vmatprep.subr.bf16.mxu0 0
      %908 = vmatpush1.bf16.msra.mxu0 0
      %909 = vmatprep.subr.bf16.mxu0 0
      %910 = vmatpush1.bf16.msra.mxu0 0
      %911 = vmatprep.subr.bf16.mxu0 0
      %912 = vmatpush1.bf16.msra.mxu0 0
      %913 = vmatprep.subr.bf16.mxu0 0
      %914 = vmatpush1.bf16.msra.mxu0 0
      %915 = vmatprep.subr.bf16.mxu0 0
      %916 = vmatpush1.bf16.msra.mxu0 0
      %917 = vmatprep.subr.bf16.mxu0 0
      %918 = vmatpush1.bf16.msra.mxu0 0
      %919 = vmatprep.subr.bf16.mxu0 0
      %920 = vmatpush1.bf16.msra.mxu0 0
      %921 = vmatprep.subr.bf16.mxu0 0
      %922 = vmatpush1.bf16.msra.mxu0 0
      %923 = vmatprep.mubr.bf16.mxu0 0
      %924 = vmatmul.mubr.bf16.gmra.mrb[0].mxu0 %v825
      %v925 = vpop.f32.mrb[0].mxu0
      %v926 = vadd.f32 0.0, %v925
      %v927 = vpop.f32.mrb[0].mxu0
      %v928 = vpop.f32.mrb[0].mxu0
      %v929 = vpop.f32.mrb[0].mxu0
      %930 = vdwg.mxu0
      %v931 = vadd.f32 %v819, %v926
      %v932 = vld [vmem:[%s6] sm:$0x1]
      %v934 = vlaneseq
      %v935 = vshrl.u32 %v934, 7
      %v936 = vsub.s32 0, %v935
      %v937 = vrot.slane %v932, %v936
      %v939 = vadd.f32 %v931, %v937
      %v940 = vrot.slane %v939, 4
      %v941 = vadd.f32 %v939, %v940
      %v942 = vrot.slane %v941, 2
      %v943 = vadd.f32 %v941, %v942
      %v944 = vrot.slane %v943, 1
      %v945 = vadd.f32 %v943, %v944
      %946 = vst [vmem:[%s347] sm:$0x1] %v945
      %v947 = vmul.f32 %v939, %v939
      %v948 = vrot.slane %v947, 4
      %v949 = vadd.f32 %v947, %v948
      %v950 = vrot.slane %v949, 2
      %v951 = vadd.f32 %v949, %v950
      %v952 = vrot.slane %v951, 1
      %v953 = vadd.f32 %v951, %v952
      %954 = vst [vmem:[%s347 + $0x1] sm:$0x1] %v953
      %955 = vst [vmem:[%s343] sm:$0xff] %v939
      %p956 = scmp.lt.s32.totalorder %s21, 1
      %s957 = scalar_select %p956, %s21, 1
      %s958 = smul.addr %s957, 8
      %s959 = scalar_lea.vmem %s7, %s958
      %p960 = scmp.lt.s32.totalorder %s21, 1
      %s961 = scalar_select %p960, %s21, 1
      %s962 = smul.addr %s961, 2
      %s963 = scalar_lea.vmem %s8, %s962
      %p964 = scmp.lt.s32.totalorder %s21, 1
      %s965 = scalar_select %p964, %s21, 1
      %s966 = smul.addr %s965, 8
      %s967 = scalar_lea.vmem %s9, %s966
      // Predicated region
      $region49: #{_lambda_.6} parent=47 // pred_check
        %p968 = pneg %p191
      $region50: #{_lambda_.6} parent=47 // pred_check_branch
        %970 = sbr.rel (%p968) target = $region52
      $region51: #{_lambda_.6} parent=47 // pred_region
        _
      $region52: #{_lambda_.6} parent=47 // pred_fallthru
        _
      // Predicated region
      $region53: #{_lambda_.6} parent=47 // pred_check
        %p971 = pneg %p217
      $region54: #{_lambda_.6} parent=47 // pred_check_branch
        %973 = sbr.rel (%p971) target = $region56
      $region55: #{_lambda_.6} parent=47 // pred_region
        _
      $region56: #{_lambda_.6} parent=47 // pred_fallthru
        _
      // Predicated region
      $region57: #{_lambda_.6} parent=47 // pred_check
        %p974 = pneg %p243
      $region58: #{_lambda_.6} parent=47 // pred_check_branch
        %976 = sbr.rel (%p974) target = $region60
      $region59: #{_lambda_.6} parent=47 // pred_region
        _
      $region60: #{_lambda_.6} parent=47 // pred_fallthru
        _
    $region48: #{_lambda_.6} parent=5 // pred_fallthru
      _
    %p977 = scmp.le.s32.totalorder 2, %s16
    // Predicated region
    $region61: #{_lambda_.6} parent=5 // pred_check
      %p978 = pneg %p977
    $region62: #{_lambda_.6} parent=5 // pred_check_branch
      %980 = sbr.rel (%p978) target = $region64
    $region63: #{_lambda_.6} parent=5 // pred_region
      %s981 = ssub.s32 %s16, 2
      // Predicated region
      $region65: #{_lambda_.6} parent=63 // pred_check
        %p982 = pneg %p197
      $region66: #{_lambda_.6} parent=63 // pred_check_branch
        %984 = sbr.rel (%p982) target = $region68
      $region67: #{_lambda_.6} parent=63 // pred_region
        %p985 = scmp.lt.s32.totalorder %s22, 1
        %s986 = scalar_select %p985, %s22, 1
        %s987 = smul.addr %s986, 8
        %s988 = scalar_lea.vmem %s7, %s987
      $region68: #{_lambda_.6} parent=63 // pred_fallthru
        _
      // Predicated region
      $region69: #{_lambda_.6} parent=63 // pred_check
        %p989 = pneg %p223
      $region70: #{_lambda_.6} parent=63 // pred_check_branch
        %991 = sbr.rel (%p989) target = $region72
      $region71: #{_lambda_.6} parent=63 // pred_region
        %p992 = scmp.lt.s32.totalorder %s22, 1
        %s993 = scalar_select %p992, %s22, 1
        %s994 = smul.addr %s993, 2
        %s995 = scalar_lea.vmem %s8, %s994
      $region72: #{_lambda_.6} parent=63 // pred_fallthru
        _
      // Predicated region
      $region73: #{_lambda_.6} parent=63 // pred_check
        %p996 = pneg %p249
      $region74: #{_lambda_.6} parent=63 // pred_check_branch
        %998 = sbr.rel (%p996) target = $region76
      $region75: #{_lambda_.6} parent=63 // pred_region
        %p999 = scmp.lt.s32.totalorder %s22, 1
        %s1000 = scalar_select %p999, %s22, 1
        %s1001 = smul.addr %s1000, 8
        %s1002 = scalar_lea.vmem %s9, %s1001
      $region76: #{_lambda_.6} parent=63 // pred_fallthru
        _
    $region64: #{_lambda_.6} parent=5 // pred_fallthru
      _
  $region6: #{_lambda_.6} parent=0 // loop_footer
    %s20 = sadd.s32 1, %s16
  $region7: #{_lambda_.6} parent=0 // loop_footer_branch
    %15 = sbr.rel target = $region3
  $region8: #{_lambda_.6} parent=0 // loop_exit
    _

// kernel: _lambda_.7
$region0: #{_lambda_.7}
  #allocation0 [shape = 'u32[]', space=smem, size = 0x4, offset = 0x4, fixed_abs, tag = 'smem constant byte address 0x4 - core index']
  #allocation1 [shape = 'u32[144,128]{1,0:T(1,128)}', space=vmem, size = 0x12000, scoped, tag = 'internal scratch']
  #allocation2 [shape = 'f32[10,128]{1,0:T(8,128)}', space=vmem, size = 0x2000, scoped, tag = 'scratch operand']
  %s0 = inlined_call_operand.vmem [shape: f32[2,8,128], index: 0, kind: input, shape index: {}]
  %s1 = inlined_call_operand.vmem [shape: f32[1,128], index: 1, kind: input, shape index: {}]
  %s2 = inlined_call_operand.vmem [shape: f32[1,128], index: 2, kind: input, shape index: {}]
  %s3 = inlined_call_operand.vmem [shape: bf16[3,128,128], index: 3, kind: input, shape index: {}]
  %s4 = inlined_call_operand.vmem [shape: f32[1,128], index: 4, kind: input, shape index: {}]
  %s5 = inlined_call_operand.vmem [shape: f32[2,8,128], index: 5, kind: output, shape index: {0}]
  %s6 = inlined_call_operand.vmem [shape: f32[2,2,128], index: 6, kind: output, shape index: {1}]
  %7 = xla_tuple %s5, %s6
  %s8 = sld [smem:[#allocation0]]
  $region61: #{_lambda_.7} parent=0
    _
  %s10 = ssub.s32 1, %s8
  %s11 = scalar_select 0, %s10, %s8
  loop: start=0, step=1, limit=4
  $region2: #{_lambda_.7} parent=0 // loop_pre_header
    _
  $region3: #{_lambda_.7} parent=0 // loop_header
    %s13 = sphi 0, %s17
    %p14 = scmp.ge.s32.totalorder %s13, 4
    %s23 = sphi 0, %s25
    %s26 = sphi 0, %s23
    %s27 = sphi 0, %s26
    %s43 = sphi 0, %s27
    %s47 = sphi 0, %s47
    %s49 = sphi 0, %s47
    %s50 = sphi 0, %s49
    %s64 = sphi 0, %s50
    %s68 = sphi 0, %s68
    %s70 = sphi 0, %s68
    %s71 = sphi 0, %s70
    %s85 = sphi 0, %s71
    %s89 = sphi 0, %s89
    %s91 = sphi 0, %s89
    %s92 = sphi 0, %s91
    %s106 = sphi 0, %s92
    %s110 = sphi 0, %s110
    %s112 = sphi 0, %s110
    %s113 = sphi 0, %s112
    %s127 = sphi 0, %s113
    %s133 = sphi 0, %s135
    %s136 = sphi 0, %s133
    %s137 = sphi 0, %s136
    %s153 = sphi 0, %s137
    %s159 = sphi 0, %s161
    %s162 = sphi 0, %s159
    %s163 = sphi 0, %s162
    %s179 = sphi 0, %s163
  $region4: #{_lambda_.7} parent=0 // loop_header_branch
    %16 = sbr.rel (%p14) target = $region8
  $region5: #{_lambda_.7} parent=0 // loop_body
    %s18 = ssub.s32 %s13, 1
    %s19 = ssub.s32 %s13, 2
    %s20 = sadd.s32 %s13, 1
    %s21 = ssub.s32 %s13, %s20
    %p22 = scmp.eq.s32.totalorder %s21, 0
    %s24 = sadd.s32 %s23, 1
    %s25 = scalar_select %p22, %s23, %s24
    %p28 = pneg %p22
    %p29 = scmp.eq.s32.totalorder %s13, 1
    %p30 = por %p28, %p29
    %p31 = scmp.ne.s32.totalorder %s23, %s26
    %p32 = scmp.eq.s32.totalorder %s13, 0
    %p33 = por %p31, %p32
    %p34 = scmp.ne.s32.totalorder %s23, %s26
    %p35 = scmp.eq.s32.totalorder %s18, 1
    %p36 = por %p34, %p35
    %p37 = scmp.ne.s32.totalorder %s26, %s27
    %p38 = scmp.eq.s32.totalorder %s18, 0
    %p39 = por %p37, %p38
    %p40 = scmp.ne.s32.totalorder %s26, %s27
    %p41 = scmp.eq.s32.totalorder %s19, 1
    %p42 = por %p40, %p41
    %p44 = scmp.ne.s32.totalorder %s27, %s43
    %p45 = scmp.eq.s32.totalorder %s19, 0
    %p46 = por %p44, %p45
    %s48 = sadd.s32 %s47, 1
    %p51 = scmp.eq.s32.totalorder %s13, 1
    %p52 = scmp.ne.s32.totalorder %s47, %s49
    %p53 = scmp.eq.s32.totalorder %s13, 0
    %p54 = por %p52, %p53
    %p55 = scmp.ne.s32.totalorder %s47, %s49
    %p56 = scmp.eq.s32.totalorder %s18, 1
    %p57 = por %p55, %p56
    %p58 = scmp.ne.s32.totalorder %s49, %s50
    %p59 = scmp.eq.s32.totalorder %s18, 0
    %p60 = por %p58, %p59
    %p61 = scmp.ne.s32.totalorder %s49, %s50
    %p62 = scmp.eq.s32.totalorder %s19, 1
    %p63 = por %p61, %p62
    %p65 = scmp.ne.s32.totalorder %s50, %s64
    %p66 = scmp.eq.s32.totalorder %s19, 0
    %p67 = por %p65, %p66
    %s69 = sadd.s32 %s68, 1
    %p72 = scmp.eq.s32.totalorder %s13, 1
    %p73 = scmp.ne.s32.totalorder %s68, %s70
    %p74 = scmp.eq.s32.totalorder %s13, 0
    %p75 = por %p73, %p74
    %p76 = scmp.ne.s32.totalorder %s68, %s70
    %p77 = scmp.eq.s32.totalorder %s18, 1
    %p78 = por %p76, %p77
    %p79 = scmp.ne.s32.totalorder %s70, %s71
    %p80 = scmp.eq.s32.totalorder %s18, 0
    %p81 = por %p79, %p80
    %p82 = scmp.ne.s32.totalorder %s70, %s71
    %p83 = scmp.eq.s32.totalorder %s19, 1
    %p84 = por %p82, %p83
    %p86 = scmp.ne.s32.totalorder %s71, %s85
    %p87 = scmp.eq.s32.totalorder %s19, 0
    %p88 = por %p86, %p87
    %s90 = sadd.s32 %s89, 1
    %p93 = scmp.eq.s32.totalorder %s13, 1
    %p94 = scmp.ne.s32.totalorder %s89, %s91
    %p95 = scmp.eq.s32.totalorder %s13, 0
    %p96 = por %p94, %p95
    %p97 = scmp.ne.s32.totalorder %s89, %s91
    %p98 = scmp.eq.s32.totalorder %s18, 1
    %p99 = por %p97, %p98
    %p100 = scmp.ne.s32.totalorder %s91, %s92
    %p101 = scmp.eq.s32.totalorder %s18, 0
    %p102 = por %p100, %p101
    %p103 = scmp.ne.s32.totalorder %s91, %s92
    %p104 = scmp.eq.s32.totalorder %s19, 1
    %p105 = por %p103, %p104
    %p107 = scmp.ne.s32.totalorder %s92, %s106
    %p108 = scmp.eq.s32.totalorder %s19, 0
    %p109 = por %p107, %p108
    %s111 = sadd.s32 %s110, 1
    %p114 = scmp.eq.s32.totalorder %s13, 1
    %p115 = scmp.ne.s32.totalorder %s110, %s112
    %p116 = scmp.eq.s32.totalorder %s13, 0
    %p117 = por %p115, %p116
    %p118 = scmp.ne.s32.totalorder %s110, %s112
    %p119 = scmp.eq.s32.totalorder %s18, 1
    %p120 = por %p118, %p119
    %p121 = scmp.ne.s32.totalorder %s112, %s113
    %p122 = scmp.eq.s32.totalorder %s18, 0
    %p123 = por %p121, %p122
    %p124 = scmp.ne.s32.totalorder %s112, %s113
    %p125 = scmp.eq.s32.totalorder %s19, 1
    %p126 = por %p124, %p125
    %p128 = scmp.ne.s32.totalorder %s113, %s127
    %p129 = scmp.eq.s32.totalorder %s19, 0
    %p130 = por %p128, %p129
    %s131 = ssub.s32 %s13, %s20
    %p132 = scmp.eq.s32.totalorder %s131, 0
    %s134 = sadd.s32 %s133, 1
    %s135 = scalar_select %p132, %s133, %s134
    %p138 = pneg %p132
    %p139 = scmp.eq.s32.totalorder %s13, 1
    %p140 = por %p138, %p139
    %p141 = scmp.ne.s32.totalorder %s133, %s136
    %p142 = scmp.eq.s32.totalorder %s13, 0
    %p143 = por %p141, %p142
    %p144 = scmp.ne.s32.totalorder %s133, %s136
    %p145 = scmp.eq.s32.totalorder %s18, 1
    %p146 = por %p144, %p145
    %p147 = scmp.ne.s32.totalorder %s136, %s137
    %p148 = scmp.eq.s32.totalorder %s18, 0
    %p149 = por %p147, %p148
    %p150 = scmp.ne.s32.totalorder %s136, %s137
    %p151 = scmp.eq.s32.totalorder %s19, 1
    %p152 = por %p150, %p151
    %p154 = scmp.ne.s32.totalorder %s137, %s153
    %p155 = scmp.eq.s32.totalorder %s19, 0
    %p156 = por %p154, %p155
    %s157 = ssub.s32 %s13, %s20
    %p158 = scmp.eq.s32.totalorder %s157, 0
    %s160 = sadd.s32 %s159, 1
    %s161 = scalar_select %p158, %s159, %s160
    %p164 = pneg %p158
    %p165 = scmp.eq.s32.totalorder %s13, 1
    %p166 = por %p164, %p165
    %p167 = scmp.ne.s32.totalorder %s159, %s162
    %p168 = scmp.eq.s32.totalorder %s13, 0
    %p169 = por %p167, %p168
    %p170 = scmp.ne.s32.totalorder %s159, %s162
    %p171 = scmp.eq.s32.totalorder %s18, 1
    %p172 = por %p170, %p171
    %p173 = scmp.ne.s32.totalorder %s162, %s163
    %p174 = scmp.eq.s32.totalorder %s18, 0
    %p175 = por %p173, %p174
    %p176 = scmp.ne.s32.totalorder %s162, %s163
    %p177 = scmp.eq.s32.totalorder %s19, 1
    %p178 = por %p176, %p177
    %p180 = scmp.ne.s32.totalorder %s163, %s179
    %p181 = scmp.eq.s32.totalorder %s19, 0
    %p182 = por %p180, %p181
    %p183 = scmp.le.s32.totalorder 1, %s13
    %p184 = scmp.lt.s32.totalorder %s13, 3
    %p185 = pnand %p183, %p184
    %p186 = pneg %p185
    // Predicated region
    $region9: #{_lambda_.7} parent=5 // pred_check
      _
    $region10: #{_lambda_.7} parent=5 // pred_check_branch
      %188 = sbr.rel (%p185) target = $region12
    $region11: #{_lambda_.7} parent=5 // pred_region
      %s189 = ssub.s32 %s13, 1
      // Predicated region
      $region13: #{_lambda_.7} parent=11 // pred_check
        %p190 = pneg %p60
      $region14: #{_lambda_.7} parent=11 // pred_check_branch
        %192 = sbr.rel (%p190) target = $region16
      $region15: #{_lambda_.7} parent=11 // pred_region
        _
      $region16: #{_lambda_.7} parent=11 // pred_fallthru
        _
      // Predicated region
      $region17: #{_lambda_.7} parent=11 // pred_check
        %p193 = pneg %p81
      $region18: #{_lambda_.7} parent=11 // pred_check_branch
        %195 = sbr.rel (%p193) target = $region20
      $region19: #{_lambda_.7} parent=11 // pred_region
        _
      $region20: #{_lambda_.7} parent=11 // pred_fallthru
        _
      // Predicated region
      $region21: #{_lambda_.7} parent=11 // pred_check
        %p196 = pneg %p102
      $region22: #{_lambda_.7} parent=11 // pred_check_branch
        %198 = sbr.rel (%p196) target = $region24
      $region23: #{_lambda_.7} parent=11 // pred_region
        _
      $region24: #{_lambda_.7} parent=11 // pred_fallthru
        _
      // Predicated region
      $region25: #{_lambda_.7} parent=11 // pred_check
        %p199 = pneg %p123
      $region26: #{_lambda_.7} parent=11 // pred_check_branch
        %201 = sbr.rel (%p199) target = $region28
      $region27: #{_lambda_.7} parent=11 // pred_region
        _
      $region28: #{_lambda_.7} parent=11 // pred_fallthru
        _
    $region12: #{_lambda_.7} parent=5 // pred_fallthru
      _
    %p202 = scmp.lt.s32.totalorder %s13, 2
    // Predicated region
    $region29: #{_lambda_.7} parent=5 // pred_check
      %p203 = pneg %p202
    $region30: #{_lambda_.7} parent=5 // pred_check_branch
      %205 = sbr.rel (%p203) target = $region32
    $region31: #{_lambda_.7} parent=5 // pred_region
      // Predicated region
      $region33: #{_lambda_.7} parent=31 // pred_check
        %p206 = pneg %p33
      $region34: #{_lambda_.7} parent=31 // pred_check_branch
        %208 = sbr.rel (%p206) target = $region36
      $region35: #{_lambda_.7} parent=31 // pred_region
        %p209 = scmp.lt.s32.totalorder %s13, 1
        %s210 = scalar_select %p209, %s13, 1
        %s211 = smul.addr %s210, 8
        %s212 = scalar_lea.vmem %s0, %s211
      $region36: #{_lambda_.7} parent=31 // pred_fallthru
        _
    $region32: #{_lambda_.7} parent=5 // pred_fallthru
      _
    %p213 = scmp.le.s32.totalorder 1, %s13
    %p214 = scmp.lt.s32.totalorder %s13, 3
    %p215 = pnand %p213, %p214
    %p216 = pneg %p215
    // Predicated region
    $region37: #{_lambda_.7} parent=5 // pred_check
      _
    $region38: #{_lambda_.7} parent=5 // pred_check_branch
      %218 = sbr.rel (%p215) target = $region40
    $region39: #{_lambda_.7} parent=5 // pred_region
      %s219 = ssub.s32 %s13, 1
      %p220 = scmp.lt.s32.totalorder %s18, 1
      %s221 = scalar_select %p220, %s18, 1
      %s222 = smul.addr %s221, 8
      %s223 = scalar_lea.vmem %s0, %s222
      %p224 = pneg %p39
      %p225 = pneg %p36
      %p226 = pneg %p60
      %p227 = pneg %p57
      %p228 = pneg %p81
      %p229 = pneg %p78
      %p230 = pneg %p102
      %p231 = pneg %p99
      %p232 = pneg %p123
      %p233 = pneg %p120
      %p234 = pneg %p149
      %p235 = pneg %p146
      %p236 = scmp.lt.s32.totalorder %s18, 1
      %s237 = scalar_select %p236, %s18, 1
      %s238 = smul.addr %s237, 8
      %s239 = scalar_lea.vmem %s5, %s238
      %p240 = pneg %p175
      %p241 = pneg %p172
      %p242 = scmp.lt.s32.totalorder %s18, 1
      %s243 = scalar_select %p242, %s18, 1
      %s244 = smul.addr %s243, 2
      %s245 = scalar_lea.vmem %s6, %s244
      %p246 = scmp.lt.s32.totalorder %s18, 1
      %s247 = scalar_select %p246, %s18, 1
      %s248 = smul.addr %s247, 8
      %s249 = scalar_lea.vmem %s0, %s248
      %p250 = scmp.lt.s32.totalorder %s18, 1
      %s251 = scalar_select %p250, %s18, 1
      %s252 = smul.addr %s251, 8
      %s253 = scalar_lea.vmem %s5, %s252
      %p254 = scmp.lt.s32.totalorder %s18, 1
      %s255 = scalar_select %p254, %s18, 1
      %s256 = smul.addr %s255, 2
      %s257 = scalar_lea.vmem %s6, %s256
      %v259 = vld [vmem:[%s249] sm:$0xff]
      %v260 = vld [vmem:[%s1] sm:$0x1]
      %v262 = vlaneseq
      %v263 = vshrl.u32 %v262, 7
      %v264 = vsub.s32 0, %v263
      %v265 = vrot.slane %v260, %v264
      %v267 = vmul.f32 %v259, %v265
      %v268 = vld [vmem:[%s2] sm:$0x1]
      %v270 = vlaneseq
      %v271 = vshrl.u32 %v270, 7
      %v272 = vsub.s32 0, %v271
      %v273 = vrot.slane %v268, %v272
      %v275 = vadd.f32 %v267, %v273
      %vm276 = vcmp.ge.f32.partialorder %v275, 0.0
      %v277 = vmul.f32 %v275, 0.2
      %v278 = vsel %vm276, %v275, %v277
      %279 = vst [vmem:[#allocation2] sm:$0x1] 0.0
      %280 = vst [vmem:[#allocation2 + $0x9] sm:$0x1] 0.0
      %281 = vst [vmem:[#allocation2 + $0x1] sm:$0xff] %v278
      %v282 = vld [vmem:[#allocation2] sm:$0xff]
      %v283 = vpack.c.bf16 %v282, %v282
      %v284 = vld [vmem:[%s3] sm:$0xf]
      %v285 = vld [vmem:[%s3 + $0x4] sm:$0xf]
      %v286 = vld [vmem:[%s3 + $0x8] sm:$0xf]
      %v287 = vld [vmem:[%s3 + $0xc] sm:$0xf]
      %v288 = vld [vmem:[%s3 + $0x10] sm:$0xf]
      %v289 = vld [vmem:[%s3 + $0x14] sm:$0xf]
      %v290 = vld [vmem:[%s3 + $0x18] sm:$0xf]
      %v291 = vld [vmem:[%s3 + $0x1c] sm:$0xf]
      %v292 = vld [vmem:[%s3 + $0x20] sm:$0xf]
      %v293 = vld [vmem:[%s3 + $0x24] sm:$0xf]
      %v294 = vld [vmem:[%s3 + $0x28] sm:$0xf]
      %v295 = vld [vmem:[%s3 + $0x2c] sm:$0xf]
      %v296 = vld [vmem:[%s3 + $0x30] sm:$0xf]
      %v297 = vld [vmem:[%s3 + $0x34] sm:$0xf]
      %v298 = vld [vmem:[%s3 + $0x38] sm:$0xf]
      %v299 = vld [vmem:[%s3 + $0x3c] sm:$0xf]
      %v300 = vld [vmem:[#allocation2 + $0x1] sm:$0xff]
      %v301 = vpack.c.bf16 %v300, %v300
      %s302 = scalar_lea.vmem %s3, 64
      %v303 = vld [vmem:[%s302] sm:$0xf]
      %v304 = vld [vmem:[%s302 + $0x4] sm:$0xf]
      %v305 = vld [vmem:[%s302 + $0x8] sm:$0xf]
      %v306 = vld [vmem:[%s302 + $0xc] sm:$0xf]
      %v307 = vld [vmem:[%s302 + $0x10] sm:$0xf]
      %v308 = vld [vmem:[%s302 + $0x14] sm:$0xf]
      %v309 = vld [vmem:[%s302 + $0x18] sm:$0xf]
      %v310 = vld [vmem:[%s302 + $0x1c] sm:$0xf]
      %v311 = vld [vmem:[%s302 + $0x20] sm:$0xf]
      %v312 = vld [vmem:[%s302 + $0x24] sm:$0xf]
      %v313 = vld [vmem:[%s302 + $0x28] sm:$0xf]
      %v314 = vld [vmem:[%s302 + $0x2c] sm:$0xf]
      %v315 = vld [vmem:[%s302 + $0x30] sm:$0xf]
      %v316 = vld [vmem:[%s302 + $0x34] sm:$0xf]
      %v317 = vld [vmem:[%s302 + $0x38] sm:$0xf]
      %v318 = vld [vmem:[%s302 + $0x3c] sm:$0xf]
      %v335 = vunpack.c.l.b16 %v303
      %v336 = vunpack.c.l.b16 %v304
      %v337 = vunpack.c.l.b16 %v305
      %v338 = vunpack.c.l.b16 %v306
      %v339 = vunpack.c.l.b16 %v307
      %v340 = vunpack.c.l.b16 %v308
      %v341 = vunpack.c.l.b16 %v309
      %v342 = vunpack.c.l.b16 %v310
      %v343 = vunpack.c.l.b16 %v311
      %v344 = vunpack.c.l.b16 %v312
      %v345 = vunpack.c.l.b16 %v313
      %v346 = vunpack.c.l.b16 %v314
      %v347 = vunpack.c.l.b16 %v315
      %v348 = vunpack.c.l.b16 %v316
      %v349 = vunpack.c.l.b16 %v317
      %v350 = vunpack.c.l.b16 %v318
      %v351 = vpack.c.b16 %v336, %v335
      %v352 = vpack.c.b16 %v338, %v337
      %v353 = vpack.c.b16 %v340, %v339
      %v354 = vpack.c.b16 %v342, %v341
      %v355 = vpack.c.b16 %v344, %v343
      %v356 = vpack.c.b16 %v346, %v345
      %v357 = vpack.c.b16 %v348, %v347
      %v358 = vpack.c.b16 %v350, %v349
      %367 = vmatprep.subr.bf16.mxu0 0
      %368 = vmatpush1.bf16.msra.mxu0 %v351
      %369 = vmatprep.subr.bf16.mxu0 0
      %370 = vmatpush1.bf16.msra.mxu0 %v352
      %371 = vmatprep.subr.bf16.mxu0 0
      %372 = vmatpush1.bf16.msra.mxu0 %v353
      %373 = vmatprep.subr.bf16.mxu0 0
      %374 = vmatpush1.bf16.msra.mxu0 %v354
      %375 = vmatprep.subr.bf16.mxu0 0
      %376 = vmatpush1.bf16.msra.mxu0 %v355
      %377 = vmatprep.subr.bf16.mxu0 0
      %378 = vmatpush1.bf16.msra.mxu0 %v356
      %379 = vmatprep.subr.bf16.mxu0 0
      %380 = vmatpush1.bf16.msra.mxu0 %v357
      %381 = vmatprep.subr.bf16.mxu0 0
      %382 = vmatpush1.bf16.msra.mxu0 %v358
      %383 = vmatprep.subr.bf16.mxu0 0
      %384 = vmatpush1.bf16.msra.mxu0 0
      %385 = vmatprep.subr.bf16.mxu0 0
      %386 = vmatpush1.bf16.msra.mxu0 0
      %387 = vmatprep.subr.bf16.mxu0 0
      %388 = vmatpush1.bf16.msra.mxu0 0
      %389 = vmatprep.subr.bf16.mxu0 0
      %390 = vmatpush1.bf16.msra.mxu0 0
      %391 = vmatprep.subr.bf16.mxu0 0
      %392 = vmatpush1.bf16.msra.mxu0 0
      %393 = vmatprep.subr.bf16.mxu0 0
      %394 = vmatpush1.bf16.msra.mxu0 0
      %395 = vmatprep.subr.bf16.mxu0 0
      %396 = vmatpush1.bf16.msra.mxu0 0
      %397 = vmatprep.subr.bf16.mxu0 0
      %398 = vmatpush1.bf16.msra.mxu0 0
      %399 = vmatprep.mubr.bf16.mxu0 0
      %400 = vmatmul.mubr.bf16.gmra.mrb[0].mxu0 %v301
      %v401 = vpop.f32.mrb[0].mxu0
      %v402 = vadd.f32 0.0, %v401
      %v403 = vpop.f32.mrb[0].mxu0
      %v404 = vpop.f32.mrb[0].mxu0
      %v405 = vpop.f32.mrb[0].mxu0
      %406 = vdwg.mxu0
      %v423 = vunpack.c.l.b16 %v284
      %v424 = vunpack.c.l.b16 %v285
      %v425 = vunpack.c.l.b16 %v286
      %v426 = vunpack.c.l.b16 %v287
      %v427 = vunpack.c.l.b16 %v288
      %v428 = vunpack.c.l.b16 %v289
      %v429 = vunpack.c.l.b16 %v290
      %v430 = vunpack.c.l.b16 %v291
      %v431 = vunpack.c.l.b16 %v292
      %v432 = vunpack.c.l.b16 %v293
      %v433 = vunpack.c.l.b16 %v294
      %v434 = vunpack.c.l.b16 %v295
      %v435 = vunpack.c.l.b16 %v296
      %v436 = vunpack.c.l.b16 %v297
      %v437 = vunpack.c.l.b16 %v298
      %v438 = vunpack.c.l.b16 %v299
      %v439 = vpack.c.b16 %v424, %v423
      %v440 = vpack.c.b16 %v426, %v425
      %v441 = vpack.c.b16 %v428, %v427
      %v442 = vpack.c.b16 %v430, %v429
      %v443 = vpack.c.b16 %v432, %v431
      %v444 = vpack.c.b16 %v434, %v433
      %v445 = vpack.c.b16 %v436, %v435
      %v446 = vpack.c.b16 %v438, %v437
      %455 = vmatprep.subr.bf16.mxu0 0
      %456 = vmatpush1.bf16.msra.mxu0 %v439
      %457 = vmatprep.subr.bf16.mxu0 0
      %458 = vmatpush1.bf16.msra.mxu0 %v440
      %459 = vmatprep.subr.bf16.mxu0 0
      %460 = vmatpush1.bf16.msra.mxu0 %v441
      %461 = vmatprep.subr.bf16.mxu0 0
      %462 = vmatpush1.bf16.msra.mxu0 %v442
      %463 = vmatprep.subr.bf16.mxu0 0
      %464 = vmatpush1.bf16.msra.mxu0 %v443
      %465 = vmatprep.subr.bf16.mxu0 0
      %466 = vmatpush1.bf16.msra.mxu0 %v444
      %467 = vmatprep.subr.bf16.mxu0 0
      %468 = vmatpush1.bf16.msra.mxu0 %v445
      %469 = vmatprep.subr.bf16.mxu0 0
      %470 = vmatpush1.bf16.msra.mxu0 %v446
      %471 = vmatprep.subr.bf16.mxu0 0
      %472 = vmatpush1.bf16.msra.mxu0 0
      %473 = vmatprep.subr.bf16.mxu0 0
      %474 = vmatpush1.bf16.msra.mxu0 0
      %475 = vmatprep.subr.bf16.mxu0 0
      %476 = vmatpush1.bf16.msra.mxu0 0
      %477 = vmatprep.subr.bf16.mxu0 0
      %478 = vmatpush1.bf16.msra.mxu0 0
      %479 = vmatprep.subr.bf16.mxu0 0
      %480 = vmatpush1.bf16.msra.mxu0 0
      %481 = vmatprep.subr.bf16.mxu0 0
      %482 = vmatpush1.bf16.msra.mxu0 0
      %483 = vmatprep.subr.bf16.mxu0 0
      %484 = vmatpush1.bf16.msra.mxu0 0
      %485 = vmatprep.subr.bf16.mxu0 0
      %486 = vmatpush1.bf16.msra.mxu0 0
      %487 = vmatprep.mubr.bf16.mxu0 0
      %488 = vmatmul.mubr.bf16.gmra.mrb[0].mxu0 %v283
      %v489 = vpop.f32.mrb[0].mxu0
      %v490 = vadd.f32 %v402, %v489
      %v491 = vpop.f32.mrb[0].mxu0
      %v492 = vpop.f32.mrb[0].mxu0
      %v493 = vpop.f32.mrb[0].mxu0
      %494 = vdwg.mxu0
      %v495 = vld [vmem:[#allocation2 + $0x2] sm:$0xff]
      %v496 = vpack.c.bf16 %v495, %v495
      %s497 = scalar_lea.vmem %s3, 128
      %v498 = vld [vmem:[%s497] sm:$0xf]
      %v499 = vld [vmem:[%s497 + $0x4] sm:$0xf]
      %v500 = vld [vmem:[%s497 + $0x8] sm:$0xf]
      %v501 = vld [vmem:[%s497 + $0xc] sm:$0xf]
      %v502 = vld [vmem:[%s497 + $0x10] sm:$0xf]
      %v503 = vld [vmem:[%s497 + $0x14] sm:$0xf]
      %v504 = vld [vmem:[%s497 + $0x18] sm:$0xf]
      %v505 = vld [vmem:[%s497 + $0x1c] sm:$0xf]
      %v506 = vld [vmem:[%s497 + $0x20] sm:$0xf]
      %v507 = vld [vmem:[%s497 + $0x24] sm:$0xf]
      %v508 = vld [vmem:[%s497 + $0x28] sm:$0xf]
      %v509 = vld [vmem:[%s497 + $0x2c] sm:$0xf]
      %v510 = vld [vmem:[%s497 + $0x30] sm:$0xf]
      %v511 = vld [vmem:[%s497 + $0x34] sm:$0xf]
      %v512 = vld [vmem:[%s497 + $0x38] sm:$0xf]
      %v513 = vld [vmem:[%s497 + $0x3c] sm:$0xf]
      %v530 = vunpack.c.l.b16 %v498
      %v531 = vunpack.c.l.b16 %v499
      %v532 = vunpack.c.l.b16 %v500
      %v533 = vunpack.c.l.b16 %v501
      %v534 = vunpack.c.l.b16 %v502
      %v535 = vunpack.c.l.b16 %v503
      %v536 = vunpack.c.l.b16 %v504
      %v537 = vunpack.c.l.b16 %v505
      %v538 = vunpack.c.l.b16 %v506
      %v539 = vunpack.c.l.b16 %v507
      %v540 = vunpack.c.l.b16 %v508
      %v541 = vunpack.c.l.b16 %v509
      %v542 = vunpack.c.l.b16 %v510
      %v543 = vunpack.c.l.b16 %v511
      %v544 = vunpack.c.l.b16 %v512
      %v545 = vunpack.c.l.b16 %v513
      %v546 = vpack.c.b16 %v531, %v530
      %v547 = vpack.c.b16 %v533, %v532
      %v548 = vpack.c.b16 %v535, %v534
      %v549 = vpack.c.b16 %v537, %v536
      %v550 = vpack.c.b16 %v539, %v538
      %v551 = vpack.c.b16 %v541, %v540
      %v552 = vpack.c.b16 %v543, %v542
      %v553 = vpack.c.b16 %v545, %v544
      %562 = vmatprep.subr.bf16.mxu0 0
      %563 = vmatpush1.bf16.msra.mxu0 %v546
      %564 = vmatprep.subr.bf16.mxu0 0
      %565 = vmatpush1.bf16.msra.mxu0 %v547
      %566 = vmatprep.subr.bf16.mxu0 0
      %567 = vmatpush1.bf16.msra.mxu0 %v548
      %568 = vmatprep.subr.bf16.mxu0 0
      %569 = vmatpush1.bf16.msra.mxu0 %v549
      %570 = vmatprep.subr.bf16.mxu0 0
      %571 = vmatpush1.bf16.msra.mxu0 %v550
      %572 = vmatprep.subr.bf16.mxu0 0
      %573 = vmatpush1.bf16.msra.mxu0 %v551
      %574 = vmatprep.subr.bf16.mxu0 0
      %575 = vmatpush1.bf16.msra.mxu0 %v552
      %576 = vmatprep.subr.bf16.mxu0 0
      %577 = vmatpush1.bf16.msra.mxu0 %v553
      %578 = vmatprep.subr.bf16.mxu0 0
      %579 = vmatpush1.bf16.msra.mxu0 0
      %580 = vmatprep.subr.bf16.mxu0 0
      %581 = vmatpush1.bf16.msra.mxu0 0
      %582 = vmatprep.subr.bf16.mxu0 0
      %583 = vmatpush1.bf16.msra.mxu0 0
      %584 = vmatprep.subr.bf16.mxu0 0
      %585 = vmatpush1.bf16.msra.mxu0 0
      %586 = vmatprep.subr.bf16.mxu0 0
      %587 = vmatpush1.bf16.msra.mxu0 0
      %588 = vmatprep.subr.bf16.mxu0 0
      %589 = vmatpush1.bf16.msra.mxu0 0
      %590 = vmatprep.subr.bf16.mxu0 0
      %591 = vmatpush1.bf16.msra.mxu0 0
      %592 = vmatprep.subr.bf16.mxu0 0
      %593 = vmatpush1.bf16.msra.mxu0 0
      %594 = vmatprep.mubr.bf16.mxu0 0
      %595 = vmatmul.mubr.bf16.gmra.mrb[0].mxu0 %v496
      %v596 = vpop.f32.mrb[0].mxu0
      %v597 = vadd.f32 0.0, %v596
      %v598 = vpop.f32.mrb[0].mxu0
      %v599 = vpop.f32.mrb[0].mxu0
      %v600 = vpop.f32.mrb[0].mxu0
      %601 = vdwg.mxu0
      %v602 = vadd.f32 %v490, %v597
      %v603 = vld [vmem:[%s4] sm:$0x1]
      %v605 = vlaneseq
      %v606 = vshrl.u32 %v605, 7
      %v607 = vsub.s32 0, %v606
      %v608 = vrot.slane %v603, %v607
      %v610 = vadd.f32 %v602, %v608
      %v611 = vrot.slane %v610, 4
      %v612 = vadd.f32 %v610, %v611
      %v613 = vrot.slane %v612, 2
      %v614 = vadd.f32 %v612, %v613
      %v615 = vrot.slane %v614, 1
      %v616 = vadd.f32 %v614, %v615
      %617 = vst [vmem:[%s257] sm:$0x1] %v616
      %v618 = vmul.f32 %v610, %v610
      %v619 = vrot.slane %v618, 4
      %v620 = vadd.f32 %v618, %v619
      %v621 = vrot.slane %v620, 2
      %v622 = vadd.f32 %v620, %v621
      %v623 = vrot.slane %v622, 1
      %v624 = vadd.f32 %v622, %v623
      %625 = vst [vmem:[%s257 + $0x1] sm:$0x1] %v624
      %626 = vst [vmem:[%s253] sm:$0xff] %v610
      %p627 = scmp.lt.s32.totalorder %s18, 1
      %s628 = scalar_select %p627, %s18, 1
      %s629 = smul.addr %s628, 8
      %s630 = scalar_lea.vmem %s5, %s629
      %p631 = scmp.lt.s32.totalorder %s18, 1
      %s632 = scalar_select %p631, %s18, 1
      %s633 = smul.addr %s632, 2
      %s634 = scalar_lea.vmem %s6, %s633
      // Predicated region
      $region41: #{_lambda_.7} parent=39 // pred_check
        %p635 = pneg %p146
      $region42: #{_lambda_.7} parent=39 // pred_check_branch
        %637 = sbr.rel (%p635) target = $region44
      $region43: #{_lambda_.7} parent=39 // pred_region
        _
      $region44: #{_lambda_.7} parent=39 // pred_fallthru
        _
      // Predicated region
      $region45: #{_lambda_.7} parent=39 // pred_check
        %p638 = pneg %p172
      $region46: #{_lambda_.7} parent=39 // pred_check_branch
        %640 = sbr.rel (%p638) target = $region48
      $region47: #{_lambda_.7} parent=39 // pred_region
        _
      $region48: #{_lambda_.7} parent=39 // pred_fallthru
        _
    $region40: #{_lambda_.7} parent=5 // pred_fallthru
      _
    %p641 = scmp.le.s32.totalorder 2, %s13
    // Predicated region
    $region49: #{_lambda_.7} parent=5 // pred_check
      %p642 = pneg %p641
    $region50: #{_lambda_.7} parent=5 // pred_check_branch
      %644 = sbr.rel (%p642) target = $region52
    $region51: #{_lambda_.7} parent=5 // pred_region
      %s645 = ssub.s32 %s13, 2
      // Predicated region
      $region53: #{_lambda_.7} parent=51 // pred_check
        %p646 = pneg %p152
      $region54: #{_lambda_.7} parent=51 // pred_check_branch
        %648 = sbr.rel (%p646) target = $region56
      $region55: #{_lambda_.7} parent=51 // pred_region
        %p649 = scmp.lt.s32.totalorder %s19, 1
        %s650 = scalar_select %p649, %s19, 1
        %s651 = smul.addr %s650, 8
        %s652 = scalar_lea.vmem %s5, %s651
      $region56: #{_lambda_.7} parent=51 // pred_fallthru
        _
      // Predicated region
      $region57: #{_lambda_.7} parent=51 // pred_check
        %p653 = pneg %p178
      $region58: #{_lambda_.7} parent=51 // pred_check_branch
        %655 = sbr.rel (%p653) target = $region60
      $region59: #{_lambda_.7} parent=51 // pred_region
        %p656 = scmp.lt.s32.totalorder %s19, 1
        %s657 = scalar_select %p656, %s19, 1
        %s658 = smul.addr %s657, 2
        %s659 = scalar_lea.vmem %s6, %s658
      $region60: #{_lambda_.7} parent=51 // pred_fallthru
        _
    $region52: #{_lambda_.7} parent=5 // pred_fallthru
      _
  $region6: #{_lambda_.7} parent=0 // loop_footer
    %s17 = sadd.s32 1, %s13
  $region7: #{_lambda_.7} parent=0 // loop_footer_branch
    %12 = sbr.rel target = $region3
  $region8: #{_lambda_.7} parent=0 // loop_exit
    _

// kernel: tile.126
$region0: #{tile.126}
  #allocation0 [shape = 's32[1]{0}', space=sflag, size = 0x4, scoped, tag = 'scoped memory for tile.126']
  %s0 = inlined_call_operand.vmem [shape: f32[3], index: 0, kind: input, shape index: {}]
  %s1 = inlined_call_operand.vmem [shape: f32[8,3], index: 1, kind: output, shape index: {}]
  // Predicated region
  $region2: #{tile.126} parent=0 // pred_check
    _
  $region3: #{tile.126} parent=0 // pred_check_branch
    %3 = sbr.rel (0) target = $region5
  $region4: #{tile.126} parent=0 // pred_region
    _
  $region5: #{tile.126} parent=0 // pred_fallthru
    _
  %v4 = vld [vmem:[%s0] ss:$0 sm:$0xff]
  %5 = vst [vmem:[%s1] sm:$0xff] %v4

// kernel: _lambda_.5
$region0: #{_lambda_.5}
  #allocation0 [shape = 'u32[]', space=smem, size = 0x4, offset = 0x4, fixed_abs, tag = 'smem constant byte address 0x4 - core index']
  #allocation1 [shape = 'u32[144,128]{1,0:T(1,128)}', space=vmem, size = 0x12000, scoped, tag = 'internal scratch']
  #allocation2 [shape = 'f32[22,48]{1,0:T(8,128)}', space=vmem, size = 0x3000, scoped, tag = 'scratch operand']
  %s0 = inlined_call_operand.vmem [shape: f32[2,16,48], index: 0, kind: input, shape index: {}]
  %s1 = inlined_call_operand.vmem [shape: f32[1,48], index: 1, kind: input, shape index: {}]
  %s2 = inlined_call_operand.vmem [shape: f32[1,48], index: 2, kind: input, shape index: {}]
  %s3 = inlined_call_operand.vmem [shape: bf16[8,16], index: 3, kind: input, shape index: {}]
  %s4 = inlined_call_operand.vmem [shape: bf16[48,24], index: 4, kind: input, shape index: {}]
  %s5 = inlined_call_operand.vmem [shape: bf16[7,48,256], index: 5, kind: input, shape index: {}]
  %s6 = inlined_call_operand.vmem [shape: f32[1,256], index: 6, kind: input, shape index: {}]
  %s7 = inlined_call_operand.vmem [shape: bf16[256,256], index: 7, kind: input, shape index: {}]
  %s8 = inlined_call_operand.vmem [shape: f32[1,256], index: 8, kind: input, shape index: {}]
  %s9 = inlined_call_operand.vmem [shape: f32[2,16,256], index: 9, kind: output, shape index: {0}]
  %s10 = inlined_call_operand.vmem [shape: f32[2,2,256], index: 10, kind: output, shape index: {1}]
  %s11 = inlined_call_operand.vmem [shape: f32[2,8,24], index: 11, kind: output, shape index: {2}]
  %12 = xla_tuple %s9, %s10, %s11
  %s13 = sld [smem:[#allocation0]]
  $region85: #{_lambda_.5} parent=0
    _
  %s15 = ssub.s32 1, %s13
  %s16 = scalar_select 0, %s15, %s13
  loop: start=0, step=1, limit=4
  $region2: #{_lambda_.5} parent=0 // loop_pre_header
    _
  $region3: #{_lambda_.5} parent=0 // loop_header
    %s18 = sphi 0, %s22
    %p19 = scmp.ge.s32.totalorder %s18, 4
    %s28 = sphi 0, %s30
    %s31 = sphi 0, %s28
    %s32 = sphi 0, %s31
    %s48 = sphi 0, %s32
    %s52 = sphi 0, %s52
    %s54 = sphi 0, %s52
    %s55 = sphi 0, %s54
    %s69 = sphi 0, %s55
    %s73 = sphi 0, %s73
    %s75 = sphi 0, %s73
    %s76 = sphi 0, %s75
    %s90 = sphi 0, %s76
    %s94 = sphi 0, %s94
    %s96 = sphi 0, %s94
    %s97 = sphi 0, %s96
    %s111 = sphi 0, %s97
    %s115 = sphi 0, %s115
    %s117 = sphi 0, %s115
    %s118 = sphi 0, %s117
    %s132 = sphi 0, %s118
    %s136 = sphi 0, %s136
    %s138 = sphi 0, %s136
    %s139 = sphi 0, %s138
    %s153 = sphi 0, %s139
    %s157 = sphi 0, %s157
    %s159 = sphi 0, %s157
    %s160 = sphi 0, %s159
    %s174 = sphi 0, %s160
    %s178 = sphi 0, %s178
    %s180 = sphi 0, %s178
    %s181 = sphi 0, %s180
    %s195 = sphi 0, %s181
    %s199 = sphi 0, %s199
    %s201 = sphi 0, %s199
    %s202 = sphi 0, %s201
    %s216 = sphi 0, %s202
    %s222 = sphi 0, %s224
    %s225 = sphi 0, %s222
    %s226 = sphi 0, %s225
    %s242 = sphi 0, %s226
    %s248 = sphi 0, %s250
    %s251 = sphi 0, %s248
    %s252 = sphi 0, %s251
    %s268 = sphi 0, %s252
    %s274 = sphi 0, %s276
    %s277 = sphi 0, %s274
    %s278 = sphi 0, %s277
    %s294 = sphi 0, %s278
  $region4: #{_lambda_.5} parent=0 // loop_header_branch
    %21 = sbr.rel (%p19) target = $region8
  $region5: #{_lambda_.5} parent=0 // loop_body
    %s23 = ssub.s32 %s18, 1
    %s24 = ssub.s32 %s18, 2
    %s25 = sadd.s32 %s18, 1
    %s26 = ssub.s32 %s18, %s25
    %p27 = scmp.eq.s32.totalorder %s26, 0
    %s29 = sadd.s32 %s28, 1
    %s30 = scalar_select %p27, %s28, %s29
    %p33 = pneg %p27
    %p34 = scmp.eq.s32.totalorder %s18, 1
    %p35 = por %p33, %p34
    %p36 = scmp.ne.s32.totalorder %s28, %s31
    %p37 = scmp.eq.s32.totalorder %s18, 0
    %p38 = por %p36, %p37
    %p39 = scmp.ne.s32.totalorder %s28, %s31
    %p40 = scmp.eq.s32.totalorder %s23, 1
    %p41 = por %p39, %p40
    %p42 = scmp.ne.s32.totalorder %s31, %s32
    %p43 = scmp.eq.s32.totalorder %s23, 0
    %p44 = por %p42, %p43
    %p45 = scmp.ne.s32.totalorder %s31, %s32
    %p46 = scmp.eq.s32.totalorder %s24, 1
    %p47 = por %p45, %p46
    %p49 = scmp.ne.s32.totalorder %s32, %s48
    %p50 = scmp.eq.s32.totalorder %s24, 0
    %p51 = por %p49, %p50
    %s53 = sadd.s32 %s52, 1
    %p56 = scmp.eq.s32.totalorder %s18, 1
    %p57 = scmp.ne.s32.totalorder %s52, %s54
    %p58 = scmp.eq.s32.totalorder %s18, 0
    %p59 = por %p57, %p58
    %p60 = scmp.ne.s32.totalorder %s52, %s54
    %p61 = scmp.eq.s32.totalorder %s23, 1
    %p62 = por %p60, %p61
    %p63 = scmp.ne.s32.totalorder %s54, %s55
    %p64 = scmp.eq.s32.totalorder %s23, 0
    %p65 = por %p63, %p64
    %p66 = scmp.ne.s32.totalorder %s54, %s55
    %p67 = scmp.eq.s32.totalorder %s24, 1
    %p68 = por %p66, %p67
    %p70 = scmp.ne.s32.totalorder %s55, %s69
    %p71 = scmp.eq.s32.totalorder %s24, 0
    %p72 = por %p70, %p71
    %s74 = sadd.s32 %s73, 1
    %p77 = scmp.eq.s32.totalorder %s18, 1
    %p78 = scmp.ne.s32.totalorder %s73, %s75
    %p79 = scmp.eq.s32.totalorder %s18, 0
    %p80 = por %p78, %p79
    %p81 = scmp.ne.s32.totalorder %s73, %s75
    %p82 = scmp.eq.s32.totalorder %s23, 1
    %p83 = por %p81, %p82
    %p84 = scmp.ne.s32.totalorder %s75, %s76
    %p85 = scmp.eq.s32.totalorder %s23, 0
    %p86 = por %p84, %p85
    %p87 = scmp.ne.s32.totalorder %s75, %s76
    %p88 = scmp.eq.s32.totalorder %s24, 1
    %p89 = por %p87, %p88
    %p91 = scmp.ne.s32.totalorder %s76, %s90
    %p92 = scmp.eq.s32.totalorder %s24, 0
    %p93 = por %p91, %p92
    %s95 = sadd.s32 %s94, 1
    %p98 = scmp.eq.s32.totalorder %s18, 1
    %p99 = scmp.ne.s32.totalorder %s94, %s96
    %p100 = scmp.eq.s32.totalorder %s18, 0
    %p101 = por %p99, %p100
    %p102 = scmp.ne.s32.totalorder %s94, %s96
    %p103 = scmp.eq.s32.totalorder %s23, 1
    %p104 = por %p102, %p103
    %p105 = scmp.ne.s32.totalorder %s96, %s97
    %p106 = scmp.eq.s32.totalorder %s23, 0
    %p107 = por %p105, %p106
    %p108 = scmp.ne.s32.totalorder %s96, %s97
    %p109 = scmp.eq.s32.totalorder %s24, 1
    %p110 = por %p108, %p109
    %p112 = scmp.ne.s32.totalorder %s97, %s111
    %p113 = scmp.eq.s32.totalorder %s24, 0
    %p114 = por %p112, %p113
    %s116 = sadd.s32 %s115, 1
    %p119 = scmp.eq.s32.totalorder %s18, 1
    %p120 = scmp.ne.s32.totalorder %s115, %s117
    %p121 = scmp.eq.s32.totalorder %s18, 0
    %p122 = por %p120, %p121
    %p123 = scmp.ne.s32.totalorder %s115, %s117
    %p124 = scmp.eq.s32.totalorder %s23, 1
    %p125 = por %p123, %p124
    %p126 = scmp.ne.s32.totalorder %s117, %s118
    %p127 = scmp.eq.s32.totalorder %s23, 0
    %p128 = por %p126, %p127
    %p129 = scmp.ne.s32.totalorder %s117, %s118
    %p130 = scmp.eq.s32.totalorder %s24, 1
    %p131 = por %p129, %p130
    %p133 = scmp.ne.s32.totalorder %s118, %s132
    %p134 = scmp.eq.s32.totalorder %s24, 0
    %p135 = por %p133, %p134
    %s137 = sadd.s32 %s136, 1
    %p140 = scmp.eq.s32.totalorder %s18, 1
    %p141 = scmp.ne.s32.totalorder %s136, %s138
    %p142 = scmp.eq.s32.totalorder %s18, 0
    %p143 = por %p141, %p142
    %p144 = scmp.ne.s32.totalorder %s136, %s138
    %p145 = scmp.eq.s32.totalorder %s23, 1
    %p146 = por %p144, %p145
    %p147 = scmp.ne.s32.totalorder %s138, %s139
    %p148 = scmp.eq.s32.totalorder %s23, 0
    %p149 = por %p147, %p148
    %p150 = scmp.ne.s32.totalorder %s138, %s139
    %p151 = scmp.eq.s32.totalorder %s24, 1
    %p152 = por %p150, %p151
    %p154 = scmp.ne.s32.totalorder %s139, %s153
    %p155 = scmp.eq.s32.totalorder %s24, 0
    %p156 = por %p154, %p155
    %s158 = sadd.s32 %s157, 1
    %p161 = scmp.eq.s32.totalorder %s18, 1
    %p162 = scmp.ne.s32.totalorder %s157, %s159
    %p163 = scmp.eq.s32.totalorder %s18, 0
    %p164 = por %p162, %p163
    %p165 = scmp.ne.s32.totalorder %s157, %s159
    %p166 = scmp.eq.s32.totalorder %s23, 1
    %p167 = por %p165, %p166
    %p168 = scmp.ne.s32.totalorder %s159, %s160
    %p169 = scmp.eq.s32.totalorder %s23, 0
    %p170 = por %p168, %p169
    %p171 = scmp.ne.s32.totalorder %s159, %s160
    %p172 = scmp.eq.s32.totalorder %s24, 1
    %p173 = por %p171, %p172
    %p175 = scmp.ne.s32.totalorder %s160, %s174
    %p176 = scmp.eq.s32.totalorder %s24, 0
    %p177 = por %p175, %p176
    %s179 = sadd.s32 %s178, 1
    %p182 = scmp.eq.s32.totalorder %s18, 1
    %p183 = scmp.ne.s32.totalorder %s178, %s180
    %p184 = scmp.eq.s32.totalorder %s18, 0
    %p185 = por %p183, %p184
    %p186 = scmp.ne.s32.totalorder %s178, %s180
    %p187 = scmp.eq.s32.totalorder %s23, 1
    %p188 = por %p186, %p187
    %p189 = scmp.ne.s32.totalorder %s180, %s181
    %p190 = scmp.eq.s32.totalorder %s23, 0
    %p191 = por %p189, %p190
    %p192 = scmp.ne.s32.totalorder %s180, %s181
    %p193 = scmp.eq.s32.totalorder %s24, 1
    %p194 = por %p192, %p193
    %p196 = scmp.ne.s32.totalorder %s181, %s195
    %p197 = scmp.eq.s32.totalorder %s24, 0
    %p198 = por %p196, %p197
    %s200 = sadd.s32 %s199, 1
    %p203 = scmp.eq.s32.totalorder %s18, 1
    %p204 = scmp.ne.s32.totalorder %s199, %s201
    %p205 = scmp.eq.s32.totalorder %s18, 0
    %p206 = por %p204, %p205
    %p207 = scmp.ne.s32.totalorder %s199, %s201
    %p208 = scmp.eq.s32.totalorder %s23, 1
    %p209 = por %p207, %p208
    %p210 = scmp.ne.s32.totalorder %s201, %s202
    %p211 = scmp.eq.s32.totalorder %s23, 0
    %p212 = por %p210, %p211
    %p213 = scmp.ne.s32.totalorder %s201, %s202
    %p214 = scmp.eq.s32.totalorder %s24, 1
    %p215 = por %p213, %p214
    %p217 = scmp.ne.s32.totalorder %s202, %s216
    %p218 = scmp.eq.s32.totalorder %s24, 0
    %p219 = por %p217, %p218
    %s220 = ssub.s32 %s18, %s25
    %p221 = scmp.eq.s32.totalorder %s220, 0
    %s223 = sadd.s32 %s222, 1
    %s224 = scalar_select %p221, %s222, %s223
    %p227 = pneg %p221
    %p228 = scmp.eq.s32.totalorder %s18, 1
    %p229 = por %p227, %p228
    %p230 = scmp.ne.s32.totalorder %s222, %s225
    %p231 = scmp.eq.s32.totalorder %s18, 0
    %p232 = por %p230, %p231
    %p233 = scmp.ne.s32.totalorder %s222, %s225
    %p234 = scmp.eq.s32.totalorder %s23, 1
    %p235 = por %p233, %p234
    %p236 = scmp.ne.s32.totalorder %s225, %s226
    %p237 = scmp.eq.s32.totalorder %s23, 0
    %p238 = por %p236, %p237
    %p239 = scmp.ne.s32.totalorder %s225, %s226
    %p240 = scmp.eq.s32.totalorder %s24, 1
    %p241 = por %p239, %p240
    %p243 = scmp.ne.s32.totalorder %s226, %s242
    %p244 = scmp.eq.s32.totalorder %s24, 0
    %p245 = por %p243, %p244
    %s246 = ssub.s32 %s18, %s25
    %p247 = scmp.eq.s32.totalorder %s246, 0
    %s249 = sadd.s32 %s248, 1
    %s250 = scalar_select %p247, %s248, %s249
    %p253 = pneg %p247
    %p254 = scmp.eq.s32.totalorder %s18, 1
    %p255 = por %p253, %p254
    %p256 = scmp.ne.s32.totalorder %s248, %s251
    %p257 = scmp.eq.s32.totalorder %s18, 0
    %p258 = por %p256, %p257
    %p259 = scmp.ne.s32.totalorder %s248, %s251
    %p260 = scmp.eq.s32.totalorder %s23, 1
    %p261 = por %p259, %p260
    %p262 = scmp.ne.s32.totalorder %s251, %s252
    %p263 = scmp.eq.s32.totalorder %s23, 0
    %p264 = por %p262, %p263
    %p265 = scmp.ne.s32.totalorder %s251, %s252
    %p266 = scmp.eq.s32.totalorder %s24, 1
    %p267 = por %p265, %p266
    %p269 = scmp.ne.s32.totalorder %s252, %s268
    %p270 = scmp.eq.s32.totalorder %s24, 0
    %p271 = por %p269, %p270
    %s272 = ssub.s32 %s18, %s25
    %p273 = scmp.eq.s32.totalorder %s272, 0
    %s275 = sadd.s32 %s274, 1
    %s276 = scalar_select %p273, %s274, %s275
    %p279 = pneg %p273
    %p280 = scmp.eq.s32.totalorder %s18, 1
    %p281 = por %p279, %p280
    %p282 = scmp.ne.s32.totalorder %s274, %s277
    %p283 = scmp.eq.s32.totalorder %s18, 0
    %p284 = por %p282, %p283
    %p285 = scmp.ne.s32.totalorder %s274, %s277
    %p286 = scmp.eq.s32.totalorder %s23, 1
    %p287 = por %p285, %p286
    %p288 = scmp.ne.s32.totalorder %s277, %s278
    %p289 = scmp.eq.s32.totalorder %s23, 0
    %p290 = por %p288, %p289
    %p291 = scmp.ne.s32.totalorder %s277, %s278
    %p292 = scmp.eq.s32.totalorder %s24, 1
    %p293 = por %p291, %p292
    %p295 = scmp.ne.s32.totalorder %s278, %s294
    %p296 = scmp.eq.s32.totalorder %s24, 0
    %p297 = por %p295, %p296
    %p298 = scmp.le.s32.totalorder 1, %s18
    %p299 = scmp.lt.s32.totalorder %s18, 3
    %p300 = pnand %p298, %p299
    %p301 = pneg %p300
    // Predicated region
    $region9: #{_lambda_.5} parent=5 // pred_check
      _
    $region10: #{_lambda_.5} parent=5 // pred_check_branch
      %303 = sbr.rel (%p300) target = $region12
    $region11: #{_lambda_.5} parent=5 // pred_region
      %s304 = ssub.s32 %s18, 1
      // Predicated region
      $region13: #{_lambda_.5} parent=11 // pred_check
        %p305 = pneg %p65
      $region14: #{_lambda_.5} parent=11 // pred_check_branch
        %307 = sbr.rel (%p305) target = $region16
      $region15: #{_lambda_.5} parent=11 // pred_region
        _
      $region16: #{_lambda_.5} parent=11 // pred_fallthru
        _
      // Predicated region
      $region17: #{_lambda_.5} parent=11 // pred_check
        %p308 = pneg %p86
      $region18: #{_lambda_.5} parent=11 // pred_check_branch
        %310 = sbr.rel (%p308) target = $region20
      $region19: #{_lambda_.5} parent=11 // pred_region
        _
      $region20: #{_lambda_.5} parent=11 // pred_fallthru
        _
      // Predicated region
      $region21: #{_lambda_.5} parent=11 // pred_check
        %p311 = pneg %p107
      $region22: #{_lambda_.5} parent=11 // pred_check_branch
        %313 = sbr.rel (%p311) target = $region24
      $region23: #{_lambda_.5} parent=11 // pred_region
        _
      $region24: #{_lambda_.5} parent=11 // pred_fallthru
        _
      // Predicated region
      $region25: #{_lambda_.5} parent=11 // pred_check
        %p314 = pneg %p128
      $region26: #{_lambda_.5} parent=11 // pred_check_branch
        %316 = sbr.rel (%p314) target = $region28
      $region27: #{_lambda_.5} parent=11 // pred_region
        _
      $region28: #{_lambda_.5} parent=11 // pred_fallthru
        _
      // Predicated region
      $region29: #{_lambda_.5} parent=11 // pred_check
        %p317 = pneg %p149
      $region30: #{_lambda_.5} parent=11 // pred_check_branch
        %319 = sbr.rel (%p317) target = $region32
      $region31: #{_lambda_.5} parent=11 // pred_region
        _
      $region32: #{_lambda_.5} parent=11 // pred_fallthru
        _
      // Predicated region
      $region33: #{_lambda_.5} parent=11 // pred_check
        %p320 = pneg %p170
      $region34: #{_lambda_.5} parent=11 // pred_check_branch
        %322 = sbr.rel (%p320) target = $region36
      $region35: #{_lambda_.5} parent=11 // pred_region
        _
      $region36: #{_lambda_.5} parent=11 // pred_fallthru
        _
      // Predicated region
      $region37: #{_lambda_.5} parent=11 // pred_check
        %p323 = pneg %p191
      $region38: #{_lambda_.5} parent=11 // pred_check_branch
        %325 = sbr.rel (%p323) target = $region40
      $region39: #{_lambda_.5} parent=11 // pred_region
        _
      $region40: #{_lambda_.5} parent=11 // pred_fallthru
        _
      // Predicated region
      $region41: #{_lambda_.5} parent=11 // pred_check
        %p326 = pneg %p212
      $region42: #{_lambda_.5} parent=11 // pred_check_branch
        %328 = sbr.rel (%p326) target = $region44
      $region43: #{_lambda_.5} parent=11 // pred_region
        _
      $region44: #{_lambda_.5} parent=11 // pred_fallthru
        _
    $region12: #{_lambda_.5} parent=5 // pred_fallthru
      _
    %p329 = scmp.lt.s32.totalorder %s18, 2
    // Predicated region
    $region45: #{_lambda_.5} parent=5 // pred_check
      %p330 = pneg %p329
    $region46: #{_lambda_.5} parent=5 // pred_check_branch
      %332 = sbr.rel (%p330) target = $region48
    $region47: #{_lambda_.5} parent=5 // pred_region
      // Predicated region
      $region49: #{_lambda_.5} parent=47 // pred_check
        %p333 = pneg %p38
      $region50: #{_lambda_.5} parent=47 // pred_check_branch
        %335 = sbr.rel (%p333) target = $region52
      $region51: #{_lambda_.5} parent=47 // pred_region
        %p336 = scmp.lt.s32.totalorder %s18, 1
        %s337 = scalar_select %p336, %s18, 1
        %s338 = smul.addr %s337, 2
        %s339 = smul.addr %s338, 8
        %s340 = scalar_lea.vmem %s0, %s339
      $region52: #{_lambda_.5} parent=47 // pred_fallthru
        _
    $region48: #{_lambda_.5} parent=5 // pred_fallthru
      _
    %p341 = scmp.le.s32.totalorder 1, %s18
    %p342 = scmp.lt.s32.totalorder %s18, 3
    %p343 = pnand %p341, %p342
    %p344 = pneg %p343
    // Predicated region
    $region53: #{_lambda_.5} parent=5 // pred_check
      _
    $region54: #{_lambda_.5} parent=5 // pred_check_branch
      %346 = sbr.rel (%p343) target = $region56
    $region55: #{_lambda_.5} parent=5 // pred_region
      %s347 = ssub.s32 %s18, 1
      %p348 = scmp.lt.s32.totalorder %s23, 1
      %s349 = scalar_select %p348, %s23, 1
      %s350 = smul.addr %s349, 2
      %s351 = smul.addr %s350, 8
      %s352 = scalar_lea.vmem %s0, %s351
      %p353 = pneg %p44
      %p354 = pneg %p41
      %p355 = pneg %p65
      %p356 = pneg %p62
      %p357 = pneg %p86
      %p358 = pneg %p83
      %p359 = pneg %p107
      %p360 = pneg %p104
      %p361 = pneg %p128
      %p362 = pneg %p125
      %p363 = pneg %p149
      %p364 = pneg %p146
      %p365 = pneg %p170
      %p366 = pneg %p167
      %p367 = pneg %p191
      %p368 = pneg %p188
      %p369 = pneg %p212
      %p370 = pneg %p209
      %p371 = pneg %p238
      %p372 = pneg %p235
      %p373 = scmp.lt.s32.totalorder %s23, 1
      %s374 = scalar_select %p373, %s23, 1
      %s375 = smul.addr %s374, 4
      %s376 = smul.addr %s375, 8
      %s377 = scalar_lea.vmem %s9, %s376
      %p378 = pneg %p264
      %p379 = pneg %p261
      %p380 = scmp.lt.s32.totalorder %s23, 1
      %s381 = scalar_select %p380, %s23, 1
      %s382 = smul.addr %s381, 2
      %s383 = smul.addr %s382, 2
      %s384 = scalar_lea.vmem %s10, %s383
      %p385 = pneg %p290
      %p386 = pneg %p287
      %p387 = scmp.lt.s32.totalorder %s23, 1
      %s388 = scalar_select %p387, %s23, 1
      %s389 = smul.addr %s388, 8
      %s390 = scalar_lea.vmem %s11, %s389
      %p391 = scmp.lt.s32.totalorder %s23, 1
      %s392 = scalar_select %p391, %s23, 1
      %s393 = smul.addr %s392, 2
      %s394 = smul.addr %s393, 8
      %s395 = scalar_lea.vmem %s0, %s394
      %p396 = scmp.lt.s32.totalorder %s23, 1
      %s397 = scalar_select %p396, %s23, 1
      %s398 = smul.addr %s397, 4
      %s399 = smul.addr %s398, 8
      %s400 = scalar_lea.vmem %s9, %s399
      %p401 = scmp.lt.s32.totalorder %s23, 1
      %s402 = scalar_select %p401, %s23, 1
      %s403 = smul.addr %s402, 2
      %s404 = smul.addr %s403, 2
      %s405 = scalar_lea.vmem %s10, %s404
      %p406 = scmp.lt.s32.totalorder %s23, 1
      %s407 = scalar_select %p406, %s23, 1
      %s408 = smul.addr %s407, 8
      %s409 = scalar_lea.vmem %s11, %s408
      %v411 = vld [vmem:[%s395] sm:$0xff]
      %v412 = vld [vmem:[%s395 + $0x8] sm:$0xff]
      %v413 = vld [vmem:[%s1] sm:$0x1]
      %v415 = vlaneseq
      %v416 = vshrl.u32 %v415, 7
      %v417 = vsub.s32 0, %v416
      %v418 = vrot.slane %v413, %v417
      %v420 = vmul.f32 %v411, %v418
      %v421 = vmul.f32 %v412, %v418
      %v422 = vld [vmem:[%s2] sm:$0x1]
      %v424 = vlaneseq
      %v425 = vshrl.u32 %v424, 7
      %v426 = vsub.s32 0, %v425
      %v427 = vrot.slane %v422, %v426
      %v429 = vadd.f32 %v420, %v427
      %v430 = vadd.f32 %v421, %v427
      %v431 = vld [vmem:[%s3] sm:$0xf]
      %v432 = vpack.c.bf16 %v430, %v429
      %vm433 = vcmask 130048
      %v435 = vsel %vm433, %v431, 0
      %437 = vmatprep.subr.bf16.mxu0 0
      %438 = vmatpush1.bf16.msra.mxu0 %v432
      %439 = vmatprep.subr.bf16.mxu0 0
      %440 = vmatpush1.bf16.msra.mxu0 0
      %441 = vmatprep.subr.bf16.mxu0 0
      %442 = vmatpush1.bf16.msra.mxu0 0
      %443 = vmatprep.subr.bf16.mxu0 0
      %444 = vmatpush1.bf16.msra.mxu0 0
      %445 = vmatprep.subr.bf16.mxu0 0
      %446 = vmatpush1.bf16.msra.mxu0 0
      %447 = vmatprep.subr.bf16.mxu0 0
      %448 = vmatpush1.bf16.msra.mxu0 0
      %449 = vmatprep.subr.bf16.mxu0 0
      %450 = vmatpush1.bf16.msra.mxu0 0
      %451 = vmatprep.subr.bf16.mxu0 0
      %452 = vmatpush1.bf16.msra.mxu0 0
      %453 = vmatprep.subr.bf16.mxu0 0
      %454 = vmatpush1.bf16.msra.mxu0 0
      %455 = vmatprep.subr.bf16.mxu0 0
      %456 = vmatpush1.bf16.msra.mxu0 0
      %457 = vmatprep.subr.bf16.mxu0 0
      %458 = vmatpush1.bf16.msra.mxu0 0
      %459 = vmatprep.subr.bf16.mxu0 0
      %460 = vmatpush1.bf16.msra.mxu0 0
      %461 = vmatprep.subr.bf16.mxu0 0
      %462 = vmatpush1.bf16.msra.mxu0 0
      %463 = vmatprep.subr.bf16.mxu0 0
      %464 = vmatpush1.bf16.msra.mxu0 0
      %465 = vmatprep.subr.bf16.mxu0 0
      %466 = vmatpush1.bf16.msra.mxu0 0
      %467 = vmatprep.subr.bf16.mxu0 0
      %468 = vmatpush1.bf16.msra.mxu0 0
      %469 = vmatprep.mubr.bf16.mxu0 0
      %470 = vmatmul.mubr.bf16.gmra.mrb[0].mxu0 %v435
      %v471 = vpop.f32.mrb[0].mxu0
      %v472 = vadd.f32 0.0, %v471
      %v473 = vpop.f32.mrb[0].mxu0
      %v474 = vpop.f32.mrb[0].mxu0
      %v475 = vpop.f32.mrb[0].mxu0
      %476 = vdwg.mxu0
      %v477 = vpack.c.bf16 %v472, %v472
      %v478 = vld [vmem:[%s4] sm:$0xf]
      %v479 = vld [vmem:[%s4 + $0x4] sm:$0xf]
      %v480 = vld [vmem:[%s4 + $0x8] sm:$0xf]
      %v481 = vld [vmem:[%s4 + $0xc] sm:$0xf]
      %v482 = vld [vmem:[%s4 + $0x10] sm:$0xf]
      %v483 = vld [vmem:[%s4 + $0x14] sm:$0xf]
      %v490 = vunpack.c.l.b16 %v478
      %v491 = vunpack.c.l.b16 %v479
      %v492 = vunpack.c.l.b16 %v480
      %v493 = vunpack.c.l.b16 %v481
      %v494 = vunpack.c.l.b16 %v482
      %v495 = vunpack.c.l.b16 %v483
      %v496 = vpack.c.b16 %v491, %v490
      %v497 = vpack.c.b16 %v493, %v492
      %v498 = vpack.c.b16 %v495, %v494
      %vm502 = vcmask 392192
      %v504 = vsel %vm502, %v477, 0
      %506 = vmatprep.subr.bf16.mxu0 0
      %507 = vmatpush1.bf16.msra.mxu0 %v496
      %508 = vmatprep.subr.bf16.mxu0 0
      %509 = vmatpush1.bf16.msra.mxu0 %v497
      %510 = vmatprep.subr.bf16.mxu0 0
      %511 = vmatpush1.bf16.msra.mxu0 %v498
      %512 = vmatprep.subr.bf16.mxu0 0
      %513 = vmatpush1.bf16.msra.mxu0 0
      %514 = vmatprep.subr.bf16.mxu0 0
      %515 = vmatpush1.bf16.msra.mxu0 0
      %516 = vmatprep.subr.bf16.mxu0 0
      %517 = vmatpush1.bf16.msra.mxu0 0
      %518 = vmatprep.subr.bf16.mxu0 0
      %519 = vmatpush1.bf16.msra.mxu0 0
      %520 = vmatprep.subr.bf16.mxu0 0
      %521 = vmatpush1.bf16.msra.mxu0 0
      %522 = vmatprep.subr.bf16.mxu0 0
      %523 = vmatpush1.bf16.msra.mxu0 0
      %524 = vmatprep.subr.bf16.mxu0 0
      %525 = vmatpush1.bf16.msra.mxu0 0
      %526 = vmatprep.subr.bf16.mxu0 0
      %527 = vmatpush1.bf16.msra.mxu0 0
      %528 = vmatprep.subr.bf16.mxu0 0
      %529 = vmatpush1.bf16.msra.mxu0 0
      %530 = vmatprep.subr.bf16.mxu0 0
      %531 = vmatpush1.bf16.msra.mxu0 0
      %532 = vmatprep.subr.bf16.mxu0 0
      %533 = vmatpush1.bf16.msra.mxu0 0
      %534 = vmatprep.subr.bf16.mxu0 0
      %535 = vmatpush1.bf16.msra.mxu0 0
      %536 = vmatprep.subr.bf16.mxu0 0
      %537 = vmatpush1.bf16.msra.mxu0 0
      %538 = vmatprep.mubr.bf16.mxu0 0
      %539 = vmatmul.mubr.bf16.gmra.mrb[0].mxu0 %v504
      %v540 = vpop.f32.mrb[0].mxu0
      %v541 = vadd.f32 0.0, %v540
      %v542 = vpop.f32.mrb[0].mxu0
      %v543 = vpop.f32.mrb[0].mxu0
      %v544 = vpop.f32.mrb[0].mxu0
      %545 = vdwg.mxu0
      %vm546 = vcmask 195584
      %547 = vst.msk [vmem:[%s409] sm:$0xff] %vm546, %v541
      %vm548 = vcmask 387072
      %549 = vst.msk [vmem:[#allocation2] sm:$0x7] %vm548, 0.0
      %550 = vst.msk [vmem:[#allocation2 + $0x13] sm:$0x7] %vm548, 0.0
      %551 = vst.msk [vmem:[#allocation2 + $0x3] sm:$0xff] %vm502, %v429
      %552 = vst.msk [vmem:[#allocation2 + $0xb] sm:$0xff] %vm502, %v430
      %v553 = vld [vmem:[#allocation2] sm:$0xff]
      %v554 = vld [vmem:[#allocation2 + $0x8] sm:$0xff]
      %v555 = vpack.c.bf16 %v554, %v553
      %v556 = vld [vmem:[%s5] sm:$0xff]
      %v557 = vld [vmem:[%s5 + $0x8] sm:$0xff]
      %v558 = vld [vmem:[%s5 + $0x10] sm:$0xff]
      %v559 = vld [vmem:[%s5 + $0x18] sm:$0xff]
      %v560 = vld [vmem:[%s5 + $0x20] sm:$0xff]
      %v561 = vld [vmem:[%s5 + $0x28] sm:$0xff]
      %v562 = vld [vmem:[#allocation2 + $0x1] sm:$0xff]
      %v563 = vld [vmem:[#allocation2 + $0x9] sm:$0xff]
      %v564 = vpack.c.bf16 %v563, %v562
      %s565 = scalar_lea.vmem %s5, 48
      %v566 = vld [vmem:[%s565] sm:$0xff]
      %v567 = vld [vmem:[%s565 + $0x8] sm:$0xff]
      %v568 = vld [vmem:[%s565 + $0x10] sm:$0xff]
      %v569 = vld [vmem:[%s565 + $0x18] sm:$0xff]
      %v570 = vld [vmem:[%s565 + $0x20] sm:$0xff]
      %v571 = vld [vmem:[%s565 + $0x28] sm:$0xff]
      %v578 = vunpack.c.l.b16 %v566
      %v579 = vunpack.c.h.b16 %v566
      %v580 = vunpack.c.l.b16 %v567
      %v581 = vunpack.c.h.b16 %v567
      %v582 = vunpack.c.l.b16 %v568
      %v583 = vunpack.c.h.b16 %v568
      %v584 = vunpack.c.l.b16 %v569
      %v585 = vunpack.c.h.b16 %v569
      %v586 = vunpack.c.l.b16 %v570
      %v587 = vunpack.c.h.b16 %v570
      %v588 = vunpack.c.l.b16 %v571
      %v589 = vunpack.c.h.b16 %v571
      %v590 = vpack.c.b16 %v580, %v578
      %v591 = vpack.c.b16 %v581, %v579
      %v592 = vpack.c.b16 %v584, %v582
      %v593 = vpack.c.b16 %v585, %v583
      %v594 = vpack.c.b16 %v588, %v586
      %v595 = vpack.c.b16 %v589, %v587
      %v603 = vsel %vm502, %v564, 0
      %605 = vmatprep.subr.bf16.mxu0 %v591
      %606 = vmatpush1.bf16.msra.mxu0 %v590
      %607 = vmatprep.subr.bf16.mxu0 %v593
      %608 = vmatpush1.bf16.msra.mxu0 %v592
      %609 = vmatprep.subr.bf16.mxu0 %v595
      %610 = vmatpush1.bf16.msra.mxu0 %v594
      %611 = vmatprep.subr.bf16.mxu0 0
      %612 = vmatpush1.bf16.msra.mxu0 0
      %613 = vmatprep.subr.bf16.mxu0 0
      %614 = vmatpush1.bf16.msra.mxu0 0
      %615 = vmatprep.subr.bf16.mxu0 0
      %616 = vmatpush1.bf16.msra.mxu0 0
      %617 = vmatprep.subr.bf16.mxu0 0
      %618 = vmatpush1.bf16.msra.mxu0 0
      %619 = vmatprep.subr.bf16.mxu0 0
      %620 = vmatpush1.bf16.msra.mxu0 0
      %621 = vmatprep.subr.bf16.mxu0 0
      %622 = vmatpush1.bf16.msra.mxu0 0
      %623 = vmatprep.subr.bf16.mxu0 0
      %624 = vmatpush1.bf16.msra.mxu0 0
      %625 = vmatprep.subr.bf16.mxu0 0
      %626 = vmatpush1.bf16.msra.mxu0 0
      %627 = vmatprep.subr.bf16.mxu0 0
      %628 = vmatpush1.bf16.msra.mxu0 0
      %629 = vmatprep.subr.bf16.mxu0 0
      %630 = vmatpush1.bf16.msra.mxu0 0
      %631 = vmatprep.subr.bf16.mxu0 0
      %632 = vmatpush1.bf16.msra.mxu0 0
      %633 = vmatprep.subr.bf16.mxu0 0
      %634 = vmatpush1.bf16.msra.mxu0 0
      %635 = vmatprep.subr.bf16.mxu0 0
      %636 = vmatpush1.bf16.msra.mxu0 0
      %637 = vmatprep.mubr.bf16.mxu0 0
      %638 = vmatmul.mubr.bf16.gmra.mrb[0].mxu0 %v603
      %v639 = vpop.f32.mrb[0].mxu0
      %v640 = vadd.f32 0.0, %v639
      %v641 = vpop.f32.mrb[0].mxu0
      %v642 = vadd.f32 0.0, %v641
      %v643 = vpop.f32.mrb[0].mxu0
      %v644 = vadd.f32 0.0, %v643
      %v645 = vpop.f32.mrb[0].mxu0
      %v646 = vadd.f32 0.0, %v645
      %647 = vdwg.mxu0
      %v654 = vunpack.c.l.b16 %v556
      %v655 = vunpack.c.h.b16 %v556
      %v656 = vunpack.c.l.b16 %v557
      %v657 = vunpack.c.h.b16 %v557
      %v658 = vunpack.c.l.b16 %v558
      %v659 = vunpack.c.h.b16 %v558
      %v660 = vunpack.c.l.b16 %v559
      %v661 = vunpack.c.h.b16 %v559
      %v662 = vunpack.c.l.b16 %v560
      %v663 = vunpack.c.h.b16 %v560
      %v664 = vunpack.c.l.b16 %v561
      %v665 = vunpack.c.h.b16 %v561
      %v666 = vpack.c.b16 %v656, %v654
      %v667 = vpack.c.b16 %v657, %v655
      %v668 = vpack.c.b16 %v660, %v658
      %v669 = vpack.c.b16 %v661, %v659
      %v670 = vpack.c.b16 %v664, %v662
      %v671 = vpack.c.b16 %v665, %v663
      %v679 = vsel %vm502, %v555, 0
      %681 = vmatprep.subr.bf16.mxu0 %v667
      %682 = vmatpush1.bf16.msra.mxu0 %v666
      %683 = vmatprep.subr.bf16.mxu0 %v669
      %684 = vmatpush1.bf16.msra.mxu0 %v668
      %685 = vmatprep.subr.bf16.mxu0 %v671
      %686 = vmatpush1.bf16.msra.mxu0 %v670
      %687 = vmatprep.subr.bf16.mxu0 0
      %688 = vmatpush1.bf16.msra.mxu0 0
      %689 = vmatprep.subr.bf16.mxu0 0
      %690 = vmatpush1.bf16.msra.mxu0 0
      %691 = vmatprep.subr.bf16.mxu0 0
      %692 = vmatpush1.bf16.msra.mxu0 0
      %693 = vmatprep.subr.bf16.mxu0 0
      %694 = vmatpush1.bf16.msra.mxu0 0
      %695 = vmatprep.subr.bf16.mxu0 0
      %696 = vmatpush1.bf16.msra.mxu0 0
      %697 = vmatprep.subr.bf16.mxu0 0
      %698 = vmatpush1.bf16.msra.mxu0 0
      %699 = vmatprep.subr.bf16.mxu0 0
      %700 = vmatpush1.bf16.msra.mxu0 0
      %701 = vmatprep.subr.bf16.mxu0 0
      %702 = vmatpush1.bf16.msra.mxu0 0
      %703 = vmatprep.subr.bf16.mxu0 0
      %704 = vmatpush1.bf16.msra.mxu0 0
      %705 = vmatprep.subr.bf16.mxu0 0
      %706 = vmatpush1.bf16.msra.mxu0 0
      %707 = vmatprep.subr.bf16.mxu0 0
      %708 = vmatpush1.bf16.msra.mxu0 0
      %709 = vmatprep.subr.bf16.mxu0 0
      %710 = vmatpush1.bf16.msra.mxu0 0
      %711 = vmatprep.subr.bf16.mxu0 0
      %712 = vmatpush1.bf16.msra.mxu0 0
      %713 = vmatprep.mubr.bf16.mxu0 0
      %714 = vmatmul.mubr.bf16.gmra.mrb[0].mxu0 %v679
      %v715 = vpop.f32.mrb[0].mxu0
      %v716 = vadd.f32 %v640, %v715
      %v717 = vpop.f32.mrb[0].mxu0
      %v718 = vadd.f32 %v642, %v717
      %v719 = vpop.f32.mrb[0].mxu0
      %v720 = vadd.f32 %v644, %v719
      %v721 = vpop.f32.mrb[0].mxu0
      %v722 = vadd.f32 %v646, %v721
      %723 = vdwg.mxu0
      %v724 = vld [vmem:[#allocation2 + $0x2] sm:$0xff]
      %v725 = vld [vmem:[#allocation2 + $0xa] sm:$0xff]
      %v726 = vpack.c.bf16 %v725, %v724
      %s727 = scalar_lea.vmem %s5, 96
      %v728 = vld [vmem:[%s727] sm:$0xff]
      %v729 = vld [vmem:[%s727 + $0x8] sm:$0xff]
      %v730 = vld [vmem:[%s727 + $0x10] sm:$0xff]
      %v731 = vld [vmem:[%s727 + $0x18] sm:$0xff]
      %v732 = vld [vmem:[%s727 + $0x20] sm:$0xff]
      %v733 = vld [vmem:[%s727 + $0x28] sm:$0xff]
      %v740 = vunpack.c.l.b16 %v728
      %v741 = vunpack.c.h.b16 %v728
      %v742 = vunpack.c.l.b16 %v729
      %v743 = vunpack.c.h.b16 %v729
      %v744 = vunpack.c.l.b16 %v730
      %v745 = vunpack.c.h.b16 %v730
      %v746 = vunpack.c.l.b16 %v731
      %v747 = vunpack.c.h.b16 %v731
      %v748 = vunpack.c.l.b16 %v732
      %v749 = vunpack.c.h.b16 %v732
      %v750 = vunpack.c.l.b16 %v733
      %v751 = vunpack.c.h.b16 %v733
      %v752 = vpack.c.b16 %v742, %v740
      %v753 = vpack.c.b16 %v743, %v741
      %v754 = vpack.c.b16 %v746, %v744
      %v755 = vpack.c.b16 %v747, %v745
      %v756 = vpack.c.b16 %v750, %v748
      %v757 = vpack.c.b16 %v751, %v749
      %v765 = vsel %vm502, %v726, 0
      %767 = vmatprep.subr.bf16.mxu0 %v753
      %768 = vmatpush1.bf16.msra.mxu0 %v752
      %769 = vmatprep.subr.bf16.mxu0 %v755
      %770 = vmatpush1.bf16.msra.mxu0 %v754
      %771 = vmatprep.subr.bf16.mxu0 %v757
      %772 = vmatpush1.bf16.msra.mxu0 %v756
      %773 = vmatprep.subr.bf16.mxu0 0
      %774 = vmatpush1.bf16.msra.mxu0 0
      %775 = vmatprep.subr.bf16.mxu0 0
      %776 = vmatpush1.bf16.msra.mxu0 0
      %777 = vmatprep.subr.bf16.mxu0 0
      %778 = vmatpush1.bf16.msra.mxu0 0
      %779 = vmatprep.subr.bf16.mxu0 0
      %780 = vmatpush1.bf16.msra.mxu0 0
      %781 = vmatprep.subr.bf16.mxu0 0
      %782 = vmatpush1.bf16.msra.mxu0 0
      %783 = vmatprep.subr.bf16.mxu0 0
      %784 = vmatpush1.bf16.msra.mxu0 0
      %785 = vmatprep.subr.bf16.mxu0 0
      %786 = vmatpush1.bf16.msra.mxu0 0
      %787 = vmatprep.subr.bf16.mxu0 0
      %788 = vmatpush1.bf16.msra.mxu0 0
      %789 = vmatprep.subr.bf16.mxu0 0
      %790 = vmatpush1.bf16.msra.mxu0 0
      %791 = vmatprep.subr.bf16.mxu0 0
      %792 = vmatpush1.bf16.msra.mxu0 0
      %793 = vmatprep.subr.bf16.mxu0 0
      %794 = vmatpush1.bf16.msra.mxu0 0
      %795 = vmatprep.subr.bf16.mxu0 0
      %796 = vmatpush1.bf16.msra.mxu0 0
      %797 = vmatprep.subr.bf16.mxu0 0
      %798 = vmatpush1.bf16.msra.mxu0 0
      %799 = vmatprep.mubr.bf16.mxu0 0
      %800 = vmatmul.mubr.bf16.gmra.mrb[0].mxu0 %v765
      %v801 = vpop.f32.mrb[0].mxu0
      %v802 = vadd.f32 0.0, %v801
      %v803 = vpop.f32.mrb[0].mxu0
      %v804 = vadd.f32 0.0, %v803
      %v805 = vpop.f32.mrb[0].mxu0
      %v806 = vadd.f32 0.0, %v805
      %v807 = vpop.f32.mrb[0].mxu0
      %v808 = vadd.f32 0.0, %v807
      %809 = vdwg.mxu0
      %v810 = vadd.f32 %v716, %v802
      %v811 = vadd.f32 %v718, %v804
      %v812 = vadd.f32 %v720, %v806
      %v813 = vadd.f32 %v722, %v808
      %v814 = vld [vmem:[#allocation2 + $0x3] sm:$0xff]
      %v815 = vld [vmem:[#allocation2 + $0xb] sm:$0xff]
      %v816 = vpack.c.bf16 %v815, %v814
      %s817 = scalar_lea.vmem %s5, 144
      %v818 = vld [vmem:[%s817] sm:$0xff]
      %v819 = vld [vmem:[%s817 + $0x8] sm:$0xff]
      %v820 = vld [vmem:[%s817 + $0x10] sm:$0xff]
      %v821 = vld [vmem:[%s817 + $0x18] sm:$0xff]
      %v822 = vld [vmem:[%s817 + $0x20] sm:$0xff]
      %v823 = vld [vmem:[%s817 + $0x28] sm:$0xff]
      %v830 = vunpack.c.l.b16 %v818
      %v831 = vunpack.c.h.b16 %v818
      %v832 = vunpack.c.l.b16 %v819
      %v833 = vunpack.c.h.b16 %v819
      %v834 = vunpack.c.l.b16 %v820
      %v835 = vunpack.c.h.b16 %v820
      %v836 = vunpack.c.l.b16 %v821
      %v837 = vunpack.c.h.b16 %v821
      %v838 = vunpack.c.l.b16 %v822
      %v839 = vunpack.c.h.b16 %v822
      %v840 = vunpack.c.l.b16 %v823
      %v841 = vunpack.c.h.b16 %v823
      %v842 = vpack.c.b16 %v832, %v830
      %v843 = vpack.c.b16 %v833, %v831
      %v844 = vpack.c.b16 %v836, %v834
      %v845 = vpack.c.b16 %v837, %v835
      %v846 = vpack.c.b16 %v840, %v838
      %v847 = vpack.c.b16 %v841, %v839
      %v855 = vsel %vm502, %v816, 0
      %857 = vmatprep.subr.bf16.mxu0 %v843
      %858 = vmatpush1.bf16.msra.mxu0 %v842
      %859 = vmatprep.subr.bf16.mxu0 %v845
      %860 = vmatpush1.bf16.msra.mxu0 %v844
      %861 = vmatprep.subr.bf16.mxu0 %v847
      %862 = vmatpush1.bf16.msra.mxu0 %v846
      %863 = vmatprep.subr.bf16.mxu0 0
      %864 = vmatpush1.bf16.msra.mxu0 0
      %865 = vmatprep.subr.bf16.mxu0 0
      %866 = vmatpush1.bf16.msra.mxu0 0
      %867 = vmatprep.subr.bf16.mxu0 0
      %868 = vmatpush1.bf16.msra.mxu0 0
      %869 = vmatprep.subr.bf16.mxu0 0
      %870 = vmatpush1.bf16.msra.mxu0 0
      %871 = vmatprep.subr.bf16.mxu0 0
      %872 = vmatpush1.bf16.msra.mxu0 0
      %873 = vmatprep.subr.bf16.mxu0 0
      %874 = vmatpush1.bf16.msra.mxu0 0
      %875 = vmatprep.subr.bf16.mxu0 0
      %876 = vmatpush1.bf16.msra.mxu0 0
      %877 = vmatprep.subr.bf16.mxu0 0
      %878 = vmatpush1.bf16.msra.mxu0 0
      %879 = vmatprep.subr.bf16.mxu0 0
      %880 = vmatpush1.bf16.msra.mxu0 0
      %881 = vmatprep.subr.bf16.mxu0 0
      %882 = vmatpush1.bf16.msra.mxu0 0
      %883 = vmatprep.subr.bf16.mxu0 0
      %884 = vmatpush1.bf16.msra.mxu0 0
      %885 = vmatprep.subr.bf16.mxu0 0
      %886 = vmatpush1.bf16.msra.mxu0 0
      %887 = vmatprep.subr.bf16.mxu0 0
      %888 = vmatpush1.bf16.msra.mxu0 0
      %889 = vmatprep.mubr.bf16.mxu0 0
      %890 = vmatmul.mubr.bf16.gmra.mrb[0].mxu0 %v855
      %v891 = vpop.f32.mrb[0].mxu0
      %v892 = vadd.f32 0.0, %v891
      %v893 = vpop.f32.mrb[0].mxu0
      %v894 = vadd.f32 0.0, %v893
      %v895 = vpop.f32.mrb[0].mxu0
      %v896 = vadd.f32 0.0, %v895
      %v897 = vpop.f32.mrb[0].mxu0
      %v898 = vadd.f32 0.0, %v897
      %899 = vdwg.mxu0
      %v900 = vadd.f32 %v810, %v892
      %v901 = vadd.f32 %v811, %v894
      %v902 = vadd.f32 %v812, %v896
      %v903 = vadd.f32 %v813, %v898
      %v904 = vld [vmem:[#allocation2 + $0x4] sm:$0xff]
      %v905 = vld [vmem:[#allocation2 + $0xc] sm:$0xff]
      %v906 = vpack.c.bf16 %v905, %v904
      %s907 = scalar_lea.vmem %s5, 192
      %v908 = vld [vmem:[%s907] sm:$0xff]
      %v909 = vld [vmem:[%s907 + $0x8] sm:$0xff]
      %v910 = vld [vmem:[%s907 + $0x10] sm:$0xff]
      %v911 = vld [vmem:[%s907 + $0x18] sm:$0xff]
      %v912 = vld [vmem:[%s907 + $0x20] sm:$0xff]
      %v913 = vld [vmem:[%s907 + $0x28] sm:$0xff]
      %v920 = vunpack.c.l.b16 %v908
      %v921 = vunpack.c.h.b16 %v908
      %v922 = vunpack.c.l.b16 %v909
      %v923 = vunpack.c.h.b16 %v909
      %v924 = vunpack.c.l.b16 %v910
      %v925 = vunpack.c.h.b16 %v910
      %v926 = vunpack.c.l.b16 %v911
      %v927 = vunpack.c.h.b16 %v911
      %v928 = vunpack.c.l.b16 %v912
      %v929 = vunpack.c.h.b16 %v912
      %v930 = vunpack.c.l.b16 %v913
      %v931 = vunpack.c.h.b16 %v913
      %v932 = vpack.c.b16 %v922, %v920
      %v933 = vpack.c.b16 %v923, %v921
      %v934 = vpack.c.b16 %v926, %v924
      %v935 = vpack.c.b16 %v927, %v925
      %v936 = vpack.c.b16 %v930, %v928
      %v937 = vpack.c.b16 %v931, %v929
      %v945 = vsel %vm502, %v906, 0
      %947 = vmatprep.subr.bf16.mxu0 %v933
      %948 = vmatpush1.bf16.msra.mxu0 %v932
      %949 = vmatprep.subr.bf16.mxu0 %v935
      %950 = vmatpush1.bf16.msra.mxu0 %v934
      %951 = vmatprep.subr.bf16.mxu0 %v937
      %952 = vmatpush1.bf16.msra.mxu0 %v936
      %953 = vmatprep.subr.bf16.mxu0 0
      %954 = vmatpush1.bf16.msra.mxu0 0
      %955 = vmatprep.subr.bf16.mxu0 0
      %956 = vmatpush1.bf16.msra.mxu0 0
      %957 = vmatprep.subr.bf16.mxu0 0
      %958 = vmatpush1.bf16.msra.mxu0 0
      %959 = vmatprep.subr.bf16.mxu0 0
      %960 = vmatpush1.bf16.msra.mxu0 0
      %961 = vmatprep.subr.bf16.mxu0 0
      %962 = vmatpush1.bf16.msra.mxu0 0
      %963 = vmatprep.subr.bf16.mxu0 0
      %964 = vmatpush1.bf16.msra.mxu0 0
      %965 = vmatprep.subr.bf16.mxu0 0
      %966 = vmatpush1.bf16.msra.mxu0 0
      %967 = vmatprep.subr.bf16.mxu0 0
      %968 = vmatpush1.bf16.msra.mxu0 0
      %969 = vmatprep.subr.bf16.mxu0 0
      %970 = vmatpush1.bf16.msra.mxu0 0
      %971 = vmatprep.subr.bf16.mxu0 0
      %972 = vmatpush1.bf16.msra.mxu0 0
      %973 = vmatprep.subr.bf16.mxu0 0
      %974 = vmatpush1.bf16.msra.mxu0 0
      %975 = vmatprep.subr.bf16.mxu0 0
      %976 = vmatpush1.bf16.msra.mxu0 0
      %977 = vmatprep.subr.bf16.mxu0 0
      %978 = vmatpush1.bf16.msra.mxu0 0
      %979 = vmatprep.mubr.bf16.mxu0 0
      %980 = vmatmul.mubr.bf16.gmra.mrb[0].mxu0 %v945
      %v981 = vpop.f32.mrb[0].mxu0
      %v982 = vadd.f32 0.0, %v981
      %v983 = vpop.f32.mrb[0].mxu0
      %v984 = vadd.f32 0.0, %v983
      %v985 = vpop.f32.mrb[0].mxu0
      %v986 = vadd.f32 0.0, %v985
      %v987 = vpop.f32.mrb[0].mxu0
      %v988 = vadd.f32 0.0, %v987
      %989 = vdwg.mxu0
      %v990 = vadd.f32 %v900, %v982
      %v991 = vadd.f32 %v901, %v984
      %v992 = vadd.f32 %v902, %v986
      %v993 = vadd.f32 %v903, %v988
      %v994 = vld [vmem:[#allocation2 + $0x5] sm:$0xff]
      %v995 = vld [vmem:[#allocation2 + $0xd] sm:$0xff]
      %v996 = vpack.c.bf16 %v995, %v994
      %s997 = scalar_lea.vmem %s5, 240
      %v998 = vld [vmem:[%s997] sm:$0xff]
      %v999 = vld [vmem:[%s997 + $0x8] sm:$0xff]
      %v1000 = vld [vmem:[%s997 + $0x10] sm:$0xff]
      %v1001 = vld [vmem:[%s997 + $0x18] sm:$0xff]
      %v1002 = vld [vmem:[%s997 + $0x20] sm:$0xff]
      %v1003 = vld [vmem:[%s997 + $0x28] sm:$0xff]
      %v1010 = vunpack.c.l.b16 %v998
      %v1011 = vunpack.c.h.b16 %v998
      %v1012 = vunpack.c.l.b16 %v999
      %v1013 = vunpack.c.h.b16 %v999
      %v1014 = vunpack.c.l.b16 %v1000
      %v1015 = vunpack.c.h.b16 %v1000
      %v1016 = vunpack.c.l.b16 %v1001
      %v1017 = vunpack.c.h.b16 %v1001
      %v1018 = vunpack.c.l.b16 %v1002
      %v1019 = vunpack.c.h.b16 %v1002
      %v1020 = vunpack.c.l.b16 %v1003
      %v1021 = vunpack.c.h.b16 %v1003
      %v1022 = vpack.c.b16 %v1012, %v1010
      %v1023 = vpack.c.b16 %v1013, %v1011
      %v1024 = vpack.c.b16 %v1016, %v1014
      %v1025 = vpack.c.b16 %v1017, %v1015
      %v1026 = vpack.c.b16 %v1020, %v1018
      %v1027 = vpack.c.b16 %v1021, %v1019
      %v1035 = vsel %vm502, %v996, 0
      %1037 = vmatprep.subr.bf16.mxu0 %v1023
      %1038 = vmatpush1.bf16.msra.mxu0 %v1022
      %1039 = vmatprep.subr.bf16.mxu0 %v1025
      %1040 = vmatpush1.bf16.msra.mxu0 %v1024
      %1041 = vmatprep.subr.bf16.mxu0 %v1027
      %1042 = vmatpush1.bf16.msra.mxu0 %v1026
      %1043 = vmatprep.subr.bf16.mxu0 0
      %1044 = vmatpush1.bf16.msra.mxu0 0
      %1045 = vmatprep.subr.bf16.mxu0 0
      %1046 = vmatpush1.bf16.msra.mxu0 0
      %1047 = vmatprep.subr.bf16.mxu0 0
      %1048 = vmatpush1.bf16.msra.mxu0 0
      %1049 = vmatprep.subr.bf16.mxu0 0
      %1050 = vmatpush1.bf16.msra.mxu0 0
      %1051 = vmatprep.subr.bf16.mxu0 0
      %1052 = vmatpush1.bf16.msra.mxu0 0
      %1053 = vmatprep.subr.bf16.mxu0 0
      %1054 = vmatpush1.bf16.msra.mxu0 0
      %1055 = vmatprep.subr.bf16.mxu0 0
      %1056 = vmatpush1.bf16.msra.mxu0 0
      %1057 = vmatprep.subr.bf16.mxu0 0
      %1058 = vmatpush1.bf16.msra.mxu0 0
      %1059 = vmatprep.subr.bf16.mxu0 0
      %1060 = vmatpush1.bf16.msra.mxu0 0
      %1061 = vmatprep.subr.bf16.mxu0 0
      %1062 = vmatpush1.bf16.msra.mxu0 0
      %1063 = vmatprep.subr.bf16.mxu0 0
      %1064 = vmatpush1.bf16.msra.mxu0 0
      %1065 = vmatprep.subr.bf16.mxu0 0
      %1066 = vmatpush1.bf16.msra.mxu0 0
      %1067 = vmatprep.subr.bf16.mxu0 0
      %1068 = vmatpush1.bf16.msra.mxu0 0
      %1069 = vmatprep.mubr.bf16.mxu0 0
      %1070 = vmatmul.mubr.bf16.gmra.mrb[0].mxu0 %v1035
      %v1071 = vpop.f32.mrb[0].mxu0
      %v1072 = vadd.f32 0.0, %v1071
      %v1073 = vpop.f32.mrb[0].mxu0
      %v1074 = vadd.f32 0.0, %v1073
      %v1075 = vpop.f32.mrb[0].mxu0
      %v1076 = vadd.f32 0.0, %v1075
      %v1077 = vpop.f32.mrb[0].mxu0
      %v1078 = vadd.f32 0.0, %v1077
      %1079 = vdwg.mxu0
      %v1080 = vadd.f32 %v990, %v1072
      %v1081 = vadd.f32 %v991, %v1074
      %v1082 = vadd.f32 %v992, %v1076
      %v1083 = vadd.f32 %v993, %v1078
      %v1084 = vld [vmem:[#allocation2 + $0x6] sm:$0xff]
      %v1085 = vld [vmem:[#allocation2 + $0xe] sm:$0xff]
      %v1086 = vpack.c.bf16 %v1085, %v1084
      %s1087 = scalar_lea.vmem %s5, 288
      %v1088 = vld [vmem:[%s1087] sm:$0xff]
      %v1089 = vld [vmem:[%s1087 + $0x8] sm:$0xff]
      %v1090 = vld [vmem:[%s1087 + $0x10] sm:$0xff]
      %v1091 = vld [vmem:[%s1087 + $0x18] sm:$0xff]
      %v1092 = vld [vmem:[%s1087 + $0x20] sm:$0xff]
      %v1093 = vld [vmem:[%s1087 + $0x28] sm:$0xff]
      %v1100 = vunpack.c.l.b16 %v1088
      %v1101 = vunpack.c.h.b16 %v1088
      %v1102 = vunpack.c.l.b16 %v1089
      %v1103 = vunpack.c.h.b16 %v1089
      %v1104 = vunpack.c.l.b16 %v1090
      %v1105 = vunpack.c.h.b16 %v1090
      %v1106 = vunpack.c.l.b16 %v1091
      %v1107 = vunpack.c.h.b16 %v1091
      %v1108 = vunpack.c.l.b16 %v1092
      %v1109 = vunpack.c.h.b16 %v1092
      %v1110 = vunpack.c.l.b16 %v1093
      %v1111 = vunpack.c.h.b16 %v1093
      %v1112 = vpack.c.b16 %v1102, %v1100
      %v1113 = vpack.c.b16 %v1103, %v1101
      %v1114 = vpack.c.b16 %v1106, %v1104
      %v1115 = vpack.c.b16 %v1107, %v1105
      %v1116 = vpack.c.b16 %v1110, %v1108
      %v1117 = vpack.c.b16 %v1111, %v1109
      %v1125 = vsel %vm502, %v1086, 0
      %1127 = vmatprep.subr.bf16.mxu0 %v1113
      %1128 = vmatpush1.bf16.msra.mxu0 %v1112
      %1129 = vmatprep.subr.bf16.mxu0 %v1115
      %1130 = vmatpush1.bf16.msra.mxu0 %v1114
      %1131 = vmatprep.subr.bf16.mxu0 %v1117
      %1132 = vmatpush1.bf16.msra.mxu0 %v1116
      %1133 = vmatprep.subr.bf16.mxu0 0
      %1134 = vmatpush1.bf16.msra.mxu0 0
      %1135 = vmatprep.subr.bf16.mxu0 0
      %1136 = vmatpush1.bf16.msra.mxu0 0
      %1137 = vmatprep.subr.bf16.mxu0 0
      %1138 = vmatpush1.bf16.msra.mxu0 0
      %1139 = vmatprep.subr.bf16.mxu0 0
      %1140 = vmatpush1.bf16.msra.mxu0 0
      %1141 = vmatprep.subr.bf16.mxu0 0
      %1142 = vmatpush1.bf16.msra.mxu0 0
      %1143 = vmatprep.subr.bf16.mxu0 0
      %1144 = vmatpush1.bf16.msra.mxu0 0
      %1145 = vmatprep.subr.bf16.mxu0 0
      %1146 = vmatpush1.bf16.msra.mxu0 0
      %1147 = vmatprep.subr.bf16.mxu0 0
      %1148 = vmatpush1.bf16.msra.mxu0 0
      %1149 = vmatprep.subr.bf16.mxu0 0
      %1150 = vmatpush1.bf16.msra.mxu0 0
      %1151 = vmatprep.subr.bf16.mxu0 0
      %1152 = vmatpush1.bf16.msra.mxu0 0
      %1153 = vmatprep.subr.bf16.mxu0 0
      %1154 = vmatpush1.bf16.msra.mxu0 0
      %1155 = vmatprep.subr.bf16.mxu0 0
      %1156 = vmatpush1.bf16.msra.mxu0 0
      %1157 = vmatprep.subr.bf16.mxu0 0
      %1158 = vmatpush1.bf16.msra.mxu0 0
      %1159 = vmatprep.mubr.bf16.mxu0 0
      %1160 = vmatmul.mubr.bf16.gmra.mrb[0].mxu0 %v1125
      %v1161 = vpop.f32.mrb[0].mxu0
      %v1162 = vadd.f32 0.0, %v1161
      %v1163 = vpop.f32.mrb[0].mxu0
      %v1164 = vadd.f32 0.0, %v1163
      %v1165 = vpop.f32.mrb[0].mxu0
      %v1166 = vadd.f32 0.0, %v1165
      %v1167 = vpop.f32.mrb[0].mxu0
      %v1168 = vadd.f32 0.0, %v1167
      %1169 = vdwg.mxu0
      %v1170 = vadd.f32 %v1080, %v1162
      %v1171 = vadd.f32 %v1081, %v1164
      %v1172 = vadd.f32 %v1082, %v1166
      %v1173 = vadd.f32 %v1083, %v1168
      %v1174 = vld [vmem:[%s6] sm:$0x3]
      %v1176 = vlaneseq
      %v1177 = vshrl.u32 %v1176, 7
      %v1178 = vsub.s32 0, %v1177
      %v1179 = vrot.slane %v1174, %v1178
      %v1180 = vlaneseq
      %v1181 = vshrl.u32 %v1180, 7
      %v1182 = vsub.s32 1, %v1181
      %v1183 = vrot.slane %v1174, %v1182
      %v1186 = vadd.f32 %v1170, %v1179
      %v1187 = vadd.f32 %v1171, %v1183
      %v1188 = vadd.f32 %v1172, %v1179
      %v1189 = vadd.f32 %v1173, %v1183
      %vm1190 = vcmp.ge.f32.partialorder %v1186, 0.0
      %vm1191 = vcmp.ge.f32.partialorder %v1187, 0.0
      %vm1192 = vcmp.ge.f32.partialorder %v1188, 0.0
      %vm1193 = vcmp.ge.f32.partialorder %v1189, 0.0
      %v1194 = vmul.f32 %v1186, 0.2
      %v1195 = vmul.f32 %v1187, 0.2
      %v1196 = vmul.f32 %v1188, 0.2
      %v1197 = vmul.f32 %v1189, 0.2
      %v1198 = vsel %vm1190, %v1186, %v1194
      %v1199 = vsel %vm1191, %v1187, %v1195
      %v1200 = vsel %vm1192, %v1188, %v1196
      %v1201 = vsel %vm1193, %v1189, %v1197
      %v1202 = vpack.c.bf16 %v1200, %v1198
      %v1203 = vpack.c.bf16 %v1201, %v1199
      %v1204 = vld [vmem:[%s7] sm:$0xff]
      %v1205 = vld [vmem:[%s7 + $0x8] sm:$0xff]
      %v1206 = vld [vmem:[%s7 + $0x10] sm:$0xff]
      %v1207 = vld [vmem:[%s7 + $0x18] sm:$0xff]
      %v1208 = vld [vmem:[%s7 + $0x20] sm:$0xff]
      %v1209 = vld [vmem:[%s7 + $0x28] sm:$0xff]
      %v1210 = vld [vmem:[%s7 + $0x30] sm:$0xff]
      %v1211 = vld [vmem:[%s7 + $0x38] sm:$0xff]
      %v1212 = vld [vmem:[%s7 + $0x40] sm:$0xff]
      %v1213 = vld [vmem:[%s7 + $0x48] sm:$0xff]
      %v1214 = vld [vmem:[%s7 + $0x50] sm:$0xff]
      %v1215 = vld [vmem:[%s7 + $0x58] sm:$0xff]
      %v1216 = vld [vmem:[%s7 + $0x60] sm:$0xff]
      %v1217 = vld [vmem:[%s7 + $0x68] sm:$0xff]
      %v1218 = vld [vmem:[%s7 + $0x70] sm:$0xff]
      %v1219 = vld [vmem:[%s7 + $0x78] sm:$0xff]
      %v1220 = vld [vmem:[%s7 + $0x80] sm:$0xff]
      %v1221 = vld [vmem:[%s7 + $0x88] sm:$0xff]
      %v1222 = vld [vmem:[%s7 + $0x90] sm:$0xff]
      %v1223 = vld [vmem:[%s7 + $0x98] sm:$0xff]
      %v1224 = vld [vmem:[%s7 + $0xa0] sm:$0xff]
      %v1225 = vld [vmem:[%s7 + $0xa8] sm:$0xff]
      %v1226 = vld [vmem:[%s7 + $0xb0] sm:$0xff]
      %v1227 = vld [vmem:[%s7 + $0xb8] sm:$0xff]
      %v1228 = vld [vmem:[%s7 + $0xc0] sm:$0xff]
      %v1229 = vld [vmem:[%s7 + $0xc8] sm:$0xff]
      %v1230 = vld [vmem:[%s7 + $0xd0] sm:$0xff]
      %v1231 = vld [vmem:[%s7 + $0xd8] sm:$0xff]
      %v1232 = vld [vmem:[%s7 + $0xe0] sm:$0xff]
      %v1233 = vld [vmem:[%s7 + $0xe8] sm:$0xff]
      %v1234 = vld [vmem:[%s7 + $0xf0] sm:$0xff]
      %v1235 = vld [vmem:[%s7 + $0xf8] sm:$0xff]
      %v1236 = vld [vmem:[%s8] sm:$0x3]
      %v1238 = vlaneseq
      %v1239 = vshrl.u32 %v1238, 7
      %v1240 = vsub.s32 0, %v1239
      %v1241 = vrot.slane %v1236, %v1240
      %v1242 = vlaneseq
      %v1243 = vshrl.u32 %v1242, 7
      %v1244 = vsub.s32 1, %v1243
      %v1245 = vrot.slane %v1236, %v1244
      %v1280 = vunpack.c.l.b16 %v1204
      %v1281 = vunpack.c.h.b16 %v1204
      %v1282 = vunpack.c.l.b16 %v1205
      %v1283 = vunpack.c.h.b16 %v1205
      %v1284 = vunpack.c.l.b16 %v1206
      %v1285 = vunpack.c.h.b16 %v1206
      %v1286 = vunpack.c.l.b16 %v1207
      %v1287 = vunpack.c.h.b16 %v1207
      %v1288 = vunpack.c.l.b16 %v1208
      %v1289 = vunpack.c.h.b16 %v1208
      %v1290 = vunpack.c.l.b16 %v1209
      %v1291 = vunpack.c.h.b16 %v1209
      %v1292 = vunpack.c.l.b16 %v1210
      %v1293 = vunpack.c.h.b16 %v1210
      %v1294 = vunpack.c.l.b16 %v1211
      %v1295 = vunpack.c.h.b16 %v1211
      %v1296 = vunpack.c.l.b16 %v1212
      %v1297 = vunpack.c.h.b16 %v1212
      %v1298 = vunpack.c.l.b16 %v1213
      %v1299 = vunpack.c.h.b16 %v1213
      %v1300 = vunpack.c.l.b16 %v1214
      %v1301 = vunpack.c.h.b16 %v1214
      %v1302 = vunpack.c.l.b16 %v1215
      %v1303 = vunpack.c.h.b16 %v1215
      %v1304 = vunpack.c.l.b16 %v1216
      %v1305 = vunpack.c.h.b16 %v1216
      %v1306 = vunpack.c.l.b16 %v1217
      %v1307 = vunpack.c.h.b16 %v1217
      %v1308 = vunpack.c.l.b16 %v1218
      %v1309 = vunpack.c.h.b16 %v1218
      %v1310 = vunpack.c.l.b16 %v1219
      %v1311 = vunpack.c.h.b16 %v1219
      %v1312 = vunpack.c.l.b16 %v1220
      %v1313 = vunpack.c.h.b16 %v1220
      %v1314 = vunpack.c.l.b16 %v1221
      %v1315 = vunpack.c.h.b16 %v1221
      %v1316 = vunpack.c.l.b16 %v1222
      %v1317 = vunpack.c.h.b16 %v1222
      %v1318 = vunpack.c.l.b16 %v1223
      %v1319 = vunpack.c.h.b16 %v1223
      %v1320 = vunpack.c.l.b16 %v1224
      %v1321 = vunpack.c.h.b16 %v1224
      %v1322 = vunpack.c.l.b16 %v1225
      %v1323 = vunpack.c.h.b16 %v1225
      %v1324 = vunpack.c.l.b16 %v1226
      %v1325 = vunpack.c.h.b16 %v1226
      %v1326 = vunpack.c.l.b16 %v1227
      %v1327 = vunpack.c.h.b16 %v1227
      %v1328 = vunpack.c.l.b16 %v1228
      %v1329 = vunpack.c.h.b16 %v1228
      %v1330 = vunpack.c.l.b16 %v1229
      %v1331 = vunpack.c.h.b16 %v1229
      %v1332 = vunpack.c.l.b16 %v1230
      %v1333 = vunpack.c.h.b16 %v1230
      %v1334 = vunpack.c.l.b16 %v1231
      %v1335 = vunpack.c.h.b16 %v1231
      %v1336 = vunpack.c.l.b16 %v1232
      %v1337 = vunpack.c.h.b16 %v1232
      %v1338 = vunpack.c.l.b16 %v1233
      %v1339 = vunpack.c.h.b16 %v1233
      %v1340 = vunpack.c.l.b16 %v1234
      %v1341 = vunpack.c.h.b16 %v1234
      %v1342 = vunpack.c.l.b16 %v1235
      %v1343 = vunpack.c.h.b16 %v1235
      %v1344 = vpack.c.b16 %v1282, %v1280
      %v1345 = vpack.c.b16 %v1283, %v1281
      %v1346 = vpack.c.b16 %v1286, %v1284
      %v1347 = vpack.c.b16 %v1287, %v1285
      %v1348 = vpack.c.b16 %v1290, %v1288
      %v1349 = vpack.c.b16 %v1291, %v1289
      %v1350 = vpack.c.b16 %v1294, %v1292
      %v1351 = vpack.c.b16 %v1295, %v1293
      %v1352 = vpack.c.b16 %v1298, %v1296
      %v1353 = vpack.c.b16 %v1299, %v1297
      %v1354 = vpack.c.b16 %v1302, %v1300
      %v1355 = vpack.c.b16 %v1303, %v1301
      %v1356 = vpack.c.b16 %v1306, %v1304
      %v1357 = vpack.c.b16 %v1307, %v1305
      %v1358 = vpack.c.b16 %v1310, %v1308
      %v1359 = vpack.c.b16 %v1311, %v1309
      %v1360 = vpack.c.b16 %v1314, %v1312
      %v1361 = vpack.c.b16 %v1315, %v1313
      %v1362 = vpack.c.b16 %v1318, %v1316
      %v1363 = vpack.c.b16 %v1319, %v1317
      %v1364 = vpack.c.b16 %v1322, %v1320
      %v1365 = vpack.c.b16 %v1323, %v1321
      %v1366 = vpack.c.b16 %v1326, %v1324
      %v1367 = vpack.c.b16 %v1327, %v1325
      %v1368 = vpack.c.b16 %v1330, %v1328
      %v1369 = vpack.c.b16 %v1331, %v1329
      %v1370 = vpack.c.b16 %v1334, %v1332
      %v1371 = vpack.c.b16 %v1335, %v1333
      %v1372 = vpack.c.b16 %v1338, %v1336
      %v1373 = vpack.c.b16 %v1339, %v1337
      %v1374 = vpack.c.b16 %v1342, %v1340
      %v1375 = vpack.c.b16 %v1343, %v1341
      %1408 = vmatprep.subr.bf16.mxu0 %v1345
      %1409 = vmatpush1.bf16.msra.mxu0 %v1344
      %1410 = vmatprep.subr.bf16.mxu0 %v1347
      %1411 = vmatpush1.bf16.msra.mxu0 %v1346
      %1412 = vmatprep.subr.bf16.mxu0 %v1349
      %1413 = vmatpush1.bf16.msra.mxu0 %v1348
      %1414 = vmatprep.subr.bf16.mxu0 %v1351
      %1415 = vmatpush1.bf16.msra.mxu0 %v1350
      %1416 = vmatprep.subr.bf16.mxu0 %v1353
      %1417 = vmatpush1.bf16.msra.mxu0 %v1352
      %1418 = vmatprep.subr.bf16.mxu0 %v1355
      %1419 = vmatpush1.bf16.msra.mxu0 %v1354
      %1420 = vmatprep.subr.bf16.mxu0 %v1357
      %1421 = vmatpush1.bf16.msra.mxu0 %v1356
      %1422 = vmatprep.subr.bf16.mxu0 %v1359
      %1423 = vmatpush1.bf16.msra.mxu0 %v1358
      %1424 = vmatprep.subr.bf16.mxu0 %v1361
      %1425 = vmatpush1.bf16.msra.mxu0 %v1360
      %1426 = vmatprep.subr.bf16.mxu0 %v1363
      %1427 = vmatpush1.bf16.msra.mxu0 %v1362
      %1428 = vmatprep.subr.bf16.mxu0 %v1365
      %1429 = vmatpush1.bf16.msra.mxu0 %v1364
      %1430 = vmatprep.subr.bf16.mxu0 %v1367
      %1431 = vmatpush1.bf16.msra.mxu0 %v1366
      %1432 = vmatprep.subr.bf16.mxu0 %v1369
      %1433 = vmatpush1.bf16.msra.mxu0 %v1368
      %1434 = vmatprep.subr.bf16.mxu0 %v1371
      %1435 = vmatpush1.bf16.msra.mxu0 %v1370
      %1436 = vmatprep.subr.bf16.mxu0 %v1373
      %1437 = vmatpush1.bf16.msra.mxu0 %v1372
      %1438 = vmatprep.subr.bf16.mxu0 %v1375
      %1439 = vmatpush1.bf16.msra.mxu0 %v1374
      %1440 = vmatprep.mubr.bf16.mxu0 %v1203
      %1441 = vmatmul.mubr.bf16.gmra.mrb[0].mxu0 %v1202
      %v1442 = vpop.f32.mrb[0].mxu0
      %v1443 = vadd.f32 %v1241, %v1442
      %v1444 = vpop.f32.mrb[0].mxu0
      %v1445 = vadd.f32 %v1245, %v1444
      %v1446 = vpop.f32.mrb[0].mxu0
      %v1447 = vadd.f32 %v1241, %v1446
      %v1448 = vpop.f32.mrb[0].mxu0
      %v1449 = vadd.f32 %v1245, %v1448
      %1450 = vdwg.mxu0
      %vm1451 = vcmp.ge.f32.partialorder %v1443, 0.0
      %vm1452 = vcmp.ge.f32.partialorder %v1445, 0.0
      %vm1453 = vcmp.ge.f32.partialorder %v1447, 0.0
      %vm1454 = vcmp.ge.f32.partialorder %v1449, 0.0
      %v1455 = vmul.f32 %v1443, 0.2
      %v1456 = vmul.f32 %v1445, 0.2
      %v1457 = vmul.f32 %v1447, 0.2
      %v1458 = vmul.f32 %v1449, 0.2
      %v1459 = vsel %vm1451, %v1443, %v1455
      %v1460 = vsel %vm1452, %v1445, %v1456
      %v1461 = vsel %vm1453, %v1447, %v1457
      %v1462 = vsel %vm1454, %v1449, %v1458
      %v1463 = vadd.f32 %v1459, %v1461
      %v1464 = vrot.slane %v1463, 4
      %v1465 = vadd.f32 %v1463, %v1464
      %v1466 = vrot.slane %v1465, 2
      %v1467 = vadd.f32 %v1465, %v1466
      %v1468 = vrot.slane %v1467, 1
      %v1469 = vadd.f32 %v1467, %v1468
      %v1470 = vadd.f32 %v1460, %v1462
      %v1471 = vrot.slane %v1470, 4
      %v1472 = vadd.f32 %v1470, %v1471
      %v1473 = vrot.slane %v1472, 2
      %v1474 = vadd.f32 %v1472, %v1473
      %v1475 = vrot.slane %v1474, 1
      %v1476 = vadd.f32 %v1474, %v1475
      %v1479 = vcombine.low %v1469, %v1476
      %v1481 = vunpack.c.l.s4 1966171168
      %v1482 = vunpack.c.0.s8 %v1481
      %v1483 = vlaneseq
      %v1484 = vshrl.u32 %v1483, 7
      %v1485 = vsub.s32 %v1482, %v1484
      %v1486 = vrot.slane %v1479, %v1485
      %v1488 = vunpack.c.l.s4 1966171168
      %v1489 = vunpack.c.0.s8 %v1488
      %v1490 = vlaneseq
      %v1491 = vshrl.u32 %v1490, 7
      %v1492 = vsub.s32 %v1489, %v1491
      %v1493 = vrot.slane %v1486, %v1492
      %v1495 = vlaneseq
      %vm1496 = vcmp.ge.s32.totalorder %v1495, 0
      %vm1497 = vcmp.lt.s32.totalorder %v1495, 256
      %vm1498 = vmand %vm1496, %vm1497
      %1499 = vst.msk [vmem:[%s405] ss:$2 sm:$0x3] %vm1498, %v1493
      %v1500 = vmul.f32 %v1459, %v1459
      %v1501 = vmul.f32 %v1460, %v1460
      %v1502 = vmul.f32 %v1461, %v1461
      %v1503 = vmul.f32 %v1462, %v1462
      %v1504 = vadd.f32 %v1500, %v1502
      %v1505 = vrot.slane %v1504, 4
      %v1506 = vadd.f32 %v1504, %v1505
      %v1507 = vrot.slane %v1506, 2
      %v1508 = vadd.f32 %v1506, %v1507
      %v1509 = vrot.slane %v1508, 1
      %v1510 = vadd.f32 %v1508, %v1509
      %v1511 = vadd.f32 %v1501, %v1503
      %v1512 = vrot.slane %v1511, 4
      %v1513 = vadd.f32 %v1511, %v1512
      %v1514 = vrot.slane %v1513, 2
      %v1515 = vadd.f32 %v1513, %v1514
      %v1516 = vrot.slane %v1515, 1
      %v1517 = vadd.f32 %v1515, %v1516
      %v1520 = vcombine.low %v1510, %v1517
      %v1522 = vunpack.c.l.s4 1966171168
      %v1523 = vunpack.c.0.s8 %v1522
      %v1524 = vlaneseq
      %v1525 = vshrl.u32 %v1524, 7
      %v1526 = vsub.s32 %v1523, %v1525
      %v1527 = vrot.slane %v1520, %v1526
      %v1529 = vunpack.c.l.s4 1966171168
      %v1530 = vunpack.c.0.s8 %v1529
      %v1531 = vlaneseq
      %v1532 = vshrl.u32 %v1531, 7
      %v1533 = vsub.s32 %v1530, %v1532
      %v1534 = vrot.slane %v1527, %v1533
      %s1536 = scalar_lea.vmem %s405, 1
      %1537 = vst.msk [vmem:[%s1536] ss:$2 sm:$0x3] %vm1498, %v1534
      %1538 = vst [vmem:[%s400] sm:$0xff] %v1459
      %1539 = vst [vmem:[%s400 + $0x8] sm:$0xff] %v1460
      %1540 = vst [vmem:[%s400 + $0x10] sm:$0xff] %v1461
      %1541 = vst [vmem:[%s400 + $0x18] sm:$0xff] %v1462
      %p1542 = scmp.lt.s32.totalorder %s23, 1
      %s1543 = scalar_select %p1542, %s23, 1
      %s1544 = smul.addr %s1543, 4
      %s1545 = smul.addr %s1544, 8
      %s1546 = scalar_lea.vmem %s9, %s1545
      %p1547 = scmp.lt.s32.totalorder %s23, 1
      %s1548 = scalar_select %p1547, %s23, 1
      %s1549 = smul.addr %s1548, 2
      %s1550 = smul.addr %s1549, 2
      %s1551 = scalar_lea.vmem %s10, %s1550
      %p1552 = scmp.lt.s32.totalorder %s23, 1
      %s1553 = scalar_select %p1552, %s23, 1
      %s1554 = smul.addr %s1553, 8
      %s1555 = scalar_lea.vmem %s11, %s1554
      // Predicated region
      $region57: #{_lambda_.5} parent=55 // pred_check
        %p1556 = pneg %p235
      $region58: #{_lambda_.5} parent=55 // pred_check_branch
        %1558 = sbr.rel (%p1556) target = $region60
      $region59: #{_lambda_.5} parent=55 // pred_region
        _
      $region60: #{_lambda_.5} parent=55 // pred_fallthru
        _
      // Predicated region
      $region61: #{_lambda_.5} parent=55 // pred_check
        %p1559 = pneg %p261
      $region62: #{_lambda_.5} parent=55 // pred_check_branch
        %1561 = sbr.rel (%p1559) target = $region64
      $region63: #{_lambda_.5} parent=55 // pred_region
        _
      $region64: #{_lambda_.5} parent=55 // pred_fallthru
        _
      // Predicated region
      $region65: #{_lambda_.5} parent=55 // pred_check
        %p1562 = pneg %p287
      $region66: #{_lambda_.5} parent=55 // pred_check_branch
        %1564 = sbr.rel (%p1562) target = $region68
      $region67: #{_lambda_.5} parent=55 // pred_region
        _
      $region68: #{_lambda_.5} parent=55 // pred_fallthru
        _
    $region56: #{_lambda_.5} parent=5 // pred_fallthru
      _
    %p1565 = scmp.le.s32.totalorder 2, %s18
    // Predicated region
    $region69: #{_lambda_.5} parent=5 // pred_check
      %p1566 = pneg %p1565
    $region70: #{_lambda_.5} parent=5 // pred_check_branch
      %1568 = sbr.rel (%p1566) target = $region72
    $region71: #{_lambda_.5} parent=5 // pred_region
      %s1569 = ssub.s32 %s18, 2
      // Predicated region
      $region73: #{_lambda_.5} parent=71 // pred_check
        %p1570 = pneg %p241
      $region74: #{_lambda_.5} parent=71 // pred_check_branch
        %1572 = sbr.rel (%p1570) target = $region76
      $region75: #{_lambda_.5} parent=71 // pred_region
        %p1573 = scmp.lt.s32.totalorder %s24, 1
        %s1574 = scalar_select %p1573, %s24, 1
        %s1575 = smul.addr %s1574, 4
        %s1576 = smul.addr %s1575, 8
        %s1577 = scalar_lea.vmem %s9, %s1576
      $region76: #{_lambda_.5} parent=71 // pred_fallthru
        _
      // Predicated region
      $region77: #{_lambda_.5} parent=71 // pred_check
        %p1578 = pneg %p267
      $region78: #{_lambda_.5} parent=71 // pred_check_branch
        %1580 = sbr.rel (%p1578) target = $region80
      $region79: #{_lambda_.5} parent=71 // pred_region
        %p1581 = scmp.lt.s32.totalorder %s24, 1
        %s1582 = scalar_select %p1581, %s24, 1
        %s1583 = smul.addr %s1582, 2
        %s1584 = smul.addr %s1583, 2
        %s1585 = scalar_lea.vmem %s10, %s1584
      $region80: #{_lambda_.5} parent=71 // pred_fallthru
        _
      // Predicated region
      $region81: #{_lambda_.5} parent=71 // pred_check
        %p1586 = pneg %p293
      $region82: #{_lambda_.5} parent=71 // pred_check_branch
        %1588 = sbr.rel (%p1586) target = $region84
      $region83: #{_lambda_.5} parent=71 // pred_region
        %p1589 = scmp.lt.s32.totalorder %s24, 1
        %s1590 = scalar_select %p1589, %s24, 1
        %s1591 = smul.addr %s1590, 8
        %s1592 = scalar_lea.vmem %s11, %s1591
      $region84: #{_lambda_.5} parent=71 // pred_fallthru
        _
    $region72: #{_lambda_.5} parent=5 // pred_fallthru
      _
  $region6: #{_lambda_.5} parent=0 // loop_footer
    %s22 = sadd.s32 1, %s18
  $region7: #{_lambda_.5} parent=0 // loop_footer_branch
    %17 = sbr.rel target = $region3
  $region8: #{_lambda_.5} parent=0 // loop_exit
    _

// kernel: tile.127
$region0: #{tile.127}
  %s0 = inlined_call_operand.vmem [shape: f32[8,3], index: 0, kind: input, shape index: {}]
  %s1 = inlined_call_operand.vmem [shape: f32[1,24], index: 1, kind: output, shape index: {}]
  $region1: #{tile.127} parent=0
    #allocation0 [shape = 'u8[4096]{0}', space=vmem, size = 0x1000, scoped, tag = 'scoped mem for output reshape']
    %v2 = vld [vmem:[%s0] sm:$0x1]
    %vm3 = vcmask 23552
    %4 = vst.msk [vmem:[#allocation0] sm:$0x1] %vm3, %v2
    %s5 = scalar_lea.vmem %s0, 7
    %v6 = vld [vmem:[%s5] sm:$0x1]
    %7 = vrot.lane.b32.xlu0 %v6, 21
    %v8 = vpop.permute.xlu0 %7
    %vm9 = vcmask 195752
    %10 = vst.msk [vmem:[#allocation0] sm:$0x1] %vm9, %v8
    %s11 = scalar_lea.vmem %s0, 6
    %v12 = vld [vmem:[%s11] sm:$0x1]
    %13 = vrot.lane.b32.xlu0 %v12, 18
    %v14 = vpop.permute.xlu0 %13
    %vm15 = vcmask 171152
    %16 = vst.msk [vmem:[#allocation0] sm:$0x1] %vm15, %v14
    %s17 = scalar_lea.vmem %s0, 5
    %v18 = vld [vmem:[%s17] sm:$0x1]
    %19 = vrot.lane.b32.xlu0 %v18, 15
    %v20 = vpop.permute.xlu0 %19
    %vm21 = vcmask 146552
    %22 = vst.msk [vmem:[#allocation0] sm:$0x1] %vm21, %v20
    %s23 = scalar_lea.vmem %s0, 4
    %v24 = vld [vmem:[%s23] sm:$0x1]
    %25 = vrot.lane.b32.xlu0 %v24, 12
    %v26 = vpop.permute.xlu0 %25
    %vm27 = vcmask 121952
    %28 = vst.msk [vmem:[#allocation0] sm:$0x1] %vm27, %v26
    %s29 = scalar_lea.vmem %s0, 3
    %v30 = vld [vmem:[%s29] sm:$0x1]
    %31 = vrot.lane.b32.xlu0 %v30, 9
    %v32 = vpop.permute.xlu0 %31
    %vm33 = vcmask 97352
    %34 = vst.msk [vmem:[#allocation0] sm:$0x1] %vm33, %v32
    %s35 = scalar_lea.vmem %s0, 2
    %v36 = vld [vmem:[%s35] sm:$0x1]
    %37 = vrot.lane.b32.xlu0 %v36, 6
    %v38 = vpop.permute.xlu0 %37
    %vm39 = vcmask 72752
    %40 = vst.msk [vmem:[#allocation0] sm:$0x1] %vm39, %v38
    %s41 = scalar_lea.vmem %s0, 1
    %v42 = vld [vmem:[%s41] sm:$0x1]
    %43 = vrot.lane.b32.xlu0 %v42, 3
    %v44 = vpop.permute.xlu0 %43
    %vm45 = vcmask 48152
    %46 = vst.msk [vmem:[#allocation0] sm:$0x1] %vm45, %v44
    %s48 = sshllo.u32 0, 1
    %v50 = vld [vmem:[#allocation0] sm:%s48]
    %s51 = sshllo.u32 0, 1
    %52 = vst [vmem:[%s1] sm:%s51] %v50

// kernel: _lambda_.8
$region0: #{_lambda_.8}
  #allocation0 [shape = 'u32[]', space=smem, size = 0x4, offset = 0x4, fixed_abs, tag = 'smem constant byte address 0x4 - core index']
  #allocation1 [shape = 'u32[144,128]{1,0:T(1,128)}', space=vmem, size = 0x12000, scoped, tag = 'internal scratch']
  #allocation2 [shape = 'f32[10,128]{1,0:T(8,128)}', space=vmem, size = 0x2000, scoped, tag = 'scratch operand']
  %s0 = inlined_call_operand.vmem [shape: f32[2,8,128], index: 0, kind: input, shape index: {}]
  %s1 = inlined_call_operand.vmem [shape: f32[1,128], index: 1, kind: input, shape index: {}]
  %s2 = inlined_call_operand.vmem [shape: f32[1,128], index: 2, kind: input, shape index: {}]
  %s3 = inlined_call_operand.vmem [shape: f32[2,8,128], index: 3, kind: input, shape index: {}]
  %s4 = inlined_call_operand.vmem [shape: bf16[3,128,128], index: 4, kind: input, shape index: {}]
  %s5 = inlined_call_operand.vmem [shape: f32[1,128], index: 5, kind: input, shape index: {}]
  %s6 = inlined_call_operand.vmem [shape: f32[2,8,128], index: 6, kind: output, shape index: {0}]
  %s7 = inlined_call_operand.vmem [shape: f32[2,2,128], index: 7, kind: output, shape index: {1}]
  %8 = xla_tuple %s6, %s7
  %s9 = sld [smem:[#allocation0]]
  $region65: #{_lambda_.8} parent=0
    _
  %s11 = ssub.s32 1, %s9
  %s12 = scalar_select 0, %s11, %s9
  loop: start=0, step=1, limit=4
  $region2: #{_lambda_.8} parent=0 // loop_pre_header
    _
  $region3: #{_lambda_.8} parent=0 // loop_header
    %s14 = sphi 0, %s18
    %p15 = scmp.ge.s32.totalorder %s14, 4
    %s24 = sphi 0, %s26
    %s27 = sphi 0, %s24
    %s28 = sphi 0, %s27
    %s44 = sphi 0, %s28
    %s48 = sphi 0, %s48
    %s50 = sphi 0, %s48
    %s51 = sphi 0, %s50
    %s65 = sphi 0, %s51
    %s69 = sphi 0, %s69
    %s71 = sphi 0, %s69
    %s72 = sphi 0, %s71
    %s86 = sphi 0, %s72
    %s92 = sphi 0, %s94
    %s95 = sphi 0, %s92
    %s96 = sphi 0, %s95
    %s112 = sphi 0, %s96
    %s116 = sphi 0, %s116
    %s118 = sphi 0, %s116
    %s119 = sphi 0, %s118
    %s133 = sphi 0, %s119
    %s137 = sphi 0, %s137
    %s139 = sphi 0, %s137
    %s140 = sphi 0, %s139
    %s154 = sphi 0, %s140
    %s160 = sphi 0, %s162
    %s163 = sphi 0, %s160
    %s164 = sphi 0, %s163
    %s180 = sphi 0, %s164
    %s186 = sphi 0, %s188
    %s189 = sphi 0, %s186
    %s190 = sphi 0, %s189
    %s206 = sphi 0, %s190
  $region4: #{_lambda_.8} parent=0 // loop_header_branch
    %17 = sbr.rel (%p15) target = $region8
  $region5: #{_lambda_.8} parent=0 // loop_body
    %s19 = ssub.s32 %s14, 1
    %s20 = ssub.s32 %s14, 2
    %s21 = sadd.s32 %s14, 1
    %s22 = ssub.s32 %s14, %s21
    %p23 = scmp.eq.s32.totalorder %s22, 0
    %s25 = sadd.s32 %s24, 1
    %s26 = scalar_select %p23, %s24, %s25
    %p29 = pneg %p23
    %p30 = scmp.eq.s32.totalorder %s14, 1
    %p31 = por %p29, %p30
    %p32 = scmp.ne.s32.totalorder %s24, %s27
    %p33 = scmp.eq.s32.totalorder %s14, 0
    %p34 = por %p32, %p33
    %p35 = scmp.ne.s32.totalorder %s24, %s27
    %p36 = scmp.eq.s32.totalorder %s19, 1
    %p37 = por %p35, %p36
    %p38 = scmp.ne.s32.totalorder %s27, %s28
    %p39 = scmp.eq.s32.totalorder %s19, 0
    %p40 = por %p38, %p39
    %p41 = scmp.ne.s32.totalorder %s27, %s28
    %p42 = scmp.eq.s32.totalorder %s20, 1
    %p43 = por %p41, %p42
    %p45 = scmp.ne.s32.totalorder %s28, %s44
    %p46 = scmp.eq.s32.totalorder %s20, 0
    %p47 = por %p45, %p46
    %s49 = sadd.s32 %s48, 1
    %p52 = scmp.eq.s32.totalorder %s14, 1
    %p53 = scmp.ne.s32.totalorder %s48, %s50
    %p54 = scmp.eq.s32.totalorder %s14, 0
    %p55 = por %p53, %p54
    %p56 = scmp.ne.s32.totalorder %s48, %s50
    %p57 = scmp.eq.s32.totalorder %s19, 1
    %p58 = por %p56, %p57
    %p59 = scmp.ne.s32.totalorder %s50, %s51
    %p60 = scmp.eq.s32.totalorder %s19, 0
    %p61 = por %p59, %p60
    %p62 = scmp.ne.s32.totalorder %s50, %s51
    %p63 = scmp.eq.s32.totalorder %s20, 1
    %p64 = por %p62, %p63
    %p66 = scmp.ne.s32.totalorder %s51, %s65
    %p67 = scmp.eq.s32.totalorder %s20, 0
    %p68 = por %p66, %p67
    %s70 = sadd.s32 %s69, 1
    %p73 = scmp.eq.s32.totalorder %s14, 1
    %p74 = scmp.ne.s32.totalorder %s69, %s71
    %p75 = scmp.eq.s32.totalorder %s14, 0
    %p76 = por %p74, %p75
    %p77 = scmp.ne.s32.totalorder %s69, %s71
    %p78 = scmp.eq.s32.totalorder %s19, 1
    %p79 = por %p77, %p78
    %p80 = scmp.ne.s32.totalorder %s71, %s72
    %p81 = scmp.eq.s32.totalorder %s19, 0
    %p82 = por %p80, %p81
    %p83 = scmp.ne.s32.totalorder %s71, %s72
    %p84 = scmp.eq.s32.totalorder %s20, 1
    %p85 = por %p83, %p84
    %p87 = scmp.ne.s32.totalorder %s72, %s86
    %p88 = scmp.eq.s32.totalorder %s20, 0
    %p89 = por %p87, %p88
    %s90 = ssub.s32 %s14, %s21
    %p91 = scmp.eq.s32.totalorder %s90, 0
    %s93 = sadd.s32 %s92, 1
    %s94 = scalar_select %p91, %s92, %s93
    %p97 = pneg %p91
    %p98 = scmp.eq.s32.totalorder %s14, 1
    %p99 = por %p97, %p98
    %p100 = scmp.ne.s32.totalorder %s92, %s95
    %p101 = scmp.eq.s32.totalorder %s14, 0
    %p102 = por %p100, %p101
    %p103 = scmp.ne.s32.totalorder %s92, %s95
    %p104 = scmp.eq.s32.totalorder %s19, 1
    %p105 = por %p103, %p104
    %p106 = scmp.ne.s32.totalorder %s95, %s96
    %p107 = scmp.eq.s32.totalorder %s19, 0
    %p108 = por %p106, %p107
    %p109 = scmp.ne.s32.totalorder %s95, %s96
    %p110 = scmp.eq.s32.totalorder %s20, 1
    %p111 = por %p109, %p110
    %p113 = scmp.ne.s32.totalorder %s96, %s112
    %p114 = scmp.eq.s32.totalorder %s20, 0
    %p115 = por %p113, %p114
    %s117 = sadd.s32 %s116, 1
    %p120 = scmp.eq.s32.totalorder %s14, 1
    %p121 = scmp.ne.s32.totalorder %s116, %s118
    %p122 = scmp.eq.s32.totalorder %s14, 0
    %p123 = por %p121, %p122
    %p124 = scmp.ne.s32.totalorder %s116, %s118
    %p125 = scmp.eq.s32.totalorder %s19, 1
    %p126 = por %p124, %p125
    %p127 = scmp.ne.s32.totalorder %s118, %s119
    %p128 = scmp.eq.s32.totalorder %s19, 0
    %p129 = por %p127, %p128
    %p130 = scmp.ne.s32.totalorder %s118, %s119
    %p131 = scmp.eq.s32.totalorder %s20, 1
    %p132 = por %p130, %p131
    %p134 = scmp.ne.s32.totalorder %s119, %s133
    %p135 = scmp.eq.s32.totalorder %s20, 0
    %p136 = por %p134, %p135
    %s138 = sadd.s32 %s137, 1
    %p141 = scmp.eq.s32.totalorder %s14, 1
    %p142 = scmp.ne.s32.totalorder %s137, %s139
    %p143 = scmp.eq.s32.totalorder %s14, 0
    %p144 = por %p142, %p143
    %p145 = scmp.ne.s32.totalorder %s137, %s139
    %p146 = scmp.eq.s32.totalorder %s19, 1
    %p147 = por %p145, %p146
    %p148 = scmp.ne.s32.totalorder %s139, %s140
    %p149 = scmp.eq.s32.totalorder %s19, 0
    %p150 = por %p148, %p149
    %p151 = scmp.ne.s32.totalorder %s139, %s140
    %p152 = scmp.eq.s32.totalorder %s20, 1
    %p153 = por %p151, %p152
    %p155 = scmp.ne.s32.totalorder %s140, %s154
    %p156 = scmp.eq.s32.totalorder %s20, 0
    %p157 = por %p155, %p156
    %s158 = ssub.s32 %s14, %s21
    %p159 = scmp.eq.s32.totalorder %s158, 0
    %s161 = sadd.s32 %s160, 1
    %s162 = scalar_select %p159, %s160, %s161
    %p165 = pneg %p159
    %p166 = scmp.eq.s32.totalorder %s14, 1
    %p167 = por %p165, %p166
    %p168 = scmp.ne.s32.totalorder %s160, %s163
    %p169 = scmp.eq.s32.totalorder %s14, 0
    %p170 = por %p168, %p169
    %p171 = scmp.ne.s32.totalorder %s160, %s163
    %p172 = scmp.eq.s32.totalorder %s19, 1
    %p173 = por %p171, %p172
    %p174 = scmp.ne.s32.totalorder %s163, %s164
    %p175 = scmp.eq.s32.totalorder %s19, 0
    %p176 = por %p174, %p175
    %p177 = scmp.ne.s32.totalorder %s163, %s164
    %p178 = scmp.eq.s32.totalorder %s20, 1
    %p179 = por %p177, %p178
    %p181 = scmp.ne.s32.totalorder %s164, %s180
    %p182 = scmp.eq.s32.totalorder %s20, 0
    %p183 = por %p181, %p182
    %s184 = ssub.s32 %s14, %s21
    %p185 = scmp.eq.s32.totalorder %s184, 0
    %s187 = sadd.s32 %s186, 1
    %s188 = scalar_select %p185, %s186, %s187
    %p191 = pneg %p185
    %p192 = scmp.eq.s32.totalorder %s14, 1
    %p193 = por %p191, %p192
    %p194 = scmp.ne.s32.totalorder %s186, %s189
    %p195 = scmp.eq.s32.totalorder %s14, 0
    %p196 = por %p194, %p195
    %p197 = scmp.ne.s32.totalorder %s186, %s189
    %p198 = scmp.eq.s32.totalorder %s19, 1
    %p199 = por %p197, %p198
    %p200 = scmp.ne.s32.totalorder %s189, %s190
    %p201 = scmp.eq.s32.totalorder %s19, 0
    %p202 = por %p200, %p201
    %p203 = scmp.ne.s32.totalorder %s189, %s190
    %p204 = scmp.eq.s32.totalorder %s20, 1
    %p205 = por %p203, %p204
    %p207 = scmp.ne.s32.totalorder %s190, %s206
    %p208 = scmp.eq.s32.totalorder %s20, 0
    %p209 = por %p207, %p208
    %p210 = scmp.le.s32.totalorder 1, %s14
    %p211 = scmp.lt.s32.totalorder %s14, 3
    %p212 = pnand %p210, %p211
    %p213 = pneg %p212
    // Predicated region
    $region9: #{_lambda_.8} parent=5 // pred_check
      _
    $region10: #{_lambda_.8} parent=5 // pred_check_branch
      %215 = sbr.rel (%p212) target = $region12
    $region11: #{_lambda_.8} parent=5 // pred_region
      %s216 = ssub.s32 %s14, 1
      // Predicated region
      $region13: #{_lambda_.8} parent=11 // pred_check
        %p217 = pneg %p61
      $region14: #{_lambda_.8} parent=11 // pred_check_branch
        %219 = sbr.rel (%p217) target = $region16
      $region15: #{_lambda_.8} parent=11 // pred_region
        _
      $region16: #{_lambda_.8} parent=11 // pred_fallthru
        _
      // Predicated region
      $region17: #{_lambda_.8} parent=11 // pred_check
        %p220 = pneg %p82
      $region18: #{_lambda_.8} parent=11 // pred_check_branch
        %222 = sbr.rel (%p220) target = $region20
      $region19: #{_lambda_.8} parent=11 // pred_region
        _
      $region20: #{_lambda_.8} parent=11 // pred_fallthru
        _
      // Predicated region
      $region21: #{_lambda_.8} parent=11 // pred_check
        %p223 = pneg %p129
      $region22: #{_lambda_.8} parent=11 // pred_check_branch
        %225 = sbr.rel (%p223) target = $region24
      $region23: #{_lambda_.8} parent=11 // pred_region
        _
      $region24: #{_lambda_.8} parent=11 // pred_fallthru
        _
      // Predicated region
      $region25: #{_lambda_.8} parent=11 // pred_check
        %p226 = pneg %p150
      $region26: #{_lambda_.8} parent=11 // pred_check_branch
        %228 = sbr.rel (%p226) target = $region28
      $region27: #{_lambda_.8} parent=11 // pred_region
        _
      $region28: #{_lambda_.8} parent=11 // pred_fallthru
        _
    $region12: #{_lambda_.8} parent=5 // pred_fallthru
      _
    %p229 = scmp.lt.s32.totalorder %s14, 2
    // Predicated region
    $region29: #{_lambda_.8} parent=5 // pred_check
      %p230 = pneg %p229
    $region30: #{_lambda_.8} parent=5 // pred_check_branch
      %232 = sbr.rel (%p230) target = $region32
    $region31: #{_lambda_.8} parent=5 // pred_region
      // Predicated region
      $region33: #{_lambda_.8} parent=31 // pred_check
        %p233 = pneg %p34
      $region34: #{_lambda_.8} parent=31 // pred_check_branch
        %235 = sbr.rel (%p233) target = $region36
      $region35: #{_lambda_.8} parent=31 // pred_region
        %p236 = scmp.lt.s32.totalorder %s14, 1
        %s237 = scalar_select %p236, %s14, 1
        %s238 = smul.addr %s237, 8
        %s239 = scalar_lea.vmem %s0, %s238
      $region36: #{_lambda_.8} parent=31 // pred_fallthru
        _
      // Predicated region
      $region37: #{_lambda_.8} parent=31 // pred_check
        %p240 = pneg %p102
      $region38: #{_lambda_.8} parent=31 // pred_check_branch
        %242 = sbr.rel (%p240) target = $region40
      $region39: #{_lambda_.8} parent=31 // pred_region
        %p243 = scmp.lt.s32.totalorder %s14, 1
        %s244 = scalar_select %p243, %s14, 1
        %s245 = smul.addr %s244, 8
        %s246 = scalar_lea.vmem %s3, %s245
      $region40: #{_lambda_.8} parent=31 // pred_fallthru
        _
    $region32: #{_lambda_.8} parent=5 // pred_fallthru
      _
    %p247 = scmp.le.s32.totalorder 1, %s14
    %p248 = scmp.lt.s32.totalorder %s14, 3
    %p249 = pnand %p247, %p248
    %p250 = pneg %p249
    // Predicated region
    $region41: #{_lambda_.8} parent=5 // pred_check
      _
    $region42: #{_lambda_.8} parent=5 // pred_check_branch
      %252 = sbr.rel (%p249) target = $region44
    $region43: #{_lambda_.8} parent=5 // pred_region
      %s253 = ssub.s32 %s14, 1
      %p254 = scmp.lt.s32.totalorder %s19, 1
      %s255 = scalar_select %p254, %s19, 1
      %s256 = smul.addr %s255, 8
      %s257 = scalar_lea.vmem %s0, %s256
      %p258 = pneg %p40
      %p259 = pneg %p37
      %p260 = pneg %p61
      %p261 = pneg %p58
      %p262 = pneg %p82
      %p263 = pneg %p79
      %p264 = scmp.lt.s32.totalorder %s19, 1
      %s265 = scalar_select %p264, %s19, 1
      %s266 = smul.addr %s265, 8
      %s267 = scalar_lea.vmem %s3, %s266
      %p268 = pneg %p108
      %p269 = pneg %p105
      %p270 = pneg %p129
      %p271 = pneg %p126
      %p272 = pneg %p150
      %p273 = pneg %p147
      %p274 = pneg %p176
      %p275 = pneg %p173
      %p276 = scmp.lt.s32.totalorder %s19, 1
      %s277 = scalar_select %p276, %s19, 1
      %s278 = smul.addr %s277, 8
      %s279 = scalar_lea.vmem %s6, %s278
      %p280 = pneg %p202
      %p281 = pneg %p199
      %p282 = scmp.lt.s32.totalorder %s19, 1
      %s283 = scalar_select %p282, %s19, 1
      %s284 = smul.addr %s283, 2
      %s285 = scalar_lea.vmem %s7, %s284
      %p286 = scmp.lt.s32.totalorder %s19, 1
      %s287 = scalar_select %p286, %s19, 1
      %s288 = smul.addr %s287, 8
      %s289 = scalar_lea.vmem %s0, %s288
      %p290 = scmp.lt.s32.totalorder %s19, 1
      %s291 = scalar_select %p290, %s19, 1
      %s292 = smul.addr %s291, 8
      %s293 = scalar_lea.vmem %s3, %s292
      %p294 = scmp.lt.s32.totalorder %s19, 1
      %s295 = scalar_select %p294, %s19, 1
      %s296 = smul.addr %s295, 8
      %s297 = scalar_lea.vmem %s6, %s296
      %p298 = scmp.lt.s32.totalorder %s19, 1
      %s299 = scalar_select %p298, %s19, 1
      %s300 = smul.addr %s299, 2
      %s301 = scalar_lea.vmem %s7, %s300
      %v303 = vld [vmem:[%s289] sm:$0xff]
      %v304 = vld [vmem:[%s1] sm:$0x1]
      %v306 = vlaneseq
      %v307 = vshrl.u32 %v306, 7
      %v308 = vsub.s32 0, %v307
      %v309 = vrot.slane %v304, %v308
      %v311 = vmul.f32 %v303, %v309
      %v312 = vld [vmem:[%s2] sm:$0x1]
      %v314 = vlaneseq
      %v315 = vshrl.u32 %v314, 7
      %v316 = vsub.s32 0, %v315
      %v317 = vrot.slane %v312, %v316
      %v319 = vadd.f32 %v311, %v317
      %v320 = vld [vmem:[%s293] sm:$0xff]
      %v321 = vadd.f32 %v319, %v320
      %322 = vst [vmem:[#allocation2] sm:$0x1] 0.0
      %323 = vst [vmem:[#allocation2 + $0x9] sm:$0x1] 0.0
      %324 = vst [vmem:[#allocation2 + $0x1] sm:$0xff] %v321
      %v325 = vld [vmem:[#allocation2] sm:$0xff]
      %v326 = vpack.c.bf16 %v325, %v325
      %v327 = vld [vmem:[%s4] sm:$0xf]
      %v328 = vld [vmem:[%s4 + $0x4] sm:$0xf]
      %v329 = vld [vmem:[%s4 + $0x8] sm:$0xf]
      %v330 = vld [vmem:[%s4 + $0xc] sm:$0xf]
      %v331 = vld [vmem:[%s4 + $0x10] sm:$0xf]
      %v332 = vld [vmem:[%s4 + $0x14] sm:$0xf]
      %v333 = vld [vmem:[%s4 + $0x18] sm:$0xf]
      %v334 = vld [vmem:[%s4 + $0x1c] sm:$0xf]
      %v335 = vld [vmem:[%s4 + $0x20] sm:$0xf]
      %v336 = vld [vmem:[%s4 + $0x24] sm:$0xf]
      %v337 = vld [vmem:[%s4 + $0x28] sm:$0xf]
      %v338 = vld [vmem:[%s4 + $0x2c] sm:$0xf]
      %v339 = vld [vmem:[%s4 + $0x30] sm:$0xf]
      %v340 = vld [vmem:[%s4 + $0x34] sm:$0xf]
      %v341 = vld [vmem:[%s4 + $0x38] sm:$0xf]
      %v342 = vld [vmem:[%s4 + $0x3c] sm:$0xf]
      %v343 = vld [vmem:[#allocation2 + $0x1] sm:$0xff]
      %v344 = vpack.c.bf16 %v343, %v343
      %s345 = scalar_lea.vmem %s4, 64
      %v346 = vld [vmem:[%s345] sm:$0xf]
      %v347 = vld [vmem:[%s345 + $0x4] sm:$0xf]
      %v348 = vld [vmem:[%s345 + $0x8] sm:$0xf]
      %v349 = vld [vmem:[%s345 + $0xc] sm:$0xf]
      %v350 = vld [vmem:[%s345 + $0x10] sm:$0xf]
      %v351 = vld [vmem:[%s345 + $0x14] sm:$0xf]
      %v352 = vld [vmem:[%s345 + $0x18] sm:$0xf]
      %v353 = vld [vmem:[%s345 + $0x1c] sm:$0xf]
      %v354 = vld [vmem:[%s345 + $0x20] sm:$0xf]
      %v355 = vld [vmem:[%s345 + $0x24] sm:$0xf]
      %v356 = vld [vmem:[%s345 + $0x28] sm:$0xf]
      %v357 = vld [vmem:[%s345 + $0x2c] sm:$0xf]
      %v358 = vld [vmem:[%s345 + $0x30] sm:$0xf]
      %v359 = vld [vmem:[%s345 + $0x34] sm:$0xf]
      %v360 = vld [vmem:[%s345 + $0x38] sm:$0xf]
      %v361 = vld [vmem:[%s345 + $0x3c] sm:$0xf]
      %v378 = vunpack.c.l.b16 %v346
      %v379 = vunpack.c.l.b16 %v347
      %v380 = vunpack.c.l.b16 %v348
      %v381 = vunpack.c.l.b16 %v349
      %v382 = vunpack.c.l.b16 %v350
      %v383 = vunpack.c.l.b16 %v351
      %v384 = vunpack.c.l.b16 %v352
      %v385 = vunpack.c.l.b16 %v353
      %v386 = vunpack.c.l.b16 %v354
      %v387 = vunpack.c.l.b16 %v355
      %v388 = vunpack.c.l.b16 %v356
      %v389 = vunpack.c.l.b16 %v357
      %v390 = vunpack.c.l.b16 %v358
      %v391 = vunpack.c.l.b16 %v359
      %v392 = vunpack.c.l.b16 %v360
      %v393 = vunpack.c.l.b16 %v361
      %v394 = vpack.c.b16 %v379, %v378
      %v395 = vpack.c.b16 %v381, %v380
      %v396 = vpack.c.b16 %v383, %v382
      %v397 = vpack.c.b16 %v385, %v384
      %v398 = vpack.c.b16 %v387, %v386
      %v399 = vpack.c.b16 %v389, %v388
      %v400 = vpack.c.b16 %v391, %v390
      %v401 = vpack.c.b16 %v393, %v392
      %410 = vmatprep.subr.bf16.mxu0 0
      %411 = vmatpush1.bf16.msra.mxu0 %v394
      %412 = vmatprep.subr.bf16.mxu0 0
      %413 = vmatpush1.bf16.msra.mxu0 %v395
      %414 = vmatprep.subr.bf16.mxu0 0
      %415 = vmatpush1.bf16.msra.mxu0 %v396
      %416 = vmatprep.subr.bf16.mxu0 0
      %417 = vmatpush1.bf16.msra.mxu0 %v397
      %418 = vmatprep.subr.bf16.mxu0 0
      %419 = vmatpush1.bf16.msra.mxu0 %v398
      %420 = vmatprep.subr.bf16.mxu0 0
      %421 = vmatpush1.bf16.msra.mxu0 %v399
      %422 = vmatprep.subr.bf16.mxu0 0
      %423 = vmatpush1.bf16.msra.mxu0 %v400
      %424 = vmatprep.subr.bf16.mxu0 0
      %425 = vmatpush1.bf16.msra.mxu0 %v401
      %426 = vmatprep.subr.bf16.mxu0 0
      %427 = vmatpush1.bf16.msra.mxu0 0
      %428 = vmatprep.subr.bf16.mxu0 0
      %429 = vmatpush1.bf16.msra.mxu0 0
      %430 = vmatprep.subr.bf16.mxu0 0
      %431 = vmatpush1.bf16.msra.mxu0 0
      %432 = vmatprep.subr.bf16.mxu0 0
      %433 = vmatpush1.bf16.msra.mxu0 0
      %434 = vmatprep.subr.bf16.mxu0 0
      %435 = vmatpush1.bf16.msra.mxu0 0
      %436 = vmatprep.subr.bf16.mxu0 0
      %437 = vmatpush1.bf16.msra.mxu0 0
      %438 = vmatprep.subr.bf16.mxu0 0
      %439 = vmatpush1.bf16.msra.mxu0 0
      %440 = vmatprep.subr.bf16.mxu0 0
      %441 = vmatpush1.bf16.msra.mxu0 0
      %442 = vmatprep.mubr.bf16.mxu0 0
      %443 = vmatmul.mubr.bf16.gmra.mrb[0].mxu0 %v344
      %v444 = vpop.f32.mrb[0].mxu0
      %v445 = vadd.f32 0.0, %v444
      %v446 = vpop.f32.mrb[0].mxu0
      %v447 = vpop.f32.mrb[0].mxu0
      %v448 = vpop.f32.mrb[0].mxu0
      %449 = vdwg.mxu0
      %v466 = vunpack.c.l.b16 %v327
      %v467 = vunpack.c.l.b16 %v328
      %v468 = vunpack.c.l.b16 %v329
      %v469 = vunpack.c.l.b16 %v330
      %v470 = vunpack.c.l.b16 %v331
      %v471 = vunpack.c.l.b16 %v332
      %v472 = vunpack.c.l.b16 %v333
      %v473 = vunpack.c.l.b16 %v334
      %v474 = vunpack.c.l.b16 %v335
      %v475 = vunpack.c.l.b16 %v336
      %v476 = vunpack.c.l.b16 %v337
      %v477 = vunpack.c.l.b16 %v338
      %v478 = vunpack.c.l.b16 %v339
      %v479 = vunpack.c.l.b16 %v340
      %v480 = vunpack.c.l.b16 %v341
      %v481 = vunpack.c.l.b16 %v342
      %v482 = vpack.c.b16 %v467, %v466
      %v483 = vpack.c.b16 %v469, %v468
      %v484 = vpack.c.b16 %v471, %v470
      %v485 = vpack.c.b16 %v473, %v472
      %v486 = vpack.c.b16 %v475, %v474
      %v487 = vpack.c.b16 %v477, %v476
      %v488 = vpack.c.b16 %v479, %v478
      %v489 = vpack.c.b16 %v481, %v480
      %498 = vmatprep.subr.bf16.mxu0 0
      %499 = vmatpush1.bf16.msra.mxu0 %v482
      %500 = vmatprep.subr.bf16.mxu0 0
      %501 = vmatpush1.bf16.msra.mxu0 %v483
      %502 = vmatprep.subr.bf16.mxu0 0
      %503 = vmatpush1.bf16.msra.mxu0 %v484
      %504 = vmatprep.subr.bf16.mxu0 0
      %505 = vmatpush1.bf16.msra.mxu0 %v485
      %506 = vmatprep.subr.bf16.mxu0 0
      %507 = vmatpush1.bf16.msra.mxu0 %v486
      %508 = vmatprep.subr.bf16.mxu0 0
      %509 = vmatpush1.bf16.msra.mxu0 %v487
      %510 = vmatprep.subr.bf16.mxu0 0
      %511 = vmatpush1.bf16.msra.mxu0 %v488
      %512 = vmatprep.subr.bf16.mxu0 0
      %513 = vmatpush1.bf16.msra.mxu0 %v489
      %514 = vmatprep.subr.bf16.mxu0 0
      %515 = vmatpush1.bf16.msra.mxu0 0
      %516 = vmatprep.subr.bf16.mxu0 0
      %517 = vmatpush1.bf16.msra.mxu0 0
      %518 = vmatprep.subr.bf16.mxu0 0
      %519 = vmatpush1.bf16.msra.mxu0 0
      %520 = vmatprep.subr.bf16.mxu0 0
      %521 = vmatpush1.bf16.msra.mxu0 0
      %522 = vmatprep.subr.bf16.mxu0 0
      %523 = vmatpush1.bf16.msra.mxu0 0
      %524 = vmatprep.subr.bf16.mxu0 0
      %525 = vmatpush1.bf16.msra.mxu0 0
      %526 = vmatprep.subr.bf16.mxu0 0
      %527 = vmatpush1.bf16.msra.mxu0 0
      %528 = vmatprep.subr.bf16.mxu0 0
      %529 = vmatpush1.bf16.msra.mxu0 0
      %530 = vmatprep.mubr.bf16.mxu0 0
      %531 = vmatmul.mubr.bf16.gmra.mrb[0].mxu0 %v326
      %v532 = vpop.f32.mrb[0].mxu0
      %v533 = vadd.f32 %v445, %v532
      %v534 = vpop.f32.mrb[0].mxu0
      %v535 = vpop.f32.mrb[0].mxu0
      %v536 = vpop.f32.mrb[0].mxu0
      %537 = vdwg.mxu0
      %v538 = vld [vmem:[#allocation2 + $0x2] sm:$0xff]
      %v539 = vpack.c.bf16 %v538, %v538
      %s540 = scalar_lea.vmem %s4, 128
      %v541 = vld [vmem:[%s540] sm:$0xf]
      %v542 = vld [vmem:[%s540 + $0x4] sm:$0xf]
      %v543 = vld [vmem:[%s540 + $0x8] sm:$0xf]
      %v544 = vld [vmem:[%s540 + $0xc] sm:$0xf]
      %v545 = vld [vmem:[%s540 + $0x10] sm:$0xf]
      %v546 = vld [vmem:[%s540 + $0x14] sm:$0xf]
      %v547 = vld [vmem:[%s540 + $0x18] sm:$0xf]
      %v548 = vld [vmem:[%s540 + $0x1c] sm:$0xf]
      %v549 = vld [vmem:[%s540 + $0x20] sm:$0xf]
      %v550 = vld [vmem:[%s540 + $0x24] sm:$0xf]
      %v551 = vld [vmem:[%s540 + $0x28] sm:$0xf]
      %v552 = vld [vmem:[%s540 + $0x2c] sm:$0xf]
      %v553 = vld [vmem:[%s540 + $0x30] sm:$0xf]
      %v554 = vld [vmem:[%s540 + $0x34] sm:$0xf]
      %v555 = vld [vmem:[%s540 + $0x38] sm:$0xf]
      %v556 = vld [vmem:[%s540 + $0x3c] sm:$0xf]
      %v573 = vunpack.c.l.b16 %v541
      %v574 = vunpack.c.l.b16 %v542
      %v575 = vunpack.c.l.b16 %v543
      %v576 = vunpack.c.l.b16 %v544
      %v577 = vunpack.c.l.b16 %v545
      %v578 = vunpack.c.l.b16 %v546
      %v579 = vunpack.c.l.b16 %v547
      %v580 = vunpack.c.l.b16 %v548
      %v581 = vunpack.c.l.b16 %v549
      %v582 = vunpack.c.l.b16 %v550
      %v583 = vunpack.c.l.b16 %v551
      %v584 = vunpack.c.l.b16 %v552
      %v585 = vunpack.c.l.b16 %v553
      %v586 = vunpack.c.l.b16 %v554
      %v587 = vunpack.c.l.b16 %v555
      %v588 = vunpack.c.l.b16 %v556
      %v589 = vpack.c.b16 %v574, %v573
      %v590 = vpack.c.b16 %v576, %v575
      %v591 = vpack.c.b16 %v578, %v577
      %v592 = vpack.c.b16 %v580, %v579
      %v593 = vpack.c.b16 %v582, %v581
      %v594 = vpack.c.b16 %v584, %v583
      %v595 = vpack.c.b16 %v586, %v585
      %v596 = vpack.c.b16 %v588, %v587
      %605 = vmatprep.subr.bf16.mxu0 0
      %606 = vmatpush1.bf16.msra.mxu0 %v589
      %607 = vmatprep.subr.bf16.mxu0 0
      %608 = vmatpush1.bf16.msra.mxu0 %v590
      %609 = vmatprep.subr.bf16.mxu0 0
      %610 = vmatpush1.bf16.msra.mxu0 %v591
      %611 = vmatprep.subr.bf16.mxu0 0
      %612 = vmatpush1.bf16.msra.mxu0 %v592
      %613 = vmatprep.subr.bf16.mxu0 0
      %614 = vmatpush1.bf16.msra.mxu0 %v593
      %615 = vmatprep.subr.bf16.mxu0 0
      %616 = vmatpush1.bf16.msra.mxu0 %v594
      %617 = vmatprep.subr.bf16.mxu0 0
      %618 = vmatpush1.bf16.msra.mxu0 %v595
      %619 = vmatprep.subr.bf16.mxu0 0
      %620 = vmatpush1.bf16.msra.mxu0 %v596
      %621 = vmatprep.subr.bf16.mxu0 0
      %622 = vmatpush1.bf16.msra.mxu0 0
      %623 = vmatprep.subr.bf16.mxu0 0
      %624 = vmatpush1.bf16.msra.mxu0 0
      %625 = vmatprep.subr.bf16.mxu0 0
      %626 = vmatpush1.bf16.msra.mxu0 0
      %627 = vmatprep.subr.bf16.mxu0 0
      %628 = vmatpush1.bf16.msra.mxu0 0
      %629 = vmatprep.subr.bf16.mxu0 0
      %630 = vmatpush1.bf16.msra.mxu0 0
      %631 = vmatprep.subr.bf16.mxu0 0
      %632 = vmatpush1.bf16.msra.mxu0 0
      %633 = vmatprep.subr.bf16.mxu0 0
      %634 = vmatpush1.bf16.msra.mxu0 0
      %635 = vmatprep.subr.bf16.mxu0 0
      %636 = vmatpush1.bf16.msra.mxu0 0
      %637 = vmatprep.mubr.bf16.mxu0 0
      %638 = vmatmul.mubr.bf16.gmra.mrb[0].mxu0 %v539
      %v639 = vpop.f32.mrb[0].mxu0
      %v640 = vadd.f32 0.0, %v639
      %v641 = vpop.f32.mrb[0].mxu0
      %v642 = vpop.f32.mrb[0].mxu0
      %v643 = vpop.f32.mrb[0].mxu0
      %644 = vdwg.mxu0
      %v645 = vadd.f32 %v533, %v640
      %v646 = vld [vmem:[%s5] sm:$0x1]
      %v648 = vlaneseq
      %v649 = vshrl.u32 %v648, 7
      %v650 = vsub.s32 0, %v649
      %v651 = vrot.slane %v646, %v650
      %v653 = vadd.f32 %v645, %v651
      %v654 = vrot.slane %v653, 4
      %v655 = vadd.f32 %v653, %v654
      %v656 = vrot.slane %v655, 2
      %v657 = vadd.f32 %v655, %v656
      %v658 = vrot.slane %v657, 1
      %v659 = vadd.f32 %v657, %v658
      %660 = vst [vmem:[%s301] sm:$0x1] %v659
      %v661 = vmul.f32 %v653, %v653
      %v662 = vrot.slane %v661, 4
      %v663 = vadd.f32 %v661, %v662
      %v664 = vrot.slane %v663, 2
      %v665 = vadd.f32 %v663, %v664
      %v666 = vrot.slane %v665, 1
      %v667 = vadd.f32 %v665, %v666
      %668 = vst [vmem:[%s301 + $0x1] sm:$0x1] %v667
      %669 = vst [vmem:[%s297] sm:$0xff] %v653
      %p670 = scmp.lt.s32.totalorder %s19, 1
      %s671 = scalar_select %p670, %s19, 1
      %s672 = smul.addr %s671, 8
      %s673 = scalar_lea.vmem %s6, %s672
      %p674 = scmp.lt.s32.totalorder %s19, 1
      %s675 = scalar_select %p674, %s19, 1
      %s676 = smul.addr %s675, 2
      %s677 = scalar_lea.vmem %s7, %s676
      // Predicated region
      $region45: #{_lambda_.8} parent=43 // pred_check
        %p678 = pneg %p173
      $region46: #{_lambda_.8} parent=43 // pred_check_branch
        %680 = sbr.rel (%p678) target = $region48
      $region47: #{_lambda_.8} parent=43 // pred_region
        _
      $region48: #{_lambda_.8} parent=43 // pred_fallthru
        _
      // Predicated region
      $region49: #{_lambda_.8} parent=43 // pred_check
        %p681 = pneg %p199
      $region50: #{_lambda_.8} parent=43 // pred_check_branch
        %683 = sbr.rel (%p681) target = $region52
      $region51: #{_lambda_.8} parent=43 // pred_region
        _
      $region52: #{_lambda_.8} parent=43 // pred_fallthru
        _
    $region44: #{_lambda_.8} parent=5 // pred_fallthru
      _
    %p684 = scmp.le.s32.totalorder 2, %s14
    // Predicated region
    $region53: #{_lambda_.8} parent=5 // pred_check
      %p685 = pneg %p684
    $region54: #{_lambda_.8} parent=5 // pred_check_branch
      %687 = sbr.rel (%p685) target = $region56
    $region55: #{_lambda_.8} parent=5 // pred_region
      %s688 = ssub.s32 %s14, 2
      // Predicated region
      $region57: #{_lambda_.8} parent=55 // pred_check
        %p689 = pneg %p179
      $region58: #{_lambda_.8} parent=55 // pred_check_branch
        %691 = sbr.rel (%p689) target = $region60
      $region59: #{_lambda_.8} parent=55 // pred_region
        %p692 = scmp.lt.s32.totalorder %s20, 1
        %s693 = scalar_select %p692, %s20, 1
        %s694 = smul.addr %s693, 8
        %s695 = scalar_lea.vmem %s6, %s694
      $region60: #{_lambda_.8} parent=55 // pred_fallthru
        _
      // Predicated region
      $region61: #{_lambda_.8} parent=55 // pred_check
        %p696 = pneg %p205
      $region62: #{_lambda_.8} parent=55 // pred_check_branch
        %698 = sbr.rel (%p696) target = $region64
      $region63: #{_lambda_.8} parent=55 // pred_region
        %p699 = scmp.lt.s32.totalorder %s20, 1
        %s700 = scalar_select %p699, %s20, 1
        %s701 = smul.addr %s700, 2
        %s702 = scalar_lea.vmem %s7, %s701
      $region64: #{_lambda_.8} parent=55 // pred_fallthru
        _
    $region56: #{_lambda_.8} parent=5 // pred_fallthru
      _
  $region6: #{_lambda_.8} parent=0 // loop_footer
    %s18 = sadd.s32 1, %s14
  $region7: #{_lambda_.8} parent=0 // loop_footer_branch
    %13 = sbr.rel target = $region3
  $region8: #{_lambda_.8} parent=0 // loop_exit
    _

// kernel: _lambda_.9
$region0: #{_lambda_.9}
  #allocation0 [shape = 'u32[]', space=smem, size = 0x4, offset = 0x4, fixed_abs, tag = 'smem constant byte address 0x4 - core index']
  #allocation1 [shape = 'u32[144,128]{1,0:T(1,128)}', space=vmem, size = 0x12000, scoped, tag = 'internal scratch']
  #allocation2 [shape = 'f32[14,128]{1,0:T(8,128)}', space=vmem, size = 0x2000, scoped, tag = 'scratch operand']
  %s0 = inlined_call_operand.vmem [shape: f32[2,8,128], index: 0, kind: input, shape index: {}]
  %s1 = inlined_call_operand.vmem [shape: f32[1,128], index: 1, kind: input, shape index: {}]
  %s2 = inlined_call_operand.vmem [shape: f32[1,128], index: 2, kind: input, shape index: {}]
  %s3 = inlined_call_operand.vmem [shape: f32[2,8,128], index: 3, kind: input, shape index: {}]
  %s4 = inlined_call_operand.vmem [shape: bf16[7,128,24], index: 4, kind: input, shape index: {}]
  %s5 = inlined_call_operand.vmem [shape: f32[1,24], index: 5, kind: input, shape index: {}]
  %s6 = inlined_call_operand.vmem [shape: f32[2,8,24], index: 6, kind: input, shape index: {}]
  %s7 = inlined_call_operand.vmem [shape: f32[2,8,24], index: 7, kind: output, shape index: {}]
  %s8 = sld [smem:[#allocation0]]
  $region61: #{_lambda_.9} parent=0
    _
  %s10 = ssub.s32 1, %s8
  %s11 = scalar_select 0, %s10, %s8
  loop: start=0, step=1, limit=4
  $region2: #{_lambda_.9} parent=0 // loop_pre_header
    _
  $region3: #{_lambda_.9} parent=0 // loop_header
    %s13 = sphi 0, %s17
    %p14 = scmp.ge.s32.totalorder %s13, 4
    %s23 = sphi 0, %s25
    %s26 = sphi 0, %s23
    %s27 = sphi 0, %s26
    %s43 = sphi 0, %s27
    %s47 = sphi 0, %s47
    %s49 = sphi 0, %s47
    %s50 = sphi 0, %s49
    %s64 = sphi 0, %s50
    %s68 = sphi 0, %s68
    %s70 = sphi 0, %s68
    %s71 = sphi 0, %s70
    %s85 = sphi 0, %s71
    %s91 = sphi 0, %s93
    %s94 = sphi 0, %s91
    %s95 = sphi 0, %s94
    %s111 = sphi 0, %s95
    %s115 = sphi 0, %s115
    %s117 = sphi 0, %s115
    %s118 = sphi 0, %s117
    %s132 = sphi 0, %s118
    %s136 = sphi 0, %s136
    %s138 = sphi 0, %s136
    %s139 = sphi 0, %s138
    %s153 = sphi 0, %s139
    %s159 = sphi 0, %s161
    %s162 = sphi 0, %s159
    %s163 = sphi 0, %s162
    %s179 = sphi 0, %s163
    %s185 = sphi 0, %s187
    %s188 = sphi 0, %s185
    %s189 = sphi 0, %s188
    %s205 = sphi 0, %s189
  $region4: #{_lambda_.9} parent=0 // loop_header_branch
    %16 = sbr.rel (%p14) target = $region8
  $region5: #{_lambda_.9} parent=0 // loop_body
    %s18 = ssub.s32 %s13, 1
    %s19 = ssub.s32 %s13, 2
    %s20 = sadd.s32 %s13, 1
    %s21 = ssub.s32 %s13, %s20
    %p22 = scmp.eq.s32.totalorder %s21, 0
    %s24 = sadd.s32 %s23, 1
    %s25 = scalar_select %p22, %s23, %s24
    %p28 = pneg %p22
    %p29 = scmp.eq.s32.totalorder %s13, 1
    %p30 = por %p28, %p29
    %p31 = scmp.ne.s32.totalorder %s23, %s26
    %p32 = scmp.eq.s32.totalorder %s13, 0
    %p33 = por %p31, %p32
    %p34 = scmp.ne.s32.totalorder %s23, %s26
    %p35 = scmp.eq.s32.totalorder %s18, 1
    %p36 = por %p34, %p35
    %p37 = scmp.ne.s32.totalorder %s26, %s27
    %p38 = scmp.eq.s32.totalorder %s18, 0
    %p39 = por %p37, %p38
    %p40 = scmp.ne.s32.totalorder %s26, %s27
    %p41 = scmp.eq.s32.totalorder %s19, 1
    %p42 = por %p40, %p41
    %p44 = scmp.ne.s32.totalorder %s27, %s43
    %p45 = scmp.eq.s32.totalorder %s19, 0
    %p46 = por %p44, %p45
    %s48 = sadd.s32 %s47, 1
    %p51 = scmp.eq.s32.totalorder %s13, 1
    %p52 = scmp.ne.s32.totalorder %s47, %s49
    %p53 = scmp.eq.s32.totalorder %s13, 0
    %p54 = por %p52, %p53
    %p55 = scmp.ne.s32.totalorder %s47, %s49
    %p56 = scmp.eq.s32.totalorder %s18, 1
    %p57 = por %p55, %p56
    %p58 = scmp.ne.s32.totalorder %s49, %s50
    %p59 = scmp.eq.s32.totalorder %s18, 0
    %p60 = por %p58, %p59
    %p61 = scmp.ne.s32.totalorder %s49, %s50
    %p62 = scmp.eq.s32.totalorder %s19, 1
    %p63 = por %p61, %p62
    %p65 = scmp.ne.s32.totalorder %s50, %s64
    %p66 = scmp.eq.s32.totalorder %s19, 0
    %p67 = por %p65, %p66
    %s69 = sadd.s32 %s68, 1
    %p72 = scmp.eq.s32.totalorder %s13, 1
    %p73 = scmp.ne.s32.totalorder %s68, %s70
    %p74 = scmp.eq.s32.totalorder %s13, 0
    %p75 = por %p73, %p74
    %p76 = scmp.ne.s32.totalorder %s68, %s70
    %p77 = scmp.eq.s32.totalorder %s18, 1
    %p78 = por %p76, %p77
    %p79 = scmp.ne.s32.totalorder %s70, %s71
    %p80 = scmp.eq.s32.totalorder %s18, 0
    %p81 = por %p79, %p80
    %p82 = scmp.ne.s32.totalorder %s70, %s71
    %p83 = scmp.eq.s32.totalorder %s19, 1
    %p84 = por %p82, %p83
    %p86 = scmp.ne.s32.totalorder %s71, %s85
    %p87 = scmp.eq.s32.totalorder %s19, 0
    %p88 = por %p86, %p87
    %s89 = ssub.s32 %s13, %s20
    %p90 = scmp.eq.s32.totalorder %s89, 0
    %s92 = sadd.s32 %s91, 1
    %s93 = scalar_select %p90, %s91, %s92
    %p96 = pneg %p90
    %p97 = scmp.eq.s32.totalorder %s13, 1
    %p98 = por %p96, %p97
    %p99 = scmp.ne.s32.totalorder %s91, %s94
    %p100 = scmp.eq.s32.totalorder %s13, 0
    %p101 = por %p99, %p100
    %p102 = scmp.ne.s32.totalorder %s91, %s94
    %p103 = scmp.eq.s32.totalorder %s18, 1
    %p104 = por %p102, %p103
    %p105 = scmp.ne.s32.totalorder %s94, %s95
    %p106 = scmp.eq.s32.totalorder %s18, 0
    %p107 = por %p105, %p106
    %p108 = scmp.ne.s32.totalorder %s94, %s95
    %p109 = scmp.eq.s32.totalorder %s19, 1
    %p110 = por %p108, %p109
    %p112 = scmp.ne.s32.totalorder %s95, %s111
    %p113 = scmp.eq.s32.totalorder %s19, 0
    %p114 = por %p112, %p113
    %s116 = sadd.s32 %s115, 1
    %p119 = scmp.eq.s32.totalorder %s13, 1
    %p120 = scmp.ne.s32.totalorder %s115, %s117
    %p121 = scmp.eq.s32.totalorder %s13, 0
    %p122 = por %p120, %p121
    %p123 = scmp.ne.s32.totalorder %s115, %s117
    %p124 = scmp.eq.s32.totalorder %s18, 1
    %p125 = por %p123, %p124
    %p126 = scmp.ne.s32.totalorder %s117, %s118
    %p127 = scmp.eq.s32.totalorder %s18, 0
    %p128 = por %p126, %p127
    %p129 = scmp.ne.s32.totalorder %s117, %s118
    %p130 = scmp.eq.s32.totalorder %s19, 1
    %p131 = por %p129, %p130
    %p133 = scmp.ne.s32.totalorder %s118, %s132
    %p134 = scmp.eq.s32.totalorder %s19, 0
    %p135 = por %p133, %p134
    %s137 = sadd.s32 %s136, 1
    %p140 = scmp.eq.s32.totalorder %s13, 1
    %p141 = scmp.ne.s32.totalorder %s136, %s138
    %p142 = scmp.eq.s32.totalorder %s13, 0
    %p143 = por %p141, %p142
    %p144 = scmp.ne.s32.totalorder %s136, %s138
    %p145 = scmp.eq.s32.totalorder %s18, 1
    %p146 = por %p144, %p145
    %p147 = scmp.ne.s32.totalorder %s138, %s139
    %p148 = scmp.eq.s32.totalorder %s18, 0
    %p149 = por %p147, %p148
    %p150 = scmp.ne.s32.totalorder %s138, %s139
    %p151 = scmp.eq.s32.totalorder %s19, 1
    %p152 = por %p150, %p151
    %p154 = scmp.ne.s32.totalorder %s139, %s153
    %p155 = scmp.eq.s32.totalorder %s19, 0
    %p156 = por %p154, %p155
    %s157 = ssub.s32 %s13, %s20
    %p158 = scmp.eq.s32.totalorder %s157, 0
    %s160 = sadd.s32 %s159, 1
    %s161 = scalar_select %p158, %s159, %s160
    %p164 = pneg %p158
    %p165 = scmp.eq.s32.totalorder %s13, 1
    %p166 = por %p164, %p165
    %p167 = scmp.ne.s32.totalorder %s159, %s162
    %p168 = scmp.eq.s32.totalorder %s13, 0
    %p169 = por %p167, %p168
    %p170 = scmp.ne.s32.totalorder %s159, %s162
    %p171 = scmp.eq.s32.totalorder %s18, 1
    %p172 = por %p170, %p171
    %p173 = scmp.ne.s32.totalorder %s162, %s163
    %p174 = scmp.eq.s32.totalorder %s18, 0
    %p175 = por %p173, %p174
    %p176 = scmp.ne.s32.totalorder %s162, %s163
    %p177 = scmp.eq.s32.totalorder %s19, 1
    %p178 = por %p176, %p177
    %p180 = scmp.ne.s32.totalorder %s163, %s179
    %p181 = scmp.eq.s32.totalorder %s19, 0
    %p182 = por %p180, %p181
    %s183 = ssub.s32 %s13, %s20
    %p184 = scmp.eq.s32.totalorder %s183, 0
    %s186 = sadd.s32 %s185, 1
    %s187 = scalar_select %p184, %s185, %s186
    %p190 = pneg %p184
    %p191 = scmp.eq.s32.totalorder %s13, 1
    %p192 = por %p190, %p191
    %p193 = scmp.ne.s32.totalorder %s185, %s188
    %p194 = scmp.eq.s32.totalorder %s13, 0
    %p195 = por %p193, %p194
    %p196 = scmp.ne.s32.totalorder %s185, %s188
    %p197 = scmp.eq.s32.totalorder %s18, 1
    %p198 = por %p196, %p197
    %p199 = scmp.ne.s32.totalorder %s188, %s189
    %p200 = scmp.eq.s32.totalorder %s18, 0
    %p201 = por %p199, %p200
    %p202 = scmp.ne.s32.totalorder %s188, %s189
    %p203 = scmp.eq.s32.totalorder %s19, 1
    %p204 = por %p202, %p203
    %p206 = scmp.ne.s32.totalorder %s189, %s205
    %p207 = scmp.eq.s32.totalorder %s19, 0
    %p208 = por %p206, %p207
    %p209 = scmp.le.s32.totalorder 1, %s13
    %p210 = scmp.lt.s32.totalorder %s13, 3
    %p211 = pnand %p209, %p210
    %p212 = pneg %p211
    // Predicated region
    $region9: #{_lambda_.9} parent=5 // pred_check
      _
    $region10: #{_lambda_.9} parent=5 // pred_check_branch
      %214 = sbr.rel (%p211) target = $region12
    $region11: #{_lambda_.9} parent=5 // pred_region
      %s215 = ssub.s32 %s13, 1
      // Predicated region
      $region13: #{_lambda_.9} parent=11 // pred_check
        %p216 = pneg %p60
      $region14: #{_lambda_.9} parent=11 // pred_check_branch
        %218 = sbr.rel (%p216) target = $region16
      $region15: #{_lambda_.9} parent=11 // pred_region
        _
      $region16: #{_lambda_.9} parent=11 // pred_fallthru
        _
      // Predicated region
      $region17: #{_lambda_.9} parent=11 // pred_check
        %p219 = pneg %p81
      $region18: #{_lambda_.9} parent=11 // pred_check_branch
        %221 = sbr.rel (%p219) target = $region20
      $region19: #{_lambda_.9} parent=11 // pred_region
        _
      $region20: #{_lambda_.9} parent=11 // pred_fallthru
        _
      // Predicated region
      $region21: #{_lambda_.9} parent=11 // pred_check
        %p222 = pneg %p128
      $region22: #{_lambda_.9} parent=11 // pred_check_branch
        %224 = sbr.rel (%p222) target = $region24
      $region23: #{_lambda_.9} parent=11 // pred_region
        _
      $region24: #{_lambda_.9} parent=11 // pred_fallthru
        _
      // Predicated region
      $region25: #{_lambda_.9} parent=11 // pred_check
        %p225 = pneg %p149
      $region26: #{_lambda_.9} parent=11 // pred_check_branch
        %227 = sbr.rel (%p225) target = $region28
      $region27: #{_lambda_.9} parent=11 // pred_region
        _
      $region28: #{_lambda_.9} parent=11 // pred_fallthru
        _
    $region12: #{_lambda_.9} parent=5 // pred_fallthru
      _
    %p228 = scmp.lt.s32.totalorder %s13, 2
    // Predicated region
    $region29: #{_lambda_.9} parent=5 // pred_check
      %p229 = pneg %p228
    $region30: #{_lambda_.9} parent=5 // pred_check_branch
      %231 = sbr.rel (%p229) target = $region32
    $region31: #{_lambda_.9} parent=5 // pred_region
      // Predicated region
      $region33: #{_lambda_.9} parent=31 // pred_check
        %p232 = pneg %p33
      $region34: #{_lambda_.9} parent=31 // pred_check_branch
        %234 = sbr.rel (%p232) target = $region36
      $region35: #{_lambda_.9} parent=31 // pred_region
        %p235 = scmp.lt.s32.totalorder %s13, 1
        %s236 = scalar_select %p235, %s13, 1
        %s237 = smul.addr %s236, 8
        %s238 = scalar_lea.vmem %s0, %s237
      $region36: #{_lambda_.9} parent=31 // pred_fallthru
        _
      // Predicated region
      $region37: #{_lambda_.9} parent=31 // pred_check
        %p239 = pneg %p101
      $region38: #{_lambda_.9} parent=31 // pred_check_branch
        %241 = sbr.rel (%p239) target = $region40
      $region39: #{_lambda_.9} parent=31 // pred_region
        %p242 = scmp.lt.s32.totalorder %s13, 1
        %s243 = scalar_select %p242, %s13, 1
        %s244 = smul.addr %s243, 8
        %s245 = scalar_lea.vmem %s3, %s244
      $region40: #{_lambda_.9} parent=31 // pred_fallthru
        _
      // Predicated region
      $region41: #{_lambda_.9} parent=31 // pred_check
        %p246 = pneg %p169
      $region42: #{_lambda_.9} parent=31 // pred_check_branch
        %248 = sbr.rel (%p246) target = $region44
      $region43: #{_lambda_.9} parent=31 // pred_region
        %p249 = scmp.lt.s32.totalorder %s13, 1
        %s250 = scalar_select %p249, %s13, 1
        %s251 = smul.addr %s250, 8
        %s252 = scalar_lea.vmem %s6, %s251
      $region44: #{_lambda_.9} parent=31 // pred_fallthru
        _
    $region32: #{_lambda_.9} parent=5 // pred_fallthru
      _
    %p253 = scmp.le.s32.totalorder 1, %s13
    %p254 = scmp.lt.s32.totalorder %s13, 3
    %p255 = pnand %p253, %p254
    %p256 = pneg %p255
    // Predicated region
    $region45: #{_lambda_.9} parent=5 // pred_check
      _
    $region46: #{_lambda_.9} parent=5 // pred_check_branch
      %258 = sbr.rel (%p255) target = $region48
    $region47: #{_lambda_.9} parent=5 // pred_region
      %s259 = ssub.s32 %s13, 1
      %p260 = scmp.lt.s32.totalorder %s18, 1
      %s261 = scalar_select %p260, %s18, 1
      %s262 = smul.addr %s261, 8
      %s263 = scalar_lea.vmem %s0, %s262
      %p264 = pneg %p39
      %p265 = pneg %p36
      %p266 = pneg %p60
      %p267 = pneg %p57
      %p268 = pneg %p81
      %p269 = pneg %p78
      %p270 = scmp.lt.s32.totalorder %s18, 1
      %s271 = scalar_select %p270, %s18, 1
      %s272 = smul.addr %s271, 8
      %s273 = scalar_lea.vmem %s3, %s272
      %p274 = pneg %p107
      %p275 = pneg %p104
      %p276 = pneg %p128
      %p277 = pneg %p125
      %p278 = pneg %p149
      %p279 = pneg %p146
      %p280 = scmp.lt.s32.totalorder %s18, 1
      %s281 = scalar_select %p280, %s18, 1
      %s282 = smul.addr %s281, 8
      %s283 = scalar_lea.vmem %s6, %s282
      %p284 = pneg %p175
      %p285 = pneg %p172
      %p286 = pneg %p201
      %p287 = pneg %p198
      %p288 = scmp.lt.s32.totalorder %s18, 1
      %s289 = scalar_select %p288, %s18, 1
      %s290 = smul.addr %s289, 8
      %s291 = scalar_lea.vmem %s7, %s290
      %p292 = scmp.lt.s32.totalorder %s18, 1
      %s293 = scalar_select %p292, %s18, 1
      %s294 = smul.addr %s293, 8
      %s295 = scalar_lea.vmem %s0, %s294
      %p296 = scmp.lt.s32.totalorder %s18, 1
      %s297 = scalar_select %p296, %s18, 1
      %s298 = smul.addr %s297, 8
      %s299 = scalar_lea.vmem %s3, %s298
      %p300 = scmp.lt.s32.totalorder %s18, 1
      %s301 = scalar_select %p300, %s18, 1
      %s302 = smul.addr %s301, 8
      %s303 = scalar_lea.vmem %s6, %s302
      %p304 = scmp.lt.s32.totalorder %s18, 1
      %s305 = scalar_select %p304, %s18, 1
      %s306 = smul.addr %s305, 8
      %s307 = scalar_lea.vmem %s7, %s306
      %v309 = vld [vmem:[%s295] sm:$0xff]
      %v310 = vld [vmem:[%s1] sm:$0x1]
      %v312 = vlaneseq
      %v313 = vshrl.u32 %v312, 7
      %v314 = vsub.s32 0, %v313
      %v315 = vrot.slane %v310, %v314
      %v317 = vmul.f32 %v309, %v315
      %v318 = vld [vmem:[%s2] sm:$0x1]
      %v320 = vlaneseq
      %v321 = vshrl.u32 %v320, 7
      %v322 = vsub.s32 0, %v321
      %v323 = vrot.slane %v318, %v322
      %v325 = vadd.f32 %v317, %v323
      %v326 = vld [vmem:[%s299] sm:$0xff]
      %v327 = vadd.f32 %v325, %v326
      %328 = vst [vmem:[#allocation2] sm:$0x7] 0.0
      %329 = vst [vmem:[#allocation2 + $0xb] sm:$0x7] 0.0
      %330 = vst [vmem:[#allocation2 + $0x3] sm:$0xff] %v327
      %v331 = vld [vmem:[#allocation2] sm:$0xff]
      %v332 = vpack.c.bf16 %v331, %v331
      %v333 = vld [vmem:[%s4] sm:$0xf]
      %v334 = vld [vmem:[%s4 + $0x4] sm:$0xf]
      %v335 = vld [vmem:[%s4 + $0x8] sm:$0xf]
      %v336 = vld [vmem:[%s4 + $0xc] sm:$0xf]
      %v337 = vld [vmem:[%s4 + $0x10] sm:$0xf]
      %v338 = vld [vmem:[%s4 + $0x14] sm:$0xf]
      %v339 = vld [vmem:[%s4 + $0x18] sm:$0xf]
      %v340 = vld [vmem:[%s4 + $0x1c] sm:$0xf]
      %v341 = vld [vmem:[%s4 + $0x20] sm:$0xf]
      %v342 = vld [vmem:[%s4 + $0x24] sm:$0xf]
      %v343 = vld [vmem:[%s4 + $0x28] sm:$0xf]
      %v344 = vld [vmem:[%s4 + $0x2c] sm:$0xf]
      %v345 = vld [vmem:[%s4 + $0x30] sm:$0xf]
      %v346 = vld [vmem:[%s4 + $0x34] sm:$0xf]
      %v347 = vld [vmem:[%s4 + $0x38] sm:$0xf]
      %v348 = vld [vmem:[%s4 + $0x3c] sm:$0xf]
      %v349 = vld [vmem:[#allocation2 + $0x1] sm:$0xff]
      %v350 = vpack.c.bf16 %v349, %v349
      %s351 = scalar_lea.vmem %s4, 64
      %v352 = vld [vmem:[%s351] sm:$0xf]
      %v353 = vld [vmem:[%s351 + $0x4] sm:$0xf]
      %v354 = vld [vmem:[%s351 + $0x8] sm:$0xf]
      %v355 = vld [vmem:[%s351 + $0xc] sm:$0xf]
      %v356 = vld [vmem:[%s351 + $0x10] sm:$0xf]
      %v357 = vld [vmem:[%s351 + $0x14] sm:$0xf]
      %v358 = vld [vmem:[%s351 + $0x18] sm:$0xf]
      %v359 = vld [vmem:[%s351 + $0x1c] sm:$0xf]
      %v360 = vld [vmem:[%s351 + $0x20] sm:$0xf]
      %v361 = vld [vmem:[%s351 + $0x24] sm:$0xf]
      %v362 = vld [vmem:[%s351 + $0x28] sm:$0xf]
      %v363 = vld [vmem:[%s351 + $0x2c] sm:$0xf]
      %v364 = vld [vmem:[%s351 + $0x30] sm:$0xf]
      %v365 = vld [vmem:[%s351 + $0x34] sm:$0xf]
      %v366 = vld [vmem:[%s351 + $0x38] sm:$0xf]
      %v367 = vld [vmem:[%s351 + $0x3c] sm:$0xf]
      %v384 = vunpack.c.l.b16 %v352
      %v385 = vunpack.c.l.b16 %v353
      %v386 = vunpack.c.l.b16 %v354
      %v387 = vunpack.c.l.b16 %v355
      %v388 = vunpack.c.l.b16 %v356
      %v389 = vunpack.c.l.b16 %v357
      %v390 = vunpack.c.l.b16 %v358
      %v391 = vunpack.c.l.b16 %v359
      %v392 = vunpack.c.l.b16 %v360
      %v393 = vunpack.c.l.b16 %v361
      %v394 = vunpack.c.l.b16 %v362
      %v395 = vunpack.c.l.b16 %v363
      %v396 = vunpack.c.l.b16 %v364
      %v397 = vunpack.c.l.b16 %v365
      %v398 = vunpack.c.l.b16 %v366
      %v399 = vunpack.c.l.b16 %v367
      %v400 = vpack.c.b16 %v385, %v384
      %v401 = vpack.c.b16 %v387, %v386
      %v402 = vpack.c.b16 %v389, %v388
      %v403 = vpack.c.b16 %v391, %v390
      %v404 = vpack.c.b16 %v393, %v392
      %v405 = vpack.c.b16 %v395, %v394
      %v406 = vpack.c.b16 %v397, %v396
      %v407 = vpack.c.b16 %v399, %v398
      %416 = vmatprep.subr.bf16.mxu0 0
      %417 = vmatpush1.bf16.msra.mxu0 %v400
      %418 = vmatprep.subr.bf16.mxu0 0
      %419 = vmatpush1.bf16.msra.mxu0 %v401
      %420 = vmatprep.subr.bf16.mxu0 0
      %421 = vmatpush1.bf16.msra.mxu0 %v402
      %422 = vmatprep.subr.bf16.mxu0 0
      %423 = vmatpush1.bf16.msra.mxu0 %v403
      %424 = vmatprep.subr.bf16.mxu0 0
      %425 = vmatpush1.bf16.msra.mxu0 %v404
      %426 = vmatprep.subr.bf16.mxu0 0
      %427 = vmatpush1.bf16.msra.mxu0 %v405
      %428 = vmatprep.subr.bf16.mxu0 0
      %429 = vmatpush1.bf16.msra.mxu0 %v406
      %430 = vmatprep.subr.bf16.mxu0 0
      %431 = vmatpush1.bf16.msra.mxu0 %v407
      %432 = vmatprep.subr.bf16.mxu0 0
      %433 = vmatpush1.bf16.msra.mxu0 0
      %434 = vmatprep.subr.bf16.mxu0 0
      %435 = vmatpush1.bf16.msra.mxu0 0
      %436 = vmatprep.subr.bf16.mxu0 0
      %437 = vmatpush1.bf16.msra.mxu0 0
      %438 = vmatprep.subr.bf16.mxu0 0
      %439 = vmatpush1.bf16.msra.mxu0 0
      %440 = vmatprep.subr.bf16.mxu0 0
      %441 = vmatpush1.bf16.msra.mxu0 0
      %442 = vmatprep.subr.bf16.mxu0 0
      %443 = vmatpush1.bf16.msra.mxu0 0
      %444 = vmatprep.subr.bf16.mxu0 0
      %445 = vmatpush1.bf16.msra.mxu0 0
      %446 = vmatprep.subr.bf16.mxu0 0
      %447 = vmatpush1.bf16.msra.mxu0 0
      %448 = vmatprep.mubr.bf16.mxu0 0
      %449 = vmatmul.mubr.bf16.gmra.mrb[0].mxu0 %v350
      %v450 = vpop.f32.mrb[0].mxu0
      %v451 = vadd.f32 0.0, %v450
      %v452 = vpop.f32.mrb[0].mxu0
      %v453 = vpop.f32.mrb[0].mxu0
      %v454 = vpop.f32.mrb[0].mxu0
      %455 = vdwg.mxu0
      %v472 = vunpack.c.l.b16 %v333
      %v473 = vunpack.c.l.b16 %v334
      %v474 = vunpack.c.l.b16 %v335
      %v475 = vunpack.c.l.b16 %v336
      %v476 = vunpack.c.l.b16 %v337
      %v477 = vunpack.c.l.b16 %v338
      %v478 = vunpack.c.l.b16 %v339
      %v479 = vunpack.c.l.b16 %v340
      %v480 = vunpack.c.l.b16 %v341
      %v481 = vunpack.c.l.b16 %v342
      %v482 = vunpack.c.l.b16 %v343
      %v483 = vunpack.c.l.b16 %v344
      %v484 = vunpack.c.l.b16 %v345
      %v485 = vunpack.c.l.b16 %v346
      %v486 = vunpack.c.l.b16 %v347
      %v487 = vunpack.c.l.b16 %v348
      %v488 = vpack.c.b16 %v473, %v472
      %v489 = vpack.c.b16 %v475, %v474
      %v490 = vpack.c.b16 %v477, %v476
      %v491 = vpack.c.b16 %v479, %v478
      %v492 = vpack.c.b16 %v481, %v480
      %v493 = vpack.c.b16 %v483, %v482
      %v494 = vpack.c.b16 %v485, %v484
      %v495 = vpack.c.b16 %v487, %v486
      %504 = vmatprep.subr.bf16.mxu0 0
      %505 = vmatpush1.bf16.msra.mxu0 %v488
      %506 = vmatprep.subr.bf16.mxu0 0
      %507 = vmatpush1.bf16.msra.mxu0 %v489
      %508 = vmatprep.subr.bf16.mxu0 0
      %509 = vmatpush1.bf16.msra.mxu0 %v490
      %510 = vmatprep.subr.bf16.mxu0 0
      %511 = vmatpush1.bf16.msra.mxu0 %v491
      %512 = vmatprep.subr.bf16.mxu0 0
      %513 = vmatpush1.bf16.msra.mxu0 %v492
      %514 = vmatprep.subr.bf16.mxu0 0
      %515 = vmatpush1.bf16.msra.mxu0 %v493
      %516 = vmatprep.subr.bf16.mxu0 0
      %517 = vmatpush1.bf16.msra.mxu0 %v494
      %518 = vmatprep.subr.bf16.mxu0 0
      %519 = vmatpush1.bf16.msra.mxu0 %v495
      %520 = vmatprep.subr.bf16.mxu0 0
      %521 = vmatpush1.bf16.msra.mxu0 0
      %522 = vmatprep.subr.bf16.mxu0 0
      %523 = vmatpush1.bf16.msra.mxu0 0
      %524 = vmatprep.subr.bf16.mxu0 0
      %525 = vmatpush1.bf16.msra.mxu0 0
      %526 = vmatprep.subr.bf16.mxu0 0
      %527 = vmatpush1.bf16.msra.mxu0 0
      %528 = vmatprep.subr.bf16.mxu0 0
      %529 = vmatpush1.bf16.msra.mxu0 0
      %530 = vmatprep.subr.bf16.mxu0 0
      %531 = vmatpush1.bf16.msra.mxu0 0
      %532 = vmatprep.subr.bf16.mxu0 0
      %533 = vmatpush1.bf16.msra.mxu0 0
      %534 = vmatprep.subr.bf16.mxu0 0
      %535 = vmatpush1.bf16.msra.mxu0 0
      %536 = vmatprep.mubr.bf16.mxu0 0
      %537 = vmatmul.mubr.bf16.gmra.mrb[0].mxu0 %v332
      %v538 = vpop.f32.mrb[0].mxu0
      %v539 = vadd.f32 %v451, %v538
      %v540 = vpop.f32.mrb[0].mxu0
      %v541 = vpop.f32.mrb[0].mxu0
      %v542 = vpop.f32.mrb[0].mxu0
      %543 = vdwg.mxu0
      %v544 = vld [vmem:[#allocation2 + $0x2] sm:$0xff]
      %v545 = vpack.c.bf16 %v544, %v544
      %s546 = scalar_lea.vmem %s4, 128
      %v547 = vld [vmem:[%s546] sm:$0xf]
      %v548 = vld [vmem:[%s546 + $0x4] sm:$0xf]
      %v549 = vld [vmem:[%s546 + $0x8] sm:$0xf]
      %v550 = vld [vmem:[%s546 + $0xc] sm:$0xf]
      %v551 = vld [vmem:[%s546 + $0x10] sm:$0xf]
      %v552 = vld [vmem:[%s546 + $0x14] sm:$0xf]
      %v553 = vld [vmem:[%s546 + $0x18] sm:$0xf]
      %v554 = vld [vmem:[%s546 + $0x1c] sm:$0xf]
      %v555 = vld [vmem:[%s546 + $0x20] sm:$0xf]
      %v556 = vld [vmem:[%s546 + $0x24] sm:$0xf]
      %v557 = vld [vmem:[%s546 + $0x28] sm:$0xf]
      %v558 = vld [vmem:[%s546 + $0x2c] sm:$0xf]
      %v559 = vld [vmem:[%s546 + $0x30] sm:$0xf]
      %v560 = vld [vmem:[%s546 + $0x34] sm:$0xf]
      %v561 = vld [vmem:[%s546 + $0x38] sm:$0xf]
      %v562 = vld [vmem:[%s546 + $0x3c] sm:$0xf]
      %v579 = vunpack.c.l.b16 %v547
      %v580 = vunpack.c.l.b16 %v548
      %v581 = vunpack.c.l.b16 %v549
      %v582 = vunpack.c.l.b16 %v550
      %v583 = vunpack.c.l.b16 %v551
      %v584 = vunpack.c.l.b16 %v552
      %v585 = vunpack.c.l.b16 %v553
      %v586 = vunpack.c.l.b16 %v554
      %v587 = vunpack.c.l.b16 %v555
      %v588 = vunpack.c.l.b16 %v556
      %v589 = vunpack.c.l.b16 %v557
      %v590 = vunpack.c.l.b16 %v558
      %v591 = vunpack.c.l.b16 %v559
      %v592 = vunpack.c.l.b16 %v560
      %v593 = vunpack.c.l.b16 %v561
      %v594 = vunpack.c.l.b16 %v562
      %v595 = vpack.c.b16 %v580, %v579
      %v596 = vpack.c.b16 %v582, %v581
      %v597 = vpack.c.b16 %v584, %v583
      %v598 = vpack.c.b16 %v586, %v585
      %v599 = vpack.c.b16 %v588, %v587
      %v600 = vpack.c.b16 %v590, %v589
      %v601 = vpack.c.b16 %v592, %v591
      %v602 = vpack.c.b16 %v594, %v593
      %611 = vmatprep.subr.bf16.mxu0 0
      %612 = vmatpush1.bf16.msra.mxu0 %v595
      %613 = vmatprep.subr.bf16.mxu0 0
      %614 = vmatpush1.bf16.msra.mxu0 %v596
      %615 = vmatprep.subr.bf16.mxu0 0
      %616 = vmatpush1.bf16.msra.mxu0 %v597
      %617 = vmatprep.subr.bf16.mxu0 0
      %618 = vmatpush1.bf16.msra.mxu0 %v598
      %619 = vmatprep.subr.bf16.mxu0 0
      %620 = vmatpush1.bf16.msra.mxu0 %v599
      %621 = vmatprep.subr.bf16.mxu0 0
      %622 = vmatpush1.bf16.msra.mxu0 %v600
      %623 = vmatprep.subr.bf16.mxu0 0
      %624 = vmatpush1.bf16.msra.mxu0 %v601
      %625 = vmatprep.subr.bf16.mxu0 0
      %626 = vmatpush1.bf16.msra.mxu0 %v602
      %627 = vmatprep.subr.bf16.mxu0 0
      %628 = vmatpush1.bf16.msra.mxu0 0
      %629 = vmatprep.subr.bf16.mxu0 0
      %630 = vmatpush1.bf16.msra.mxu0 0
      %631 = vmatprep.subr.bf16.mxu0 0
      %632 = vmatpush1.bf16.msra.mxu0 0
      %633 = vmatprep.subr.bf16.mxu0 0
      %634 = vmatpush1.bf16.msra.mxu0 0
      %635 = vmatprep.subr.bf16.mxu0 0
      %636 = vmatpush1.bf16.msra.mxu0 0
      %637 = vmatprep.subr.bf16.mxu0 0
      %638 = vmatpush1.bf16.msra.mxu0 0
      %639 = vmatprep.subr.bf16.mxu0 0
      %640 = vmatpush1.bf16.msra.mxu0 0
      %641 = vmatprep.subr.bf16.mxu0 0
      %642 = vmatpush1.bf16.msra.mxu0 0
      %643 = vmatprep.mubr.bf16.mxu0 0
      %644 = vmatmul.mubr.bf16.gmra.mrb[0].mxu0 %v545
      %v645 = vpop.f32.mrb[0].mxu0
      %v646 = vadd.f32 0.0, %v645
      %v647 = vpop.f32.mrb[0].mxu0
      %v648 = vpop.f32.mrb[0].mxu0
      %v649 = vpop.f32.mrb[0].mxu0
      %650 = vdwg.mxu0
      %v651 = vadd.f32 %v539, %v646
      %v652 = vld [vmem:[#allocation2 + $0x3] sm:$0xff]
      %v653 = vpack.c.bf16 %v652, %v652
      %s654 = scalar_lea.vmem %s4, 192
      %v655 = vld [vmem:[%s654] sm:$0xf]
      %v656 = vld [vmem:[%s654 + $0x4] sm:$0xf]
      %v657 = vld [vmem:[%s654 + $0x8] sm:$0xf]
      %v658 = vld [vmem:[%s654 + $0xc] sm:$0xf]
      %v659 = vld [vmem:[%s654 + $0x10] sm:$0xf]
      %v660 = vld [vmem:[%s654 + $0x14] sm:$0xf]
      %v661 = vld [vmem:[%s654 + $0x18] sm:$0xf]
      %v662 = vld [vmem:[%s654 + $0x1c] sm:$0xf]
      %v663 = vld [vmem:[%s654 + $0x20] sm:$0xf]
      %v664 = vld [vmem:[%s654 + $0x24] sm:$0xf]
      %v665 = vld [vmem:[%s654 + $0x28] sm:$0xf]
      %v666 = vld [vmem:[%s654 + $0x2c] sm:$0xf]
      %v667 = vld [vmem:[%s654 + $0x30] sm:$0xf]
      %v668 = vld [vmem:[%s654 + $0x34] sm:$0xf]
      %v669 = vld [vmem:[%s654 + $0x38] sm:$0xf]
      %v670 = vld [vmem:[%s654 + $0x3c] sm:$0xf]
      %v687 = vunpack.c.l.b16 %v655
      %v688 = vunpack.c.l.b16 %v656
      %v689 = vunpack.c.l.b16 %v657
      %v690 = vunpack.c.l.b16 %v658
      %v691 = vunpack.c.l.b16 %v659
      %v692 = vunpack.c.l.b16 %v660
      %v693 = vunpack.c.l.b16 %v661
      %v694 = vunpack.c.l.b16 %v662
      %v695 = vunpack.c.l.b16 %v663
      %v696 = vunpack.c.l.b16 %v664
      %v697 = vunpack.c.l.b16 %v665
      %v698 = vunpack.c.l.b16 %v666
      %v699 = vunpack.c.l.b16 %v667
      %v700 = vunpack.c.l.b16 %v668
      %v701 = vunpack.c.l.b16 %v669
      %v702 = vunpack.c.l.b16 %v670
      %v703 = vpack.c.b16 %v688, %v687
      %v704 = vpack.c.b16 %v690, %v689
      %v705 = vpack.c.b16 %v692, %v691
      %v706 = vpack.c.b16 %v694, %v693
      %v707 = vpack.c.b16 %v696, %v695
      %v708 = vpack.c.b16 %v698, %v697
      %v709 = vpack.c.b16 %v700, %v699
      %v710 = vpack.c.b16 %v702, %v701
      %719 = vmatprep.subr.bf16.mxu0 0
      %720 = vmatpush1.bf16.msra.mxu0 %v703
      %721 = vmatprep.subr.bf16.mxu0 0
      %722 = vmatpush1.bf16.msra.mxu0 %v704
      %723 = vmatprep.subr.bf16.mxu0 0
      %724 = vmatpush1.bf16.msra.mxu0 %v705
      %725 = vmatprep.subr.bf16.mxu0 0
      %726 = vmatpush1.bf16.msra.mxu0 %v706
      %727 = vmatprep.subr.bf16.mxu0 0
      %728 = vmatpush1.bf16.msra.mxu0 %v707
      %729 = vmatprep.subr.bf16.mxu0 0
      %730 = vmatpush1.bf16.msra.mxu0 %v708
      %731 = vmatprep.subr.bf16.mxu0 0
      %732 = vmatpush1.bf16.msra.mxu0 %v709
      %733 = vmatprep.subr.bf16.mxu0 0
      %734 = vmatpush1.bf16.msra.mxu0 %v710
      %735 = vmatprep.subr.bf16.mxu0 0
      %736 = vmatpush1.bf16.msra.mxu0 0
      %737 = vmatprep.subr.bf16.mxu0 0
      %738 = vmatpush1.bf16.msra.mxu0 0
      %739 = vmatprep.subr.bf16.mxu0 0
      %740 = vmatpush1.bf16.msra.mxu0 0
      %741 = vmatprep.subr.bf16.mxu0 0
      %742 = vmatpush1.bf16.msra.mxu0 0
      %743 = vmatprep.subr.bf16.mxu0 0
      %744 = vmatpush1.bf16.msra.mxu0 0
      %745 = vmatprep.subr.bf16.mxu0 0
      %746 = vmatpush1.bf16.msra.mxu0 0
      %747 = vmatprep.subr.bf16.mxu0 0
      %748 = vmatpush1.bf16.msra.mxu0 0
      %749 = vmatprep.subr.bf16.mxu0 0
      %750 = vmatpush1.bf16.msra.mxu0 0
      %751 = vmatprep.mubr.bf16.mxu0 0
      %752 = vmatmul.mubr.bf16.gmra.mrb[0].mxu0 %v653
      %v753 = vpop.f32.mrb[0].mxu0
      %v754 = vadd.f32 0.0, %v753
      %v755 = vpop.f32.mrb[0].mxu0
      %v756 = vpop.f32.mrb[0].mxu0
      %v757 = vpop.f32.mrb[0].mxu0
      %758 = vdwg.mxu0
      %v759 = vadd.f32 %v651, %v754
      %v760 = vld [vmem:[#allocation2 + $0x4] sm:$0xff]
      %v761 = vpack.c.bf16 %v760, %v760
      %s762 = scalar_lea.vmem %s4, 256
      %v763 = vld [vmem:[%s762] sm:$0xf]
      %v764 = vld [vmem:[%s762 + $0x4] sm:$0xf]
      %v765 = vld [vmem:[%s762 + $0x8] sm:$0xf]
      %v766 = vld [vmem:[%s762 + $0xc] sm:$0xf]
      %v767 = vld [vmem:[%s762 + $0x10] sm:$0xf]
      %v768 = vld [vmem:[%s762 + $0x14] sm:$0xf]
      %v769 = vld [vmem:[%s762 + $0x18] sm:$0xf]
      %v770 = vld [vmem:[%s762 + $0x1c] sm:$0xf]
      %v771 = vld [vmem:[%s762 + $0x20] sm:$0xf]
      %v772 = vld [vmem:[%s762 + $0x24] sm:$0xf]
      %v773 = vld [vmem:[%s762 + $0x28] sm:$0xf]
      %v774 = vld [vmem:[%s762 + $0x2c] sm:$0xf]
      %v775 = vld [vmem:[%s762 + $0x30] sm:$0xf]
      %v776 = vld [vmem:[%s762 + $0x34] sm:$0xf]
      %v777 = vld [vmem:[%s762 + $0x38] sm:$0xf]
      %v778 = vld [vmem:[%s762 + $0x3c] sm:$0xf]
      %v795 = vunpack.c.l.b16 %v763
      %v796 = vunpack.c.l.b16 %v764
      %v797 = vunpack.c.l.b16 %v765
      %v798 = vunpack.c.l.b16 %v766
      %v799 = vunpack.c.l.b16 %v767
      %v800 = vunpack.c.l.b16 %v768
      %v801 = vunpack.c.l.b16 %v769
      %v802 = vunpack.c.l.b16 %v770
      %v803 = vunpack.c.l.b16 %v771
      %v804 = vunpack.c.l.b16 %v772
      %v805 = vunpack.c.l.b16 %v773
      %v806 = vunpack.c.l.b16 %v774
      %v807 = vunpack.c.l.b16 %v775
      %v808 = vunpack.c.l.b16 %v776
      %v809 = vunpack.c.l.b16 %v777
      %v810 = vunpack.c.l.b16 %v778
      %v811 = vpack.c.b16 %v796, %v795
      %v812 = vpack.c.b16 %v798, %v797
      %v813 = vpack.c.b16 %v800, %v799
      %v814 = vpack.c.b16 %v802, %v801
      %v815 = vpack.c.b16 %v804, %v803
      %v816 = vpack.c.b16 %v806, %v805
      %v817 = vpack.c.b16 %v808, %v807
      %v818 = vpack.c.b16 %v810, %v809
      %827 = vmatprep.subr.bf16.mxu0 0
      %828 = vmatpush1.bf16.msra.mxu0 %v811
      %829 = vmatprep.subr.bf16.mxu0 0
      %830 = vmatpush1.bf16.msra.mxu0 %v812
      %831 = vmatprep.subr.bf16.mxu0 0
      %832 = vmatpush1.bf16.msra.mxu0 %v813
      %833 = vmatprep.subr.bf16.mxu0 0
      %834 = vmatpush1.bf16.msra.mxu0 %v814
      %835 = vmatprep.subr.bf16.mxu0 0
      %836 = vmatpush1.bf16.msra.mxu0 %v815
      %837 = vmatprep.subr.bf16.mxu0 0
      %838 = vmatpush1.bf16.msra.mxu0 %v816
      %839 = vmatprep.subr.bf16.mxu0 0
      %840 = vmatpush1.bf16.msra.mxu0 %v817
      %841 = vmatprep.subr.bf16.mxu0 0
      %842 = vmatpush1.bf16.msra.mxu0 %v818
      %843 = vmatprep.subr.bf16.mxu0 0
      %844 = vmatpush1.bf16.msra.mxu0 0
      %845 = vmatprep.subr.bf16.mxu0 0
      %846 = vmatpush1.bf16.msra.mxu0 0
      %847 = vmatprep.subr.bf16.mxu0 0
      %848 = vmatpush1.bf16.msra.mxu0 0
      %849 = vmatprep.subr.bf16.mxu0 0
      %850 = vmatpush1.bf16.msra.mxu0 0
      %851 = vmatprep.subr.bf16.mxu0 0
      %852 = vmatpush1.bf16.msra.mxu0 0
      %853 = vmatprep.subr.bf16.mxu0 0
      %854 = vmatpush1.bf16.msra.mxu0 0
      %855 = vmatprep.subr.bf16.mxu0 0
      %856 = vmatpush1.bf16.msra.mxu0 0
      %857 = vmatprep.subr.bf16.mxu0 0
      %858 = vmatpush1.bf16.msra.mxu0 0
      %859 = vmatprep.mubr.bf16.mxu0 0
      %860 = vmatmul.mubr.bf16.gmra.mrb[0].mxu0 %v761
      %v861 = vpop.f32.mrb[0].mxu0
      %v862 = vadd.f32 0.0, %v861
      %v863 = vpop.f32.mrb[0].mxu0
      %v864 = vpop.f32.mrb[0].mxu0
      %v865 = vpop.f32.mrb[0].mxu0
      %866 = vdwg.mxu0
      %v867 = vadd.f32 %v759, %v862
      %v868 = vld [vmem:[#allocation2 + $0x5] sm:$0xff]
      %v869 = vpack.c.bf16 %v868, %v868
      %s870 = scalar_lea.vmem %s4, 320
      %v871 = vld [vmem:[%s870] sm:$0xf]
      %v872 = vld [vmem:[%s870 + $0x4] sm:$0xf]
      %v873 = vld [vmem:[%s870 + $0x8] sm:$0xf]
      %v874 = vld [vmem:[%s870 + $0xc] sm:$0xf]
      %v875 = vld [vmem:[%s870 + $0x10] sm:$0xf]
      %v876 = vld [vmem:[%s870 + $0x14] sm:$0xf]
      %v877 = vld [vmem:[%s870 + $0x18] sm:$0xf]
      %v878 = vld [vmem:[%s870 + $0x1c] sm:$0xf]
      %v879 = vld [vmem:[%s870 + $0x20] sm:$0xf]
      %v880 = vld [vmem:[%s870 + $0x24] sm:$0xf]
      %v881 = vld [vmem:[%s870 + $0x28] sm:$0xf]
      %v882 = vld [vmem:[%s870 + $0x2c] sm:$0xf]
      %v883 = vld [vmem:[%s870 + $0x30] sm:$0xf]
      %v884 = vld [vmem:[%s870 + $0x34] sm:$0xf]
      %v885 = vld [vmem:[%s870 + $0x38] sm:$0xf]
      %v886 = vld [vmem:[%s870 + $0x3c] sm:$0xf]
      %v903 = vunpack.c.l.b16 %v871
      %v904 = vunpack.c.l.b16 %v872
      %v905 = vunpack.c.l.b16 %v873
      %v906 = vunpack.c.l.b16 %v874
      %v907 = vunpack.c.l.b16 %v875
      %v908 = vunpack.c.l.b16 %v876
      %v909 = vunpack.c.l.b16 %v877
      %v910 = vunpack.c.l.b16 %v878
      %v911 = vunpack.c.l.b16 %v879
      %v912 = vunpack.c.l.b16 %v880
      %v913 = vunpack.c.l.b16 %v881
      %v914 = vunpack.c.l.b16 %v882
      %v915 = vunpack.c.l.b16 %v883
      %v916 = vunpack.c.l.b16 %v884
      %v917 = vunpack.c.l.b16 %v885
      %v918 = vunpack.c.l.b16 %v886
      %v919 = vpack.c.b16 %v904, %v903
      %v920 = vpack.c.b16 %v906, %v905
      %v921 = vpack.c.b16 %v908, %v907
      %v922 = vpack.c.b16 %v910, %v909
      %v923 = vpack.c.b16 %v912, %v911
      %v924 = vpack.c.b16 %v914, %v913
      %v925 = vpack.c.b16 %v916, %v915
      %v926 = vpack.c.b16 %v918, %v917
      %935 = vmatprep.subr.bf16.mxu0 0
      %936 = vmatpush1.bf16.msra.mxu0 %v919
      %937 = vmatprep.subr.bf16.mxu0 0
      %938 = vmatpush1.bf16.msra.mxu0 %v920
      %939 = vmatprep.subr.bf16.mxu0 0
      %940 = vmatpush1.bf16.msra.mxu0 %v921
      %941 = vmatprep.subr.bf16.mxu0 0
      %942 = vmatpush1.bf16.msra.mxu0 %v922
      %943 = vmatprep.subr.bf16.mxu0 0
      %944 = vmatpush1.bf16.msra.mxu0 %v923
      %945 = vmatprep.subr.bf16.mxu0 0
      %946 = vmatpush1.bf16.msra.mxu0 %v924
      %947 = vmatprep.subr.bf16.mxu0 0
      %948 = vmatpush1.bf16.msra.mxu0 %v925
      %949 = vmatprep.subr.bf16.mxu0 0
      %950 = vmatpush1.bf16.msra.mxu0 %v926
      %951 = vmatprep.subr.bf16.mxu0 0
      %952 = vmatpush1.bf16.msra.mxu0 0
      %953 = vmatprep.subr.bf16.mxu0 0
      %954 = vmatpush1.bf16.msra.mxu0 0
      %955 = vmatprep.subr.bf16.mxu0 0
      %956 = vmatpush1.bf16.msra.mxu0 0
      %957 = vmatprep.subr.bf16.mxu0 0
      %958 = vmatpush1.bf16.msra.mxu0 0
      %959 = vmatprep.subr.bf16.mxu0 0
      %960 = vmatpush1.bf16.msra.mxu0 0
      %961 = vmatprep.subr.bf16.mxu0 0
      %962 = vmatpush1.bf16.msra.mxu0 0
      %963 = vmatprep.subr.bf16.mxu0 0
      %964 = vmatpush1.bf16.msra.mxu0 0
      %965 = vmatprep.subr.bf16.mxu0 0
      %966 = vmatpush1.bf16.msra.mxu0 0
      %967 = vmatprep.mubr.bf16.mxu0 0
      %968 = vmatmul.mubr.bf16.gmra.mrb[0].mxu0 %v869
      %v969 = vpop.f32.mrb[0].mxu0
      %v970 = vadd.f32 0.0, %v969
      %v971 = vpop.f32.mrb[0].mxu0
      %v972 = vpop.f32.mrb[0].mxu0
      %v973 = vpop.f32.mrb[0].mxu0
      %974 = vdwg.mxu0
      %v975 = vadd.f32 %v867, %v970
      %v976 = vld [vmem:[#allocation2 + $0x6] sm:$0xff]
      %v977 = vpack.c.bf16 %v976, %v976
      %s978 = scalar_lea.vmem %s4, 384
      %v979 = vld [vmem:[%s978] sm:$0xf]
      %v980 = vld [vmem:[%s978 + $0x4] sm:$0xf]
      %v981 = vld [vmem:[%s978 + $0x8] sm:$0xf]
      %v982 = vld [vmem:[%s978 + $0xc] sm:$0xf]
      %v983 = vld [vmem:[%s978 + $0x10] sm:$0xf]
      %v984 = vld [vmem:[%s978 + $0x14] sm:$0xf]
      %v985 = vld [vmem:[%s978 + $0x18] sm:$0xf]
      %v986 = vld [vmem:[%s978 + $0x1c] sm:$0xf]
      %v987 = vld [vmem:[%s978 + $0x20] sm:$0xf]
      %v988 = vld [vmem:[%s978 + $0x24] sm:$0xf]
      %v989 = vld [vmem:[%s978 + $0x28] sm:$0xf]
      %v990 = vld [vmem:[%s978 + $0x2c] sm:$0xf]
      %v991 = vld [vmem:[%s978 + $0x30] sm:$0xf]
      %v992 = vld [vmem:[%s978 + $0x34] sm:$0xf]
      %v993 = vld [vmem:[%s978 + $0x38] sm:$0xf]
      %v994 = vld [vmem:[%s978 + $0x3c] sm:$0xf]
      %v1011 = vunpack.c.l.b16 %v979
      %v1012 = vunpack.c.l.b16 %v980
      %v1013 = vunpack.c.l.b16 %v981
      %v1014 = vunpack.c.l.b16 %v982
      %v1015 = vunpack.c.l.b16 %v983
      %v1016 = vunpack.c.l.b16 %v984
      %v1017 = vunpack.c.l.b16 %v985
      %v1018 = vunpack.c.l.b16 %v986
      %v1019 = vunpack.c.l.b16 %v987
      %v1020 = vunpack.c.l.b16 %v988
      %v1021 = vunpack.c.l.b16 %v989
      %v1022 = vunpack.c.l.b16 %v990
      %v1023 = vunpack.c.l.b16 %v991
      %v1024 = vunpack.c.l.b16 %v992
      %v1025 = vunpack.c.l.b16 %v993
      %v1026 = vunpack.c.l.b16 %v994
      %v1027 = vpack.c.b16 %v1012, %v1011
      %v1028 = vpack.c.b16 %v1014, %v1013
      %v1029 = vpack.c.b16 %v1016, %v1015
      %v1030 = vpack.c.b16 %v1018, %v1017
      %v1031 = vpack.c.b16 %v1020, %v1019
      %v1032 = vpack.c.b16 %v1022, %v1021
      %v1033 = vpack.c.b16 %v1024, %v1023
      %v1034 = vpack.c.b16 %v1026, %v1025
      %1043 = vmatprep.subr.bf16.mxu0 0
      %1044 = vmatpush1.bf16.msra.mxu0 %v1027
      %1045 = vmatprep.subr.bf16.mxu0 0
      %1046 = vmatpush1.bf16.msra.mxu0 %v1028
      %1047 = vmatprep.subr.bf16.mxu0 0
      %1048 = vmatpush1.bf16.msra.mxu0 %v1029
      %1049 = vmatprep.subr.bf16.mxu0 0
      %1050 = vmatpush1.bf16.msra.mxu0 %v1030
      %1051 = vmatprep.subr.bf16.mxu0 0
      %1052 = vmatpush1.bf16.msra.mxu0 %v1031
      %1053 = vmatprep.subr.bf16.mxu0 0
      %1054 = vmatpush1.bf16.msra.mxu0 %v1032
      %1055 = vmatprep.subr.bf16.mxu0 0
      %1056 = vmatpush1.bf16.msra.mxu0 %v1033
      %1057 = vmatprep.subr.bf16.mxu0 0
      %1058 = vmatpush1.bf16.msra.mxu0 %v1034
      %1059 = vmatprep.subr.bf16.mxu0 0
      %1060 = vmatpush1.bf16.msra.mxu0 0
      %1061 = vmatprep.subr.bf16.mxu0 0
      %1062 = vmatpush1.bf16.msra.mxu0 0
      %1063 = vmatprep.subr.bf16.mxu0 0
      %1064 = vmatpush1.bf16.msra.mxu0 0
      %1065 = vmatprep.subr.bf16.mxu0 0
      %1066 = vmatpush1.bf16.msra.mxu0 0
      %1067 = vmatprep.subr.bf16.mxu0 0
      %1068 = vmatpush1.bf16.msra.mxu0 0
      %1069 = vmatprep.subr.bf16.mxu0 0
      %1070 = vmatpush1.bf16.msra.mxu0 0
      %1071 = vmatprep.subr.bf16.mxu0 0
      %1072 = vmatpush1.bf16.msra.mxu0 0
      %1073 = vmatprep.subr.bf16.mxu0 0
      %1074 = vmatpush1.bf16.msra.mxu0 0
      %1075 = vmatprep.mubr.bf16.mxu0 0
      %1076 = vmatmul.mubr.bf16.gmra.mrb[0].mxu0 %v977
      %v1077 = vpop.f32.mrb[0].mxu0
      %v1078 = vadd.f32 0.0, %v1077
      %v1079 = vpop.f32.mrb[0].mxu0
      %v1080 = vpop.f32.mrb[0].mxu0
      %v1081 = vpop.f32.mrb[0].mxu0
      %1082 = vdwg.mxu0
      %v1083 = vadd.f32 %v975, %v1078
      %v1084 = vld [vmem:[%s5] sm:$0x1]
      %v1086 = vlaneseq
      %v1087 = vshrl.u32 %v1086, 7
      %v1088 = vsub.s32 0, %v1087
      %v1089 = vrot.slane %v1084, %v1088
      %v1091 = vadd.f32 %v1083, %v1089
      %v1092 = vld [vmem:[%s303] sm:$0xff]
      %v1093 = vadd.f32 %v1091, %v1092
      %vm1094 = vcmask 195584
      %1095 = vst.msk [vmem:[%s307] sm:$0xff] %vm1094, %v1093
      %p1096 = scmp.lt.s32.totalorder %s18, 1
      %s1097 = scalar_select %p1096, %s18, 1
      %s1098 = smul.addr %s1097, 8
      %s1099 = scalar_lea.vmem %s7, %s1098
      // Predicated region
      $region49: #{_lambda_.9} parent=47 // pred_check
        %p1100 = pneg %p198
      $region50: #{_lambda_.9} parent=47 // pred_check_branch
        %1102 = sbr.rel (%p1100) target = $region52
      $region51: #{_lambda_.9} parent=47 // pred_region
        _
      $region52: #{_lambda_.9} parent=47 // pred_fallthru
        _
    $region48: #{_lambda_.9} parent=5 // pred_fallthru
      _
    %p1103 = scmp.le.s32.totalorder 2, %s13
    // Predicated region
    $region53: #{_lambda_.9} parent=5 // pred_check
      %p1104 = pneg %p1103
    $region54: #{_lambda_.9} parent=5 // pred_check_branch
      %1106 = sbr.rel (%p1104) target = $region56
    $region55: #{_lambda_.9} parent=5 // pred_region
      %s1107 = ssub.s32 %s13, 2
      // Predicated region
      $region57: #{_lambda_.9} parent=55 // pred_check
        %p1108 = pneg %p204
      $region58: #{_lambda_.9} parent=55 // pred_check_branch
        %1110 = sbr.rel (%p1108) target = $region60
      $region59: #{_lambda_.9} parent=55 // pred_region
        %p1111 = scmp.lt.s32.totalorder %s19, 1
        %s1112 = scalar_select %p1111, %s19, 1
        %s1113 = smul.addr %s1112, 8
        %s1114 = scalar_lea.vmem %s7, %s1113
      $region60: #{_lambda_.9} parent=55 // pred_fallthru
        _
    $region56: #{_lambda_.9} parent=5 // pred_fallthru
      _
  $region6: #{_lambda_.9} parent=0 // loop_footer
    %s17 = sadd.s32 1, %s13
  $region7: #{_lambda_.9} parent=0 // loop_footer_branch
    %12 = sbr.rel target = $region3
  $region8: #{_lambda_.9} parent=0 // loop_exit
    _

</llo_original>
